<compile_context>
chip_gen: v7x
topology: tpu7x:2x2x1
jax: 0.10.0
libtpu: 0.0.40
codegen_flags: <defaults>
</compile_context>

<pallas_src>
import functools

import jax
import jax.numpy as jnp
from jax.experimental import pallas as pl
from jax.experimental.pallas import tpu as pltpu  # noqa: F401  (imported per convention)

# ---------------- small, deterministic config ----------------
VOCAB = 100
HIDDEN = 32
NUM_LAYERS = 2
NUM_HEADS = 4
HEAD_DIM = HIDDEN // NUM_HEADS
INTERMEDIATE = 64
MAX_POS = 16
TYPE_VOCAB = 2
NUM_CLASSES = 21
PAD_CLASSES = 128          # lane-dense classifier output; sliced to NUM_CLASSES outside
LN_EPS = 1e-12
INV_SQRT2 = 0.7071067811865476


# ---------------- single fused Pallas kernel ----------------
def _bert_fused_kernel(emb_ref, mask_ref,
                       emb_ln_g_ref, emb_ln_b_ref,
                       qkv_w_ref, qkv_b_ref, ao_w_ref, ao_b_ref,
                       ln1_g_ref, ln1_b_ref, f1_w_ref, f1_b_ref,
                       f2_w_ref, f2_b_ref, ln2_g_ref, ln2_b_ref,
                       pool_w_ref, pool_b_ref, cls_w_ref, cls_b_ref,
                       out_ref, *, batch, seq):
    scale = jnp.float32(1.0 / (HEAD_DIM ** 0.5))

    def layernorm(h, g, b):
        mu = jnp.mean(h, axis=-1, keepdims=True)
        var = jnp.mean(jnp.square(h - mu), axis=-1, keepdims=True)
        return (h - mu) * jax.lax.rsqrt(var + LN_EPS) * g + b

    def gelu_exact(x):
        # HF BERT 'gelu' (erf-based, exact)
        return 0.5 * x * (1.0 + jax.lax.erf(x * INV_SQRT2))

    # --- embeddings LayerNorm ---
    h = layernorm(emb_ref[...], emb_ln_g_ref[...], emb_ln_b_ref[...])          # [B*S, H]

    # --- extended attention mask bias ---
    mask_bias = (1.0 - mask_ref[...]) * jnp.float32(-10000.0)                  # [B, S]

    # --- transformer layers (unrolled at trace time; weights stay VMEM-resident) ---
    for l in range(NUM_LAYERS):
        # fused Q/K/V projection: one [B*S, H] x [H, 3H] matmul
        qkv = (jnp.dot(h, qkv_w_ref[l], preferred_element_type=jnp.float32)
               + qkv_b_ref[l:l + 1, :])                                        # [B*S, 3H]

        # per-(batch, head) attention with pure 2-D matmuls (trace-time unrolled:
        # B*NH = 8 tiny matmul pairs per layer; avoids 3-D/4-D reshapes entirely)
        ctx_batches = []
        for b in range(batch):
            r0 = b * seq
            bias_b = mask_bias[b:b + 1, :]                                     # [1, S]
            ctx_heads = []
            for hh in range(NUM_HEADS):
                q = qkv[r0:r0 + seq, 0 * HIDDEN + hh * HEAD_DIM:
                                     0 * HIDDEN + (hh + 1) * HEAD_DIM]         # [S, HD]
                k = qkv[r0:r0 + seq, 1 * HIDDEN + hh * HEAD_DIM:
                                     1 * HIDDEN + (hh + 1) * HEAD_DIM]         # [S, HD]
                v = qkv[r0:r0 + seq, 2 * HIDDEN + hh * HEAD_DIM:
                                     2 * HIDDEN + (hh + 1) * HEAD_DIM]         # [S, HD]

                s = jnp.einsum("qd,kd->qk", q, k,
                               preferred_element_type=jnp.float32) * scale     # [S, S]
                s = s + bias_b
                s = s - jnp.max(s, axis=-1, keepdims=True)
                p = jnp.exp(s)
                p = p * pl.reciprocal(jnp.sum(p, axis=-1, keepdims=True),
                                      approx=False)
                ctx_heads.append(jnp.dot(p, v,
                                         preferred_element_type=jnp.float32))  # [S, HD]
            ctx_batches.append(jnp.concatenate(ctx_heads, axis=-1))            # [S, H]
        ctx = jnp.concatenate(ctx_batches, axis=0)                             # [B*S, H]

        # attention output projection + residual + LayerNorm
        attn_out = (jnp.dot(ctx, ao_w_ref[l], preferred_element_type=jnp.float32)
                    + ao_b_ref[l:l + 1, :])
        h = layernorm(attn_out + h, ln1_g_ref[l:l + 1, :], ln1_b_ref[l:l + 1, :])

        # feed-forward (exact GELU) + residual + LayerNorm
        ffn = (jnp.dot(h, f1_w_ref[l], preferred_element_type=jnp.float32)
               + f1_b_ref[l:l + 1, :])
        ffn = gelu_exact(ffn)
        ffn = (jnp.dot(ffn, f2_w_ref[l], preferred_element_type=jnp.float32)
               + f2_b_ref[l:l + 1, :])
        h = layernorm(ffn + h, ln2_g_ref[l:l + 1, :], ln2_b_ref[l:l + 1, :])

    # --- pooler: dense + tanh on the [CLS] token (row b*S of each sequence) ---
    cls_tok = jnp.concatenate([h[b * seq:b * seq + 1, :] for b in range(batch)],
                              axis=0)                                          # [B, H]
    pooled = jnp.tanh(jnp.dot(cls_tok, pool_w_ref[...],
                              preferred_element_type=jnp.float32) + pool_b_ref[...])

    # --- dropout: eval-mode identity ---

    # --- classification head (lane-dense: padded to 128 output lanes) ---
    logits = (jnp.dot(pooled, cls_w_ref[...], preferred_element_type=jnp.float32)
              + cls_b_ref[...])                                                # [B, 128]
    out_ref[...] = logits.astype(out_ref.dtype)


# ---------------- parameter init (deterministic, QKV pre-merged, layers stacked) ----------------
def init_params(key):
    keys = jax.random.split(key, 16)
    it = iter(range(16))

    def nrm(shape):
        return 0.02 * jax.random.normal(keys[next(it)], shape, jnp.float32)

    return {
        "word_emb": nrm((VOCAB, HIDDEN)),
        "pos_emb": nrm((MAX_POS, HIDDEN)),
        "type_emb": nrm((TYPE_VOCAB, HIDDEN)),
        "emb_ln_g": jnp.ones((HIDDEN,), jnp.float32),
        "emb_ln_b": jnp.zeros((HIDDEN,), jnp.float32),
        # per-layer weights stacked along a leading layer axis; Q/K/V merged into one matrix
        "qkv_w": nrm((NUM_LAYERS, HIDDEN, 3 * HIDDEN)),
        "qkv_b": jnp.zeros((NUM_LAYERS, 3 * HIDDEN), jnp.float32),
        "ao_w": nrm((NUM_LAYERS, HIDDEN, HIDDEN)),
        "ao_b": jnp.zeros((NUM_LAYERS, HIDDEN), jnp.float32),
        "ln1_g": jnp.ones((NUM_LAYERS, HIDDEN), jnp.float32),
        "ln1_b": jnp.zeros((NUM_LAYERS, HIDDEN), jnp.float32),
        "f1_w": nrm((NUM_LAYERS, HIDDEN, INTERMEDIATE)),
        "f1_b": jnp.zeros((NUM_LAYERS, INTERMEDIATE), jnp.float32),
        "f2_w": nrm((NUM_LAYERS, INTERMEDIATE, HIDDEN)),
        "f2_b": jnp.zeros((NUM_LAYERS, HIDDEN), jnp.float32),
        "ln2_g": jnp.ones((NUM_LAYERS, HIDDEN), jnp.float32),
        "ln2_b": jnp.zeros((NUM_LAYERS, HIDDEN), jnp.float32),
        "pool_w": nrm((HIDDEN, HIDDEN)),
        "pool_b": jnp.zeros((HIDDEN,), jnp.float32),
        "cls_w": nrm((HIDDEN, NUM_CLASSES)),
        "cls_b": jnp.zeros((NUM_CLASSES,), jnp.float32),
    }


# ---------------- forward pass: one pallas_call ----------------
def bert_classifier_forward(params, input_id, mask):
    B, S = input_id.shape

    # embedding gather + sum is tiny XLA glue; everything after it runs inside the kernel
    emb = (params["word_emb"][input_id]
           + params["pos_emb"][:S][None, :, :]
           + params["type_emb"][0][None, None, :]).reshape(B * S, HIDDEN).astype(jnp.float32)
    mask_f = mask.astype(jnp.float32)

    # lane-dense classifier weights (pad N=21 -> 128 lanes; sliced after the kernel)
    cls_w_pad = jnp.zeros((HIDDEN, PAD_CLASSES), jnp.float32).at[:, :NUM_CLASSES].set(params["cls_w"])
    cls_b_pad = jnp.zeros((1, PAD_CLASSES), jnp.float32).at[0, :NUM_CLASSES].set(params["cls_b"])

    kern = functools.partial(_bert_fused_kernel, batch=B, seq=S)
    logits_pad = pl.pallas_call(
        kern,
        out_shape=jax.ShapeDtypeStruct((B, PAD_CLASSES), jnp.float32),
        compiler_params=pltpu.CompilerParams(vmem_limit_bytes=16 * 1024 * 1024),
    )(emb, mask_f,
      params["emb_ln_g"].reshape(1, HIDDEN), params["emb_ln_b"].reshape(1, HIDDEN),
      params["qkv_w"], params["qkv_b"], params["ao_w"], params["ao_b"],
      params["ln1_g"], params["ln1_b"], params["f1_w"], params["f1_b"],
      params["f2_w"], params["f2_b"], params["ln2_g"], params["ln2_b"],
      params["pool_w"], params["pool_b"].reshape(1, HIDDEN),
      cls_w_pad, cls_b_pad)

    return logits_pad[:, :NUM_CLASSES]


if __name__ == "__main__":
    key = jax.random.PRNGKey(0)
    pkey, ikey = jax.random.split(key)
    params = init_params(pkey)

    B, S = 2, 8
    input_id = jax.random.randint(ikey, (B, S), 0, VOCAB, dtype=jnp.int32)
    mask = jnp.ones((B, S), jnp.int32).at[1, 6:].set(0)  # second sequence has padding

    logits = jax.jit(bert_classifier_forward)(params, input_id, mask)
    logits = jax.block_until_ready(logits)

    assert logits.shape == (B, NUM_CLASSES), logits.shape
    assert logits.dtype == jnp.float32
    assert bool(jnp.all(jnp.isfinite(logits)))
    print("KERNEL_OK")
</pallas_src>

<mosaic_0001>
module attributes {stable_mosaic.version = 11 : i64} {
  func.func @_bert_fused_kernel(%arg0: memref<16x32xf32, #tpu.memory_space<vmem>>, %arg1: memref<2x8xf32, #tpu.memory_space<vmem>>, %arg2: memref<1x32xf32, #tpu.memory_space<vmem>>, %arg3: memref<1x32xf32, #tpu.memory_space<vmem>>, %arg4: memref<2x32x96xf32, #tpu.memory_space<vmem>>, %arg5: memref<2x96xf32, #tpu.memory_space<vmem>>, %arg6: memref<2x32x32xf32, #tpu.memory_space<vmem>>, %arg7: memref<2x32xf32, #tpu.memory_space<vmem>>, %arg8: memref<2x32xf32, #tpu.memory_space<vmem>>, %arg9: memref<2x32xf32, #tpu.memory_space<vmem>>, %arg10: memref<2x32x64xf32, #tpu.memory_space<vmem>>, %arg11: memref<2x64xf32, #tpu.memory_space<vmem>>, %arg12: memref<2x64x32xf32, #tpu.memory_space<vmem>>, %arg13: memref<2x32xf32, #tpu.memory_space<vmem>>, %arg14: memref<2x32xf32, #tpu.memory_space<vmem>>, %arg15: memref<2x32xf32, #tpu.memory_space<vmem>>, %arg16: memref<32x32xf32, #tpu.memory_space<vmem>>, %arg17: memref<1x32xf32, #tpu.memory_space<vmem>>, %arg18: memref<32x128xf32, #tpu.memory_space<vmem>>, %arg19: memref<1x128xf32, #tpu.memory_space<vmem>>, %arg20: memref<2x128xf32, #tpu.memory_space<vmem>>) attributes {dimension_semantics = [], scalar_prefetch = 0 : i64, scratch_operands = 0 : i64, tpu.core_type = #tpu.core_type<tc>} {
    %c0 = arith.constant 0 : index
    %c0_0 = arith.constant 0 : index
    %0 = vector.load %arg0[%c0, %c0_0] : memref<16x32xf32, #tpu.memory_space<vmem>>, vector<16x32xf32>
    %c0_1 = arith.constant 0 : index
    %c0_2 = arith.constant 0 : index
    %1 = vector.load %arg2[%c0_1, %c0_2] : memref<1x32xf32, #tpu.memory_space<vmem>>, vector<1x32xf32>
    %c0_3 = arith.constant 0 : index
    %c0_4 = arith.constant 0 : index
    %2 = vector.load %arg3[%c0_3, %c0_4] : memref<1x32xf32, #tpu.memory_space<vmem>>, vector<1x32xf32>
    %cst = arith.constant dense<0.000000e+00> : vector<16xf32>
    %3 = vector.multi_reduction <add>, %0, %cst [1] : vector<16x32xf32> to vector<16xf32>
    %4 = vector.shape_cast %3 : vector<16xf32> to vector<16x1xf32>
    %cst_5 = arith.constant 3.200000e+01 : f32
    %5 = vector.broadcast %cst_5 : f32 to vector<16x1xf32>
    %6 = arith.divf %4, %5 : vector<16x1xf32>
    %7 = vector.broadcast %6 : vector<16x1xf32> to vector<16x32xf32>
    %8 = arith.subf %0, %7 : vector<16x32xf32>
    %9 = arith.mulf %8, %8 : vector<16x32xf32>
    %cst_6 = arith.constant dense<0.000000e+00> : vector<16xf32>
    %10 = vector.multi_reduction <add>, %9, %cst_6 [1] : vector<16x32xf32> to vector<16xf32>
    %11 = vector.shape_cast %10 : vector<16xf32> to vector<16x1xf32>
    %cst_7 = arith.constant 3.200000e+01 : f32
    %12 = vector.broadcast %cst_7 : f32 to vector<16x1xf32>
    %13 = arith.divf %11, %12 : vector<16x1xf32>
    %14 = vector.broadcast %6 : vector<16x1xf32> to vector<16x32xf32>
    %15 = arith.subf %0, %14 : vector<16x32xf32>
    %cst_8 = arith.constant 9.99999996E-13 : f32
    %16 = vector.broadcast %cst_8 : f32 to vector<16x1xf32>
    %17 = arith.addf %13, %16 : vector<16x1xf32>
    %18 = math.rsqrt %17 : vector<16x1xf32>
    %19 = vector.broadcast %18 : vector<16x1xf32> to vector<16x32xf32>
    %20 = arith.mulf %15, %19 : vector<16x32xf32>
    %21 = vector.broadcast %1 : vector<1x32xf32> to vector<16x32xf32>
    %22 = arith.mulf %20, %21 : vector<16x32xf32>
    %23 = vector.broadcast %2 : vector<1x32xf32> to vector<16x32xf32>
    %24 = arith.addf %22, %23 : vector<16x32xf32>
    %c0_9 = arith.constant 0 : index
    %c0_10 = arith.constant 0 : index
    %25 = vector.load %arg1[%c0_9, %c0_10] : memref<2x8xf32, #tpu.memory_space<vmem>>, vector<2x8xf32>
    %cst_11 = arith.constant 1.000000e+00 : f32
    %26 = vector.broadcast %cst_11 : f32 to vector<2x8xf32>
    %27 = arith.subf %26, %25 : vector<2x8xf32>
    %cst_12 = arith.constant -1.000000e+04 : f32
    %28 = vector.broadcast %cst_12 : f32 to vector<2x8xf32>
    %29 = arith.mulf %27, %28 : vector<2x8xf32>
    %c0_13 = arith.constant 0 : index
    %c0_14 = arith.constant 0 : index
    %c0_15 = arith.constant 0 : index
    %30 = vector.load %arg4[%c0_13, %c0_14, %c0_15] : memref<2x32x96xf32, #tpu.memory_space<vmem>>, vector<1x32x96xf32>
    %31 = vector.shape_cast %30 : vector<1x32x96xf32> to vector<32x96xf32>
    %cst_16 = arith.constant dense<0.000000e+00> : vector<16x96xf32>
    %32 = tpu.matmul %24, %31, %cst_16 {dimension_numbers = #tpu.dot_dimension_numbers<[1], [0], [0], [1], [0, 0, 1, 1], [], []>} : vector<16x32xf32>, vector<32x96xf32>, vector<16x96xf32> -> vector<16x96xf32>
    %c0_17 = arith.constant 0 : index
    %c0_18 = arith.constant 0 : index
    %33 = vector.load %arg5[%c0_17, %c0_18] : memref<2x96xf32, #tpu.memory_space<vmem>>, vector<1x96xf32>
    %34 = vector.broadcast %33 : vector<1x96xf32> to vector<16x96xf32>
    %35 = arith.addf %32, %34 : vector<16x96xf32>
    %36 = vector.extract_strided_slice %29 {offsets = [0, 0], sizes = [1, 8], strides = [1, 1]} : vector<2x8xf32> to vector<1x8xf32>
    %37 = vector.extract_strided_slice %35 {offsets = [0, 0], sizes = [8, 8], strides = [1, 1]} : vector<16x96xf32> to vector<8x8xf32>
    %38 = vector.extract_strided_slice %35 {offsets = [0, 32], sizes = [8, 8], strides = [1, 1]} : vector<16x96xf32> to vector<8x8xf32>
    %39 = vector.extract_strided_slice %35 {offsets = [0, 64], sizes = [8, 8], strides = [1, 1]} : vector<16x96xf32> to vector<8x8xf32>
    "tpu.trace_start"() <{level = 10 : i32, message = "qd,kd->qk"}> : () -> ()
    %cst_19 = arith.constant dense<0.000000e+00> : vector<8x8xf32>
    %40 = tpu.matmul %37, %38, %cst_19 {dimension_numbers = #tpu.dot_dimension_numbers<[1], [1], [0], [0], [0, 0, 1, 0], [], []>} : vector<8x8xf32>, vector<8x8xf32>, vector<8x8xf32> -> vector<8x8xf32>
    "tpu.trace_stop"() : () -> ()
    %cst_20 = arith.constant 0.353553385 : f32
    %41 = vector.broadcast %cst_20 : f32 to vector<8x8xf32>
    %42 = arith.mulf %40, %41 : vector<8x8xf32>
    %43 = vector.broadcast %36 : vector<1x8xf32> to vector<8x8xf32>
    %44 = arith.addf %42, %43 : vector<8x8xf32>
    %cst_21 = arith.constant dense<0xFF800000> : vector<8xf32>
    %45 = vector.multi_reduction <maximumf>, %44, %cst_21 [1] : vector<8x8xf32> to vector<8xf32>
    %46 = vector.shape_cast %45 : vector<8xf32> to vector<8x1xf32>
    %47 = vector.broadcast %46 : vector<8x1xf32> to vector<8x8xf32>
    %48 = arith.subf %44, %47 : vector<8x8xf32>
    %49 = math.exp %48 : vector<8x8xf32>
    %cst_22 = arith.constant dense<0.000000e+00> : vector<8xf32>
    %50 = vector.multi_reduction <add>, %49, %cst_22 [1] : vector<8x8xf32> to vector<8xf32>
    %51 = vector.shape_cast %50 : vector<8xf32> to vector<8x1xf32>
    %52 = tpu.reciprocal %51 : vector<8x1xf32> -> vector<8x1xf32>
    %53 = vector.broadcast %52 : vector<8x1xf32> to vector<8x8xf32>
    %54 = arith.mulf %49, %53 : vector<8x8xf32>
    %cst_23 = arith.constant dense<0.000000e+00> : vector<8x8xf32>
    %55 = tpu.matmul %54, %39, %cst_23 {dimension_numbers = #tpu.dot_dimension_numbers<[1], [0], [0], [1], [0, 0, 1, 1], [], []>} : vector<8x8xf32>, vector<8x8xf32>, vector<8x8xf32> -> vector<8x8xf32>
    %56 = vector.extract_strided_slice %35 {offsets = [0, 8], sizes = [8, 8], strides = [1, 1]} : vector<16x96xf32> to vector<8x8xf32>
    %57 = vector.extract_strided_slice %35 {offsets = [0, 40], sizes = [8, 8], strides = [1, 1]} : vector<16x96xf32> to vector<8x8xf32>
    %58 = vector.extract_strided_slice %35 {offsets = [0, 72], sizes = [8, 8], strides = [1, 1]} : vector<16x96xf32> to vector<8x8xf32>
    "tpu.trace_start"() <{level = 10 : i32, message = "qd,kd->qk"}> : () -> ()
    %cst_24 = arith.constant dense<0.000000e+00> : vector<8x8xf32>
    %59 = tpu.matmul %56, %57, %cst_24 {dimension_numbers = #tpu.dot_dimension_numbers<[1], [1], [0], [0], [0, 0, 1, 0], [], []>} : vector<8x8xf32>, vector<8x8xf32>, vector<8x8xf32> -> vector<8x8xf32>
    "tpu.trace_stop"() : () -> ()
    %cst_25 = arith.constant 0.353553385 : f32
    %60 = vector.broadcast %cst_25 : f32 to vector<8x8xf32>
    %61 = arith.mulf %59, %60 : vector<8x8xf32>
    %62 = vector.broadcast %36 : vector<1x8xf32> to vector<8x8xf32>
    %63 = arith.addf %61, %62 : vector<8x8xf32>
    %cst_26 = arith.constant dense<0xFF800000> : vector<8xf32>
    %64 = vector.multi_reduction <maximumf>, %63, %cst_26 [1] : vector<8x8xf32> to vector<8xf32>
    %65 = vector.shape_cast %64 : vector<8xf32> to vector<8x1xf32>
    %66 = vector.broadcast %65 : vector<8x1xf32> to vector<8x8xf32>
    %67 = arith.subf %63, %66 : vector<8x8xf32>
    %68 = math.exp %67 : vector<8x8xf32>
    %cst_27 = arith.constant dense<0.000000e+00> : vector<8xf32>
    %69 = vector.multi_reduction <add>, %68, %cst_27 [1] : vector<8x8xf32> to vector<8xf32>
    %70 = vector.shape_cast %69 : vector<8xf32> to vector<8x1xf32>
    %71 = tpu.reciprocal %70 : vector<8x1xf32> -> vector<8x1xf32>
    %72 = vector.broadcast %71 : vector<8x1xf32> to vector<8x8xf32>
    %73 = arith.mulf %68, %72 : vector<8x8xf32>
    %cst_28 = arith.constant dense<0.000000e+00> : vector<8x8xf32>
    %74 = tpu.matmul %73, %58, %cst_28 {dimension_numbers = #tpu.dot_dimension_numbers<[1], [0], [0], [1], [0, 0, 1, 1], [], []>} : vector<8x8xf32>, vector<8x8xf32>, vector<8x8xf32> -> vector<8x8xf32>
    %75 = vector.extract_strided_slice %35 {offsets = [0, 16], sizes = [8, 8], strides = [1, 1]} : vector<16x96xf32> to vector<8x8xf32>
    %76 = vector.extract_strided_slice %35 {offsets = [0, 48], sizes = [8, 8], strides = [1, 1]} : vector<16x96xf32> to vector<8x8xf32>
    %77 = vector.extract_strided_slice %35 {offsets = [0, 80], sizes = [8, 8], strides = [1, 1]} : vector<16x96xf32> to vector<8x8xf32>
    "tpu.trace_start"() <{level = 10 : i32, message = "qd,kd->qk"}> : () -> ()
    %cst_29 = arith.constant dense<0.000000e+00> : vector<8x8xf32>
    %78 = tpu.matmul %75, %76, %cst_29 {dimension_numbers = #tpu.dot_dimension_numbers<[1], [1], [0], [0], [0, 0, 1, 0], [], []>} : vector<8x8xf32>, vector<8x8xf32>, vector<8x8xf32> -> vector<8x8xf32>
    "tpu.trace_stop"() : () -> ()
    %cst_30 = arith.constant 0.353553385 : f32
    %79 = vector.broadcast %cst_30 : f32 to vector<8x8xf32>
    %80 = arith.mulf %78, %79 : vector<8x8xf32>
    %81 = vector.broadcast %36 : vector<1x8xf32> to vector<8x8xf32>
    %82 = arith.addf %80, %81 : vector<8x8xf32>
    %cst_31 = arith.constant dense<0xFF800000> : vector<8xf32>
    %83 = vector.multi_reduction <maximumf>, %82, %cst_31 [1] : vector<8x8xf32> to vector<8xf32>
    %84 = vector.shape_cast %83 : vector<8xf32> to vector<8x1xf32>
    %85 = vector.broadcast %84 : vector<8x1xf32> to vector<8x8xf32>
    %86 = arith.subf %82, %85 : vector<8x8xf32>
    %87 = math.exp %86 : vector<8x8xf32>
    %cst_32 = arith.constant dense<0.000000e+00> : vector<8xf32>
    %88 = vector.multi_reduction <add>, %87, %cst_32 [1] : vector<8x8xf32> to vector<8xf32>
    %89 = vector.shape_cast %88 : vector<8xf32> to vector<8x1xf32>
    %90 = tpu.reciprocal %89 : vector<8x1xf32> -> vector<8x1xf32>
    %91 = vector.broadcast %90 : vector<8x1xf32> to vector<8x8xf32>
    %92 = arith.mulf %87, %91 : vector<8x8xf32>
    %cst_33 = arith.constant dense<0.000000e+00> : vector<8x8xf32>
    %93 = tpu.matmul %92, %77, %cst_33 {dimension_numbers = #tpu.dot_dimension_numbers<[1], [0], [0], [1], [0, 0, 1, 1], [], []>} : vector<8x8xf32>, vector<8x8xf32>, vector<8x8xf32> -> vector<8x8xf32>
    %94 = vector.extract_strided_slice %35 {offsets = [0, 24], sizes = [8, 8], strides = [1, 1]} : vector<16x96xf32> to vector<8x8xf32>
    %95 = vector.extract_strided_slice %35 {offsets = [0, 56], sizes = [8, 8], strides = [1, 1]} : vector<16x96xf32> to vector<8x8xf32>
    %96 = vector.extract_strided_slice %35 {offsets = [0, 88], sizes = [8, 8], strides = [1, 1]} : vector<16x96xf32> to vector<8x8xf32>
    "tpu.trace_start"() <{level = 10 : i32, message = "qd,kd->qk"}> : () -> ()
    %cst_34 = arith.constant dense<0.000000e+00> : vector<8x8xf32>
    %97 = tpu.matmul %94, %95, %cst_34 {dimension_numbers = #tpu.dot_dimension_numbers<[1], [1], [0], [0], [0, 0, 1, 0], [], []>} : vector<8x8xf32>, vector<8x8xf32>, vector<8x8xf32> -> vector<8x8xf32>
    "tpu.trace_stop"() : () -> ()
    %cst_35 = arith.constant 0.353553385 : f32
    %98 = vector.broadcast %cst_35 : f32 to vector<8x8xf32>
    %99 = arith.mulf %97, %98 : vector<8x8xf32>
    %100 = vector.broadcast %36 : vector<1x8xf32> to vector<8x8xf32>
    %101 = arith.addf %99, %100 : vector<8x8xf32>
    %cst_36 = arith.constant dense<0xFF800000> : vector<8xf32>
    %102 = vector.multi_reduction <maximumf>, %101, %cst_36 [1] : vector<8x8xf32> to vector<8xf32>
    %103 = vector.shape_cast %102 : vector<8xf32> to vector<8x1xf32>
    %104 = vector.broadcast %103 : vector<8x1xf32> to vector<8x8xf32>
    %105 = arith.subf %101, %104 : vector<8x8xf32>
    %106 = math.exp %105 : vector<8x8xf32>
    %cst_37 = arith.constant dense<0.000000e+00> : vector<8xf32>
    %107 = vector.multi_reduction <add>, %106, %cst_37 [1] : vector<8x8xf32> to vector<8xf32>
    %108 = vector.shape_cast %107 : vector<8xf32> to vector<8x1xf32>
    %109 = tpu.reciprocal %108 : vector<8x1xf32> -> vector<8x1xf32>
    %110 = vector.broadcast %109 : vector<8x1xf32> to vector<8x8xf32>
    %111 = arith.mulf %106, %110 : vector<8x8xf32>
    %cst_38 = arith.constant dense<0.000000e+00> : vector<8x8xf32>
    %112 = tpu.matmul %111, %96, %cst_38 {dimension_numbers = #tpu.dot_dimension_numbers<[1], [0], [0], [1], [0, 0, 1, 1], [], []>} : vector<8x8xf32>, vector<8x8xf32>, vector<8x8xf32> -> vector<8x8xf32>
    %113 = tpu.concatenate %55, %74, %93, %112 in 1 : vector<8x8xf32>, vector<8x8xf32>, vector<8x8xf32>, vector<8x8xf32> -> vector<8x32xf32>
    %114 = vector.extract_strided_slice %29 {offsets = [1, 0], sizes = [1, 8], strides = [1, 1]} : vector<2x8xf32> to vector<1x8xf32>
    %115 = vector.extract_strided_slice %35 {offsets = [8, 0], sizes = [8, 8], strides = [1, 1]} : vector<16x96xf32> to vector<8x8xf32>
    %116 = vector.extract_strided_slice %35 {offsets = [8, 32], sizes = [8, 8], strides = [1, 1]} : vector<16x96xf32> to vector<8x8xf32>
    %117 = vector.extract_strided_slice %35 {offsets = [8, 64], sizes = [8, 8], strides = [1, 1]} : vector<16x96xf32> to vector<8x8xf32>
    "tpu.trace_start"() <{level = 10 : i32, message = "qd,kd->qk"}> : () -> ()
    %cst_39 = arith.constant dense<0.000000e+00> : vector<8x8xf32>
    %118 = tpu.matmul %115, %116, %cst_39 {dimension_numbers = #tpu.dot_dimension_numbers<[1], [1], [0], [0], [0, 0, 1, 0], [], []>} : vector<8x8xf32>, vector<8x8xf32>, vector<8x8xf32> -> vector<8x8xf32>
    "tpu.trace_stop"() : () -> ()
    %cst_40 = arith.constant 0.353553385 : f32
    %119 = vector.broadcast %cst_40 : f32 to vector<8x8xf32>
    %120 = arith.mulf %118, %119 : vector<8x8xf32>
    %121 = vector.broadcast %114 : vector<1x8xf32> to vector<8x8xf32>
    %122 = arith.addf %120, %121 : vector<8x8xf32>
    %cst_41 = arith.constant dense<0xFF800000> : vector<8xf32>
    %123 = vector.multi_reduction <maximumf>, %122, %cst_41 [1] : vector<8x8xf32> to vector<8xf32>
    %124 = vector.shape_cast %123 : vector<8xf32> to vector<8x1xf32>
    %125 = vector.broadcast %124 : vector<8x1xf32> to vector<8x8xf32>
    %126 = arith.subf %122, %125 : vector<8x8xf32>
    %127 = math.exp %126 : vector<8x8xf32>
    %cst_42 = arith.constant dense<0.000000e+00> : vector<8xf32>
    %128 = vector.multi_reduction <add>, %127, %cst_42 [1] : vector<8x8xf32> to vector<8xf32>
    %129 = vector.shape_cast %128 : vector<8xf32> to vector<8x1xf32>
    %130 = tpu.reciprocal %129 : vector<8x1xf32> -> vector<8x1xf32>
    %131 = vector.broadcast %130 : vector<8x1xf32> to vector<8x8xf32>
    %132 = arith.mulf %127, %131 : vector<8x8xf32>
    %cst_43 = arith.constant dense<0.000000e+00> : vector<8x8xf32>
    %133 = tpu.matmul %132, %117, %cst_43 {dimension_numbers = #tpu.dot_dimension_numbers<[1], [0], [0], [1], [0, 0, 1, 1], [], []>} : vector<8x8xf32>, vector<8x8xf32>, vector<8x8xf32> -> vector<8x8xf32>
    %134 = vector.extract_strided_slice %35 {offsets = [8, 8], sizes = [8, 8], strides = [1, 1]} : vector<16x96xf32> to vector<8x8xf32>
    %135 = vector.extract_strided_slice %35 {offsets = [8, 40], sizes = [8, 8], strides = [1, 1]} : vector<16x96xf32> to vector<8x8xf32>
    %136 = vector.extract_strided_slice %35 {offsets = [8, 72], sizes = [8, 8], strides = [1, 1]} : vector<16x96xf32> to vector<8x8xf32>
    "tpu.trace_start"() <{level = 10 : i32, message = "qd,kd->qk"}> : () -> ()
    %cst_44 = arith.constant dense<0.000000e+00> : vector<8x8xf32>
    %137 = tpu.matmul %134, %135, %cst_44 {dimension_numbers = #tpu.dot_dimension_numbers<[1], [1], [0], [0], [0, 0, 1, 0], [], []>} : vector<8x8xf32>, vector<8x8xf32>, vector<8x8xf32> -> vector<8x8xf32>
    "tpu.trace_stop"() : () -> ()
    %cst_45 = arith.constant 0.353553385 : f32
    %138 = vector.broadcast %cst_45 : f32 to vector<8x8xf32>
    %139 = arith.mulf %137, %138 : vector<8x8xf32>
    %140 = vector.broadcast %114 : vector<1x8xf32> to vector<8x8xf32>
    %141 = arith.addf %139, %140 : vector<8x8xf32>
    %cst_46 = arith.constant dense<0xFF800000> : vector<8xf32>
    %142 = vector.multi_reduction <maximumf>, %141, %cst_46 [1] : vector<8x8xf32> to vector<8xf32>
    %143 = vector.shape_cast %142 : vector<8xf32> to vector<8x1xf32>
    %144 = vector.broadcast %143 : vector<8x1xf32> to vector<8x8xf32>
    %145 = arith.subf %141, %144 : vector<8x8xf32>
    %146 = math.exp %145 : vector<8x8xf32>
    %cst_47 = arith.constant dense<0.000000e+00> : vector<8xf32>
    %147 = vector.multi_reduction <add>, %146, %cst_47 [1] : vector<8x8xf32> to vector<8xf32>
    %148 = vector.shape_cast %147 : vector<8xf32> to vector<8x1xf32>
    %149 = tpu.reciprocal %148 : vector<8x1xf32> -> vector<8x1xf32>
    %150 = vector.broadcast %149 : vector<8x1xf32> to vector<8x8xf32>
    %151 = arith.mulf %146, %150 : vector<8x8xf32>
    %cst_48 = arith.constant dense<0.000000e+00> : vector<8x8xf32>
    %152 = tpu.matmul %151, %136, %cst_48 {dimension_numbers = #tpu.dot_dimension_numbers<[1], [0], [0], [1], [0, 0, 1, 1], [], []>} : vector<8x8xf32>, vector<8x8xf32>, vector<8x8xf32> -> vector<8x8xf32>
    %153 = vector.extract_strided_slice %35 {offsets = [8, 16], sizes = [8, 8], strides = [1, 1]} : vector<16x96xf32> to vector<8x8xf32>
    %154 = vector.extract_strided_slice %35 {offsets = [8, 48], sizes = [8, 8], strides = [1, 1]} : vector<16x96xf32> to vector<8x8xf32>
    %155 = vector.extract_strided_slice %35 {offsets = [8, 80], sizes = [8, 8], strides = [1, 1]} : vector<16x96xf32> to vector<8x8xf32>
    "tpu.trace_start"() <{level = 10 : i32, message = "qd,kd->qk"}> : () -> ()
    %cst_49 = arith.constant dense<0.000000e+00> : vector<8x8xf32>
    %156 = tpu.matmul %153, %154, %cst_49 {dimension_numbers = #tpu.dot_dimension_numbers<[1], [1], [0], [0], [0, 0, 1, 0], [], []>} : vector<8x8xf32>, vector<8x8xf32>, vector<8x8xf32> -> vector<8x8xf32>
    "tpu.trace_stop"() : () -> ()
    %cst_50 = arith.constant 0.353553385 : f32
    %157 = vector.broadcast %cst_50 : f32 to vector<8x8xf32>
    %158 = arith.mulf %156, %157 : vector<8x8xf32>
    %159 = vector.broadcast %114 : vector<1x8xf32> to vector<8x8xf32>
    %160 = arith.addf %158, %159 : vector<8x8xf32>
    %cst_51 = arith.constant dense<0xFF800000> : vector<8xf32>
    %161 = vector.multi_reduction <maximumf>, %160, %cst_51 [1] : vector<8x8xf32> to vector<8xf32>
    %162 = vector.shape_cast %161 : vector<8xf32> to vector<8x1xf32>
    %163 = vector.broadcast %162 : vector<8x1xf32> to vector<8x8xf32>
    %164 = arith.subf %160, %163 : vector<8x8xf32>
    %165 = math.exp %164 : vector<8x8xf32>
    %cst_52 = arith.constant dense<0.000000e+00> : vector<8xf32>
    %166 = vector.multi_reduction <add>, %165, %cst_52 [1] : vector<8x8xf32> to vector<8xf32>
    %167 = vector.shape_cast %166 : vector<8xf32> to vector<8x1xf32>
    %168 = tpu.reciprocal %167 : vector<8x1xf32> -> vector<8x1xf32>
    %169 = vector.broadcast %168 : vector<8x1xf32> to vector<8x8xf32>
    %170 = arith.mulf %165, %169 : vector<8x8xf32>
    %cst_53 = arith.constant dense<0.000000e+00> : vector<8x8xf32>
    %171 = tpu.matmul %170, %155, %cst_53 {dimension_numbers = #tpu.dot_dimension_numbers<[1], [0], [0], [1], [0, 0, 1, 1], [], []>} : vector<8x8xf32>, vector<8x8xf32>, vector<8x8xf32> -> vector<8x8xf32>
    %172 = vector.extract_strided_slice %35 {offsets = [8, 24], sizes = [8, 8], strides = [1, 1]} : vector<16x96xf32> to vector<8x8xf32>
    %173 = vector.extract_strided_slice %35 {offsets = [8, 56], sizes = [8, 8], strides = [1, 1]} : vector<16x96xf32> to vector<8x8xf32>
    %174 = vector.extract_strided_slice %35 {offsets = [8, 88], sizes = [8, 8], strides = [1, 1]} : vector<16x96xf32> to vector<8x8xf32>
    "tpu.trace_start"() <{level = 10 : i32, message = "qd,kd->qk"}> : () -> ()
    %cst_54 = arith.constant dense<0.000000e+00> : vector<8x8xf32>
    %175 = tpu.matmul %172, %173, %cst_54 {dimension_numbers = #tpu.dot_dimension_numbers<[1], [1], [0], [0], [0, 0, 1, 0], [], []>} : vector<8x8xf32>, vector<8x8xf32>, vector<8x8xf32> -> vector<8x8xf32>
    "tpu.trace_stop"() : () -> ()
    %cst_55 = arith.constant 0.353553385 : f32
    %176 = vector.broadcast %cst_55 : f32 to vector<8x8xf32>
    %177 = arith.mulf %175, %176 : vector<8x8xf32>
    %178 = vector.broadcast %114 : vector<1x8xf32> to vector<8x8xf32>
    %179 = arith.addf %177, %178 : vector<8x8xf32>
    %cst_56 = arith.constant dense<0xFF800000> : vector<8xf32>
    %180 = vector.multi_reduction <maximumf>, %179, %cst_56 [1] : vector<8x8xf32> to vector<8xf32>
    %181 = vector.shape_cast %180 : vector<8xf32> to vector<8x1xf32>
    %182 = vector.broadcast %181 : vector<8x1xf32> to vector<8x8xf32>
    %183 = arith.subf %179, %182 : vector<8x8xf32>
    %184 = math.exp %183 : vector<8x8xf32>
    %cst_57 = arith.constant dense<0.000000e+00> : vector<8xf32>
    %185 = vector.multi_reduction <add>, %184, %cst_57 [1] : vector<8x8xf32> to vector<8xf32>
    %186 = vector.shape_cast %185 : vector<8xf32> to vector<8x1xf32>
    %187 = tpu.reciprocal %186 : vector<8x1xf32> -> vector<8x1xf32>
    %188 = vector.broadcast %187 : vector<8x1xf32> to vector<8x8xf32>
    %189 = arith.mulf %184, %188 : vector<8x8xf32>
    %cst_58 = arith.constant dense<0.000000e+00> : vector<8x8xf32>
    %190 = tpu.matmul %189, %174, %cst_58 {dimension_numbers = #tpu.dot_dimension_numbers<[1], [0], [0], [1], [0, 0, 1, 1], [], []>} : vector<8x8xf32>, vector<8x8xf32>, vector<8x8xf32> -> vector<8x8xf32>
    %191 = tpu.concatenate %133, %152, %171, %190 in 1 : vector<8x8xf32>, vector<8x8xf32>, vector<8x8xf32>, vector<8x8xf32> -> vector<8x32xf32>
    %192 = tpu.concatenate %113, %191 in 0 : vector<8x32xf32>, vector<8x32xf32> -> vector<16x32xf32>
    %c0_59 = arith.constant 0 : index
    %c0_60 = arith.constant 0 : index
    %c0_61 = arith.constant 0 : index
    %193 = vector.load %arg6[%c0_59, %c0_60, %c0_61] : memref<2x32x32xf32, #tpu.memory_space<vmem>>, vector<1x32x32xf32>
    %194 = vector.shape_cast %193 : vector<1x32x32xf32> to vector<32x32xf32>
    %cst_62 = arith.constant dense<0.000000e+00> : vector<16x32xf32>
    %195 = tpu.matmul %192, %194, %cst_62 {dimension_numbers = #tpu.dot_dimension_numbers<[1], [0], [0], [1], [0, 0, 1, 1], [], []>} : vector<16x32xf32>, vector<32x32xf32>, vector<16x32xf32> -> vector<16x32xf32>
    %c0_63 = arith.constant 0 : index
    %c0_64 = arith.constant 0 : index
    %196 = vector.load %arg7[%c0_63, %c0_64] : memref<2x32xf32, #tpu.memory_space<vmem>>, vector<1x32xf32>
    %197 = vector.broadcast %196 : vector<1x32xf32> to vector<16x32xf32>
    %198 = arith.addf %195, %197 : vector<16x32xf32>
    %199 = arith.addf %198, %24 : vector<16x32xf32>
    %c0_65 = arith.constant 0 : index
    %c0_66 = arith.constant 0 : index
    %200 = vector.load %arg8[%c0_65, %c0_66] : memref<2x32xf32, #tpu.memory_space<vmem>>, vector<1x32xf32>
    %c0_67 = arith.constant 0 : index
    %c0_68 = arith.constant 0 : index
    %201 = vector.load %arg9[%c0_67, %c0_68] : memref<2x32xf32, #tpu.memory_space<vmem>>, vector<1x32xf32>
    %cst_69 = arith.constant dense<0.000000e+00> : vector<16xf32>
    %202 = vector.multi_reduction <add>, %199, %cst_69 [1] : vector<16x32xf32> to vector<16xf32>
    %203 = vector.shape_cast %202 : vector<16xf32> to vector<16x1xf32>
    %cst_70 = arith.constant 3.200000e+01 : f32
    %204 = vector.broadcast %cst_70 : f32 to vector<16x1xf32>
    %205 = arith.divf %203, %204 : vector<16x1xf32>
    %206 = vector.broadcast %205 : vector<16x1xf32> to vector<16x32xf32>
    %207 = arith.subf %199, %206 : vector<16x32xf32>
    %208 = arith.mulf %207, %207 : vector<16x32xf32>
    %cst_71 = arith.constant dense<0.000000e+00> : vector<16xf32>
    %209 = vector.multi_reduction <add>, %208, %cst_71 [1] : vector<16x32xf32> to vector<16xf32>
    %210 = vector.shape_cast %209 : vector<16xf32> to vector<16x1xf32>
    %cst_72 = arith.constant 3.200000e+01 : f32
    %211 = vector.broadcast %cst_72 : f32 to vector<16x1xf32>
    %212 = arith.divf %210, %211 : vector<16x1xf32>
    %213 = vector.broadcast %205 : vector<16x1xf32> to vector<16x32xf32>
    %214 = arith.subf %199, %213 : vector<16x32xf32>
    %cst_73 = arith.constant 9.99999996E-13 : f32
    %215 = vector.broadcast %cst_73 : f32 to vector<16x1xf32>
    %216 = arith.addf %212, %215 : vector<16x1xf32>
    %217 = math.rsqrt %216 : vector<16x1xf32>
    %218 = vector.broadcast %217 : vector<16x1xf32> to vector<16x32xf32>
    %219 = arith.mulf %214, %218 : vector<16x32xf32>
    %220 = vector.broadcast %200 : vector<1x32xf32> to vector<16x32xf32>
    %221 = arith.mulf %219, %220 : vector<16x32xf32>
    %222 = vector.broadcast %201 : vector<1x32xf32> to vector<16x32xf32>
    %223 = arith.addf %221, %222 : vector<16x32xf32>
    %c0_74 = arith.constant 0 : index
    %c0_75 = arith.constant 0 : index
    %c0_76 = arith.constant 0 : index
    %224 = vector.load %arg10[%c0_74, %c0_75, %c0_76] : memref<2x32x64xf32, #tpu.memory_space<vmem>>, vector<1x32x64xf32>
    %225 = vector.shape_cast %224 : vector<1x32x64xf32> to vector<32x64xf32>
    %cst_77 = arith.constant dense<0.000000e+00> : vector<16x64xf32>
    %226 = tpu.matmul %223, %225, %cst_77 {dimension_numbers = #tpu.dot_dimension_numbers<[1], [0], [0], [1], [0, 0, 1, 1], [], []>} : vector<16x32xf32>, vector<32x64xf32>, vector<16x64xf32> -> vector<16x64xf32>
    %c0_78 = arith.constant 0 : index
    %c0_79 = arith.constant 0 : index
    %227 = vector.load %arg11[%c0_78, %c0_79] : memref<2x64xf32, #tpu.memory_space<vmem>>, vector<1x64xf32>
    %228 = vector.broadcast %227 : vector<1x64xf32> to vector<16x64xf32>
    %229 = arith.addf %226, %228 : vector<16x64xf32>
    %cst_80 = arith.constant 5.000000e-01 : f32
    %230 = vector.broadcast %cst_80 : f32 to vector<16x64xf32>
    %231 = arith.mulf %230, %229 : vector<16x64xf32>
    %cst_81 = arith.constant 0.707106769 : f32
    %232 = vector.broadcast %cst_81 : f32 to vector<16x64xf32>
    %233 = arith.mulf %229, %232 : vector<16x64xf32>
    %234 = math.erf %233 : vector<16x64xf32>
    %cst_82 = arith.constant 1.000000e+00 : f32
    %235 = vector.broadcast %cst_82 : f32 to vector<16x64xf32>
    %236 = arith.addf %235, %234 : vector<16x64xf32>
    %237 = arith.mulf %231, %236 : vector<16x64xf32>
    %c0_83 = arith.constant 0 : index
    %c0_84 = arith.constant 0 : index
    %c0_85 = arith.constant 0 : index
    %238 = vector.load %arg12[%c0_83, %c0_84, %c0_85] : memref<2x64x32xf32, #tpu.memory_space<vmem>>, vector<1x64x32xf32>
    %239 = vector.shape_cast %238 : vector<1x64x32xf32> to vector<64x32xf32>
    %cst_86 = arith.constant dense<0.000000e+00> : vector<16x32xf32>
    %240 = tpu.matmul %237, %239, %cst_86 {dimension_numbers = #tpu.dot_dimension_numbers<[1], [0], [0], [1], [0, 0, 1, 1], [], []>} : vector<16x64xf32>, vector<64x32xf32>, vector<16x32xf32> -> vector<16x32xf32>
    %c0_87 = arith.constant 0 : index
    %c0_88 = arith.constant 0 : index
    %241 = vector.load %arg13[%c0_87, %c0_88] : memref<2x32xf32, #tpu.memory_space<vmem>>, vector<1x32xf32>
    %242 = vector.broadcast %241 : vector<1x32xf32> to vector<16x32xf32>
    %243 = arith.addf %240, %242 : vector<16x32xf32>
    %244 = arith.addf %243, %223 : vector<16x32xf32>
    %c0_89 = arith.constant 0 : index
    %c0_90 = arith.constant 0 : index
    %245 = vector.load %arg14[%c0_89, %c0_90] : memref<2x32xf32, #tpu.memory_space<vmem>>, vector<1x32xf32>
    %c0_91 = arith.constant 0 : index
    %c0_92 = arith.constant 0 : index
    %246 = vector.load %arg15[%c0_91, %c0_92] : memref<2x32xf32, #tpu.memory_space<vmem>>, vector<1x32xf32>
    %cst_93 = arith.constant dense<0.000000e+00> : vector<16xf32>
    %247 = vector.multi_reduction <add>, %244, %cst_93 [1] : vector<16x32xf32> to vector<16xf32>
    %248 = vector.shape_cast %247 : vector<16xf32> to vector<16x1xf32>
    %cst_94 = arith.constant 3.200000e+01 : f32
    %249 = vector.broadcast %cst_94 : f32 to vector<16x1xf32>
    %250 = arith.divf %248, %249 : vector<16x1xf32>
    %251 = vector.broadcast %250 : vector<16x1xf32> to vector<16x32xf32>
    %252 = arith.subf %244, %251 : vector<16x32xf32>
    %253 = arith.mulf %252, %252 : vector<16x32xf32>
    %cst_95 = arith.constant dense<0.000000e+00> : vector<16xf32>
    %254 = vector.multi_reduction <add>, %253, %cst_95 [1] : vector<16x32xf32> to vector<16xf32>
    %255 = vector.shape_cast %254 : vector<16xf32> to vector<16x1xf32>
    %cst_96 = arith.constant 3.200000e+01 : f32
    %256 = vector.broadcast %cst_96 : f32 to vector<16x1xf32>
    %257 = arith.divf %255, %256 : vector<16x1xf32>
    %258 = vector.broadcast %250 : vector<16x1xf32> to vector<16x32xf32>
    %259 = arith.subf %244, %258 : vector<16x32xf32>
    %cst_97 = arith.constant 9.99999996E-13 : f32
    %260 = vector.broadcast %cst_97 : f32 to vector<16x1xf32>
    %261 = arith.addf %257, %260 : vector<16x1xf32>
    %262 = math.rsqrt %261 : vector<16x1xf32>
    %263 = vector.broadcast %262 : vector<16x1xf32> to vector<16x32xf32>
    %264 = arith.mulf %259, %263 : vector<16x32xf32>
    %265 = vector.broadcast %245 : vector<1x32xf32> to vector<16x32xf32>
    %266 = arith.mulf %264, %265 : vector<16x32xf32>
    %267 = vector.broadcast %246 : vector<1x32xf32> to vector<16x32xf32>
    %268 = arith.addf %266, %267 : vector<16x32xf32>
    %c1 = arith.constant 1 : index
    %c0_98 = arith.constant 0 : index
    %c0_99 = arith.constant 0 : index
    %269 = vector.load %arg4[%c1, %c0_98, %c0_99] : memref<2x32x96xf32, #tpu.memory_space<vmem>>, vector<1x32x96xf32>
    %270 = vector.shape_cast %269 : vector<1x32x96xf32> to vector<32x96xf32>
    %cst_100 = arith.constant dense<0.000000e+00> : vector<16x96xf32>
    %271 = tpu.matmul %268, %270, %cst_100 {dimension_numbers = #tpu.dot_dimension_numbers<[1], [0], [0], [1], [0, 0, 1, 1], [], []>} : vector<16x32xf32>, vector<32x96xf32>, vector<16x96xf32> -> vector<16x96xf32>
    %c1_101 = arith.constant 1 : index
    %c0_102 = arith.constant 0 : index
    %272 = vector.load %arg5[%c1_101, %c0_102] : memref<2x96xf32, #tpu.memory_space<vmem>>, vector<1x96xf32>
    %273 = vector.broadcast %272 : vector<1x96xf32> to vector<16x96xf32>
    %274 = arith.addf %271, %273 : vector<16x96xf32>
    %275 = vector.extract_strided_slice %29 {offsets = [0, 0], sizes = [1, 8], strides = [1, 1]} : vector<2x8xf32> to vector<1x8xf32>
    %276 = vector.extract_strided_slice %274 {offsets = [0, 0], sizes = [8, 8], strides = [1, 1]} : vector<16x96xf32> to vector<8x8xf32>
    %277 = vector.extract_strided_slice %274 {offsets = [0, 32], sizes = [8, 8], strides = [1, 1]} : vector<16x96xf32> to vector<8x8xf32>
    %278 = vector.extract_strided_slice %274 {offsets = [0, 64], sizes = [8, 8], strides = [1, 1]} : vector<16x96xf32> to vector<8x8xf32>
    "tpu.trace_start"() <{level = 10 : i32, message = "qd,kd->qk"}> : () -> ()
    %cst_103 = arith.constant dense<0.000000e+00> : vector<8x8xf32>
    %279 = tpu.matmul %276, %277, %cst_103 {dimension_numbers = #tpu.dot_dimension_numbers<[1], [1], [0], [0], [0, 0, 1, 0], [], []>} : vector<8x8xf32>, vector<8x8xf32>, vector<8x8xf32> -> vector<8x8xf32>
    "tpu.trace_stop"() : () -> ()
    %cst_104 = arith.constant 0.353553385 : f32
    %280 = vector.broadcast %cst_104 : f32 to vector<8x8xf32>
    %281 = arith.mulf %279, %280 : vector<8x8xf32>
    %282 = vector.broadcast %275 : vector<1x8xf32> to vector<8x8xf32>
    %283 = arith.addf %281, %282 : vector<8x8xf32>
    %cst_105 = arith.constant dense<0xFF800000> : vector<8xf32>
    %284 = vector.multi_reduction <maximumf>, %283, %cst_105 [1] : vector<8x8xf32> to vector<8xf32>
    %285 = vector.shape_cast %284 : vector<8xf32> to vector<8x1xf32>
    %286 = vector.broadcast %285 : vector<8x1xf32> to vector<8x8xf32>
    %287 = arith.subf %283, %286 : vector<8x8xf32>
    %288 = math.exp %287 : vector<8x8xf32>
    %cst_106 = arith.constant dense<0.000000e+00> : vector<8xf32>
    %289 = vector.multi_reduction <add>, %288, %cst_106 [1] : vector<8x8xf32> to vector<8xf32>
    %290 = vector.shape_cast %289 : vector<8xf32> to vector<8x1xf32>
    %291 = tpu.reciprocal %290 : vector<8x1xf32> -> vector<8x1xf32>
    %292 = vector.broadcast %291 : vector<8x1xf32> to vector<8x8xf32>
    %293 = arith.mulf %288, %292 : vector<8x8xf32>
    %cst_107 = arith.constant dense<0.000000e+00> : vector<8x8xf32>
    %294 = tpu.matmul %293, %278, %cst_107 {dimension_numbers = #tpu.dot_dimension_numbers<[1], [0], [0], [1], [0, 0, 1, 1], [], []>} : vector<8x8xf32>, vector<8x8xf32>, vector<8x8xf32> -> vector<8x8xf32>
    %295 = vector.extract_strided_slice %274 {offsets = [0, 8], sizes = [8, 8], strides = [1, 1]} : vector<16x96xf32> to vector<8x8xf32>
    %296 = vector.extract_strided_slice %274 {offsets = [0, 40], sizes = [8, 8], strides = [1, 1]} : vector<16x96xf32> to vector<8x8xf32>
    %297 = vector.extract_strided_slice %274 {offsets = [0, 72], sizes = [8, 8], strides = [1, 1]} : vector<16x96xf32> to vector<8x8xf32>
    "tpu.trace_start"() <{level = 10 : i32, message = "qd,kd->qk"}> : () -> ()
    %cst_108 = arith.constant dense<0.000000e+00> : vector<8x8xf32>
    %298 = tpu.matmul %295, %296, %cst_108 {dimension_numbers = #tpu.dot_dimension_numbers<[1], [1], [0], [0], [0, 0, 1, 0], [], []>} : vector<8x8xf32>, vector<8x8xf32>, vector<8x8xf32> -> vector<8x8xf32>
    "tpu.trace_stop"() : () -> ()
    %cst_109 = arith.constant 0.353553385 : f32
    %299 = vector.broadcast %cst_109 : f32 to vector<8x8xf32>
    %300 = arith.mulf %298, %299 : vector<8x8xf32>
    %301 = vector.broadcast %275 : vector<1x8xf32> to vector<8x8xf32>
    %302 = arith.addf %300, %301 : vector<8x8xf32>
    %cst_110 = arith.constant dense<0xFF800000> : vector<8xf32>
    %303 = vector.multi_reduction <maximumf>, %302, %cst_110 [1] : vector<8x8xf32> to vector<8xf32>
    %304 = vector.shape_cast %303 : vector<8xf32> to vector<8x1xf32>
    %305 = vector.broadcast %304 : vector<8x1xf32> to vector<8x8xf32>
    %306 = arith.subf %302, %305 : vector<8x8xf32>
    %307 = math.exp %306 : vector<8x8xf32>
    %cst_111 = arith.constant dense<0.000000e+00> : vector<8xf32>
    %308 = vector.multi_reduction <add>, %307, %cst_111 [1] : vector<8x8xf32> to vector<8xf32>
    %309 = vector.shape_cast %308 : vector<8xf32> to vector<8x1xf32>
    %310 = tpu.reciprocal %309 : vector<8x1xf32> -> vector<8x1xf32>
    %311 = vector.broadcast %310 : vector<8x1xf32> to vector<8x8xf32>
    %312 = arith.mulf %307, %311 : vector<8x8xf32>
    %cst_112 = arith.constant dense<0.000000e+00> : vector<8x8xf32>
    %313 = tpu.matmul %312, %297, %cst_112 {dimension_numbers = #tpu.dot_dimension_numbers<[1], [0], [0], [1], [0, 0, 1, 1], [], []>} : vector<8x8xf32>, vector<8x8xf32>, vector<8x8xf32> -> vector<8x8xf32>
    %314 = vector.extract_strided_slice %274 {offsets = [0, 16], sizes = [8, 8], strides = [1, 1]} : vector<16x96xf32> to vector<8x8xf32>
    %315 = vector.extract_strided_slice %274 {offsets = [0, 48], sizes = [8, 8], strides = [1, 1]} : vector<16x96xf32> to vector<8x8xf32>
    %316 = vector.extract_strided_slice %274 {offsets = [0, 80], sizes = [8, 8], strides = [1, 1]} : vector<16x96xf32> to vector<8x8xf32>
    "tpu.trace_start"() <{level = 10 : i32, message = "qd,kd->qk"}> : () -> ()
    %cst_113 = arith.constant dense<0.000000e+00> : vector<8x8xf32>
    %317 = tpu.matmul %314, %315, %cst_113 {dimension_numbers = #tpu.dot_dimension_numbers<[1], [1], [0], [0], [0, 0, 1, 0], [], []>} : vector<8x8xf32>, vector<8x8xf32>, vector<8x8xf32> -> vector<8x8xf32>
    "tpu.trace_stop"() : () -> ()
    %cst_114 = arith.constant 0.353553385 : f32
    %318 = vector.broadcast %cst_114 : f32 to vector<8x8xf32>
    %319 = arith.mulf %317, %318 : vector<8x8xf32>
    %320 = vector.broadcast %275 : vector<1x8xf32> to vector<8x8xf32>
    %321 = arith.addf %319, %320 : vector<8x8xf32>
    %cst_115 = arith.constant dense<0xFF800000> : vector<8xf32>
    %322 = vector.multi_reduction <maximumf>, %321, %cst_115 [1] : vector<8x8xf32> to vector<8xf32>
    %323 = vector.shape_cast %322 : vector<8xf32> to vector<8x1xf32>
    %324 = vector.broadcast %323 : vector<8x1xf32> to vector<8x8xf32>
    %325 = arith.subf %321, %324 : vector<8x8xf32>
    %326 = math.exp %325 : vector<8x8xf32>
    %cst_116 = arith.constant dense<0.000000e+00> : vector<8xf32>
    %327 = vector.multi_reduction <add>, %326, %cst_116 [1] : vector<8x8xf32> to vector<8xf32>
    %328 = vector.shape_cast %327 : vector<8xf32> to vector<8x1xf32>
    %329 = tpu.reciprocal %328 : vector<8x1xf32> -> vector<8x1xf32>
    %330 = vector.broadcast %329 : vector<8x1xf32> to vector<8x8xf32>
    %331 = arith.mulf %326, %330 : vector<8x8xf32>
    %cst_117 = arith.constant dense<0.000000e+00> : vector<8x8xf32>
    %332 = tpu.matmul %331, %316, %cst_117 {dimension_numbers = #tpu.dot_dimension_numbers<[1], [0], [0], [1], [0, 0, 1, 1], [], []>} : vector<8x8xf32>, vector<8x8xf32>, vector<8x8xf32> -> vector<8x8xf32>
    %333 = vector.extract_strided_slice %274 {offsets = [0, 24], sizes = [8, 8], strides = [1, 1]} : vector<16x96xf32> to vector<8x8xf32>
    %334 = vector.extract_strided_slice %274 {offsets = [0, 56], sizes = [8, 8], strides = [1, 1]} : vector<16x96xf32> to vector<8x8xf32>
    %335 = vector.extract_strided_slice %274 {offsets = [0, 88], sizes = [8, 8], strides = [1, 1]} : vector<16x96xf32> to vector<8x8xf32>
    "tpu.trace_start"() <{level = 10 : i32, message = "qd,kd->qk"}> : () -> ()
    %cst_118 = arith.constant dense<0.000000e+00> : vector<8x8xf32>
    %336 = tpu.matmul %333, %334, %cst_118 {dimension_numbers = #tpu.dot_dimension_numbers<[1], [1], [0], [0], [0, 0, 1, 0], [], []>} : vector<8x8xf32>, vector<8x8xf32>, vector<8x8xf32> -> vector<8x8xf32>
    "tpu.trace_stop"() : () -> ()
    %cst_119 = arith.constant 0.353553385 : f32
    %337 = vector.broadcast %cst_119 : f32 to vector<8x8xf32>
    %338 = arith.mulf %336, %337 : vector<8x8xf32>
    %339 = vector.broadcast %275 : vector<1x8xf32> to vector<8x8xf32>
    %340 = arith.addf %338, %339 : vector<8x8xf32>
    %cst_120 = arith.constant dense<0xFF800000> : vector<8xf32>
    %341 = vector.multi_reduction <maximumf>, %340, %cst_120 [1] : vector<8x8xf32> to vector<8xf32>
    %342 = vector.shape_cast %341 : vector<8xf32> to vector<8x1xf32>
    %343 = vector.broadcast %342 : vector<8x1xf32> to vector<8x8xf32>
    %344 = arith.subf %340, %343 : vector<8x8xf32>
    %345 = math.exp %344 : vector<8x8xf32>
    %cst_121 = arith.constant dense<0.000000e+00> : vector<8xf32>
    %346 = vector.multi_reduction <add>, %345, %cst_121 [1] : vector<8x8xf32> to vector<8xf32>
    %347 = vector.shape_cast %346 : vector<8xf32> to vector<8x1xf32>
    %348 = tpu.reciprocal %347 : vector<8x1xf32> -> vector<8x1xf32>
    %349 = vector.broadcast %348 : vector<8x1xf32> to vector<8x8xf32>
    %350 = arith.mulf %345, %349 : vector<8x8xf32>
    %cst_122 = arith.constant dense<0.000000e+00> : vector<8x8xf32>
    %351 = tpu.matmul %350, %335, %cst_122 {dimension_numbers = #tpu.dot_dimension_numbers<[1], [0], [0], [1], [0, 0, 1, 1], [], []>} : vector<8x8xf32>, vector<8x8xf32>, vector<8x8xf32> -> vector<8x8xf32>
    %352 = tpu.concatenate %294, %313, %332, %351 in 1 : vector<8x8xf32>, vector<8x8xf32>, vector<8x8xf32>, vector<8x8xf32> -> vector<8x32xf32>
    %353 = vector.extract_strided_slice %29 {offsets = [1, 0], sizes = [1, 8], strides = [1, 1]} : vector<2x8xf32> to vector<1x8xf32>
    %354 = vector.extract_strided_slice %274 {offsets = [8, 0], sizes = [8, 8], strides = [1, 1]} : vector<16x96xf32> to vector<8x8xf32>
    %355 = vector.extract_strided_slice %274 {offsets = [8, 32], sizes = [8, 8], strides = [1, 1]} : vector<16x96xf32> to vector<8x8xf32>
    %356 = vector.extract_strided_slice %274 {offsets = [8, 64], sizes = [8, 8], strides = [1, 1]} : vector<16x96xf32> to vector<8x8xf32>
    "tpu.trace_start"() <{level = 10 : i32, message = "qd,kd->qk"}> : () -> ()
    %cst_123 = arith.constant dense<0.000000e+00> : vector<8x8xf32>
    %357 = tpu.matmul %354, %355, %cst_123 {dimension_numbers = #tpu.dot_dimension_numbers<[1], [1], [0], [0], [0, 0, 1, 0], [], []>} : vector<8x8xf32>, vector<8x8xf32>, vector<8x8xf32> -> vector<8x8xf32>
    "tpu.trace_stop"() : () -> ()
    %cst_124 = arith.constant 0.353553385 : f32
    %358 = vector.broadcast %cst_124 : f32 to vector<8x8xf32>
    %359 = arith.mulf %357, %358 : vector<8x8xf32>
    %360 = vector.broadcast %353 : vector<1x8xf32> to vector<8x8xf32>
    %361 = arith.addf %359, %360 : vector<8x8xf32>
    %cst_125 = arith.constant dense<0xFF800000> : vector<8xf32>
    %362 = vector.multi_reduction <maximumf>, %361, %cst_125 [1] : vector<8x8xf32> to vector<8xf32>
    %363 = vector.shape_cast %362 : vector<8xf32> to vector<8x1xf32>
    %364 = vector.broadcast %363 : vector<8x1xf32> to vector<8x8xf32>
    %365 = arith.subf %361, %364 : vector<8x8xf32>
    %366 = math.exp %365 : vector<8x8xf32>
    %cst_126 = arith.constant dense<0.000000e+00> : vector<8xf32>
    %367 = vector.multi_reduction <add>, %366, %cst_126 [1] : vector<8x8xf32> to vector<8xf32>
    %368 = vector.shape_cast %367 : vector<8xf32> to vector<8x1xf32>
    %369 = tpu.reciprocal %368 : vector<8x1xf32> -> vector<8x1xf32>
    %370 = vector.broadcast %369 : vector<8x1xf32> to vector<8x8xf32>
    %371 = arith.mulf %366, %370 : vector<8x8xf32>
    %cst_127 = arith.constant dense<0.000000e+00> : vector<8x8xf32>
    %372 = tpu.matmul %371, %356, %cst_127 {dimension_numbers = #tpu.dot_dimension_numbers<[1], [0], [0], [1], [0, 0, 1, 1], [], []>} : vector<8x8xf32>, vector<8x8xf32>, vector<8x8xf32> -> vector<8x8xf32>
    %373 = vector.extract_strided_slice %274 {offsets = [8, 8], sizes = [8, 8], strides = [1, 1]} : vector<16x96xf32> to vector<8x8xf32>
    %374 = vector.extract_strided_slice %274 {offsets = [8, 40], sizes = [8, 8], strides = [1, 1]} : vector<16x96xf32> to vector<8x8xf32>
    %375 = vector.extract_strided_slice %274 {offsets = [8, 72], sizes = [8, 8], strides = [1, 1]} : vector<16x96xf32> to vector<8x8xf32>
    "tpu.trace_start"() <{level = 10 : i32, message = "qd,kd->qk"}> : () -> ()
    %cst_128 = arith.constant dense<0.000000e+00> : vector<8x8xf32>
    %376 = tpu.matmul %373, %374, %cst_128 {dimension_numbers = #tpu.dot_dimension_numbers<[1], [1], [0], [0], [0, 0, 1, 0], [], []>} : vector<8x8xf32>, vector<8x8xf32>, vector<8x8xf32> -> vector<8x8xf32>
    "tpu.trace_stop"() : () -> ()
    %cst_129 = arith.constant 0.353553385 : f32
    %377 = vector.broadcast %cst_129 : f32 to vector<8x8xf32>
    %378 = arith.mulf %376, %377 : vector<8x8xf32>
    %379 = vector.broadcast %353 : vector<1x8xf32> to vector<8x8xf32>
    %380 = arith.addf %378, %379 : vector<8x8xf32>
    %cst_130 = arith.constant dense<0xFF800000> : vector<8xf32>
    %381 = vector.multi_reduction <maximumf>, %380, %cst_130 [1] : vector<8x8xf32> to vector<8xf32>
    %382 = vector.shape_cast %381 : vector<8xf32> to vector<8x1xf32>
    %383 = vector.broadcast %382 : vector<8x1xf32> to vector<8x8xf32>
    %384 = arith.subf %380, %383 : vector<8x8xf32>
    %385 = math.exp %384 : vector<8x8xf32>
    %cst_131 = arith.constant dense<0.000000e+00> : vector<8xf32>
    %386 = vector.multi_reduction <add>, %385, %cst_131 [1] : vector<8x8xf32> to vector<8xf32>
    %387 = vector.shape_cast %386 : vector<8xf32> to vector<8x1xf32>
    %388 = tpu.reciprocal %387 : vector<8x1xf32> -> vector<8x1xf32>
    %389 = vector.broadcast %388 : vector<8x1xf32> to vector<8x8xf32>
    %390 = arith.mulf %385, %389 : vector<8x8xf32>
    %cst_132 = arith.constant dense<0.000000e+00> : vector<8x8xf32>
    %391 = tpu.matmul %390, %375, %cst_132 {dimension_numbers = #tpu.dot_dimension_numbers<[1], [0], [0], [1], [0, 0, 1, 1], [], []>} : vector<8x8xf32>, vector<8x8xf32>, vector<8x8xf32> -> vector<8x8xf32>
    %392 = vector.extract_strided_slice %274 {offsets = [8, 16], sizes = [8, 8], strides = [1, 1]} : vector<16x96xf32> to vector<8x8xf32>
    %393 = vector.extract_strided_slice %274 {offsets = [8, 48], sizes = [8, 8], strides = [1, 1]} : vector<16x96xf32> to vector<8x8xf32>
    %394 = vector.extract_strided_slice %274 {offsets = [8, 80], sizes = [8, 8], strides = [1, 1]} : vector<16x96xf32> to vector<8x8xf32>
    "tpu.trace_start"() <{level = 10 : i32, message = "qd,kd->qk"}> : () -> ()
    %cst_133 = arith.constant dense<0.000000e+00> : vector<8x8xf32>
    %395 = tpu.matmul %392, %393, %cst_133 {dimension_numbers = #tpu.dot_dimension_numbers<[1], [1], [0], [0], [0, 0, 1, 0], [], []>} : vector<8x8xf32>, vector<8x8xf32>, vector<8x8xf32> -> vector<8x8xf32>
    "tpu.trace_stop"() : () -> ()
    %cst_134 = arith.constant 0.353553385 : f32
    %396 = vector.broadcast %cst_134 : f32 to vector<8x8xf32>
    %397 = arith.mulf %395, %396 : vector<8x8xf32>
    %398 = vector.broadcast %353 : vector<1x8xf32> to vector<8x8xf32>
    %399 = arith.addf %397, %398 : vector<8x8xf32>
    %cst_135 = arith.constant dense<0xFF800000> : vector<8xf32>
    %400 = vector.multi_reduction <maximumf>, %399, %cst_135 [1] : vector<8x8xf32> to vector<8xf32>
    %401 = vector.shape_cast %400 : vector<8xf32> to vector<8x1xf32>
    %402 = vector.broadcast %401 : vector<8x1xf32> to vector<8x8xf32>
    %403 = arith.subf %399, %402 : vector<8x8xf32>
    %404 = math.exp %403 : vector<8x8xf32>
    %cst_136 = arith.constant dense<0.000000e+00> : vector<8xf32>
    %405 = vector.multi_reduction <add>, %404, %cst_136 [1] : vector<8x8xf32> to vector<8xf32>
    %406 = vector.shape_cast %405 : vector<8xf32> to vector<8x1xf32>
    %407 = tpu.reciprocal %406 : vector<8x1xf32> -> vector<8x1xf32>
    %408 = vector.broadcast %407 : vector<8x1xf32> to vector<8x8xf32>
    %409 = arith.mulf %404, %408 : vector<8x8xf32>
    %cst_137 = arith.constant dense<0.000000e+00> : vector<8x8xf32>
    %410 = tpu.matmul %409, %394, %cst_137 {dimension_numbers = #tpu.dot_dimension_numbers<[1], [0], [0], [1], [0, 0, 1, 1], [], []>} : vector<8x8xf32>, vector<8x8xf32>, vector<8x8xf32> -> vector<8x8xf32>
    %411 = vector.extract_strided_slice %274 {offsets = [8, 24], sizes = [8, 8], strides = [1, 1]} : vector<16x96xf32> to vector<8x8xf32>
    %412 = vector.extract_strided_slice %274 {offsets = [8, 56], sizes = [8, 8], strides = [1, 1]} : vector<16x96xf32> to vector<8x8xf32>
    %413 = vector.extract_strided_slice %274 {offsets = [8, 88], sizes = [8, 8], strides = [1, 1]} : vector<16x96xf32> to vector<8x8xf32>
    "tpu.trace_start"() <{level = 10 : i32, message = "qd,kd->qk"}> : () -> ()
    %cst_138 = arith.constant dense<0.000000e+00> : vector<8x8xf32>
    %414 = tpu.matmul %411, %412, %cst_138 {dimension_numbers = #tpu.dot_dimension_numbers<[1], [1], [0], [0], [0, 0, 1, 0], [], []>} : vector<8x8xf32>, vector<8x8xf32>, vector<8x8xf32> -> vector<8x8xf32>
    "tpu.trace_stop"() : () -> ()
    %cst_139 = arith.constant 0.353553385 : f32
    %415 = vector.broadcast %cst_139 : f32 to vector<8x8xf32>
    %416 = arith.mulf %414, %415 : vector<8x8xf32>
    %417 = vector.broadcast %353 : vector<1x8xf32> to vector<8x8xf32>
    %418 = arith.addf %416, %417 : vector<8x8xf32>
    %cst_140 = arith.constant dense<0xFF800000> : vector<8xf32>
    %419 = vector.multi_reduction <maximumf>, %418, %cst_140 [1] : vector<8x8xf32> to vector<8xf32>
    %420 = vector.shape_cast %419 : vector<8xf32> to vector<8x1xf32>
    %421 = vector.broadcast %420 : vector<8x1xf32> to vector<8x8xf32>
    %422 = arith.subf %418, %421 : vector<8x8xf32>
    %423 = math.exp %422 : vector<8x8xf32>
    %cst_141 = arith.constant dense<0.000000e+00> : vector<8xf32>
    %424 = vector.multi_reduction <add>, %423, %cst_141 [1] : vector<8x8xf32> to vector<8xf32>
    %425 = vector.shape_cast %424 : vector<8xf32> to vector<8x1xf32>
    %426 = tpu.reciprocal %425 : vector<8x1xf32> -> vector<8x1xf32>
    %427 = vector.broadcast %426 : vector<8x1xf32> to vector<8x8xf32>
    %428 = arith.mulf %423, %427 : vector<8x8xf32>
    %cst_142 = arith.constant dense<0.000000e+00> : vector<8x8xf32>
    %429 = tpu.matmul %428, %413, %cst_142 {dimension_numbers = #tpu.dot_dimension_numbers<[1], [0], [0], [1], [0, 0, 1, 1], [], []>} : vector<8x8xf32>, vector<8x8xf32>, vector<8x8xf32> -> vector<8x8xf32>
    %430 = tpu.concatenate %372, %391, %410, %429 in 1 : vector<8x8xf32>, vector<8x8xf32>, vector<8x8xf32>, vector<8x8xf32> -> vector<8x32xf32>
    %431 = tpu.concatenate %352, %430 in 0 : vector<8x32xf32>, vector<8x32xf32> -> vector<16x32xf32>
    %c1_143 = arith.constant 1 : index
    %c0_144 = arith.constant 0 : index
    %c0_145 = arith.constant 0 : index
    %432 = vector.load %arg6[%c1_143, %c0_144, %c0_145] : memref<2x32x32xf32, #tpu.memory_space<vmem>>, vector<1x32x32xf32>
    %433 = vector.shape_cast %432 : vector<1x32x32xf32> to vector<32x32xf32>
    %cst_146 = arith.constant dense<0.000000e+00> : vector<16x32xf32>
    %434 = tpu.matmul %431, %433, %cst_146 {dimension_numbers = #tpu.dot_dimension_numbers<[1], [0], [0], [1], [0, 0, 1, 1], [], []>} : vector<16x32xf32>, vector<32x32xf32>, vector<16x32xf32> -> vector<16x32xf32>
    %c1_147 = arith.constant 1 : index
    %c0_148 = arith.constant 0 : index
    %435 = vector.load %arg7[%c1_147, %c0_148] : memref<2x32xf32, #tpu.memory_space<vmem>>, vector<1x32xf32>
    %436 = vector.broadcast %435 : vector<1x32xf32> to vector<16x32xf32>
    %437 = arith.addf %434, %436 : vector<16x32xf32>
    %438 = arith.addf %437, %268 : vector<16x32xf32>
    %c1_149 = arith.constant 1 : index
    %c0_150 = arith.constant 0 : index
    %439 = vector.load %arg8[%c1_149, %c0_150] : memref<2x32xf32, #tpu.memory_space<vmem>>, vector<1x32xf32>
    %c1_151 = arith.constant 1 : index
    %c0_152 = arith.constant 0 : index
    %440 = vector.load %arg9[%c1_151, %c0_152] : memref<2x32xf32, #tpu.memory_space<vmem>>, vector<1x32xf32>
    %cst_153 = arith.constant dense<0.000000e+00> : vector<16xf32>
    %441 = vector.multi_reduction <add>, %438, %cst_153 [1] : vector<16x32xf32> to vector<16xf32>
    %442 = vector.shape_cast %441 : vector<16xf32> to vector<16x1xf32>
    %cst_154 = arith.constant 3.200000e+01 : f32
    %443 = vector.broadcast %cst_154 : f32 to vector<16x1xf32>
    %444 = arith.divf %442, %443 : vector<16x1xf32>
    %445 = vector.broadcast %444 : vector<16x1xf32> to vector<16x32xf32>
    %446 = arith.subf %438, %445 : vector<16x32xf32>
    %447 = arith.mulf %446, %446 : vector<16x32xf32>
    %cst_155 = arith.constant dense<0.000000e+00> : vector<16xf32>
    %448 = vector.multi_reduction <add>, %447, %cst_155 [1] : vector<16x32xf32> to vector<16xf32>
    %449 = vector.shape_cast %448 : vector<16xf32> to vector<16x1xf32>
    %cst_156 = arith.constant 3.200000e+01 : f32
    %450 = vector.broadcast %cst_156 : f32 to vector<16x1xf32>
    %451 = arith.divf %449, %450 : vector<16x1xf32>
    %452 = vector.broadcast %444 : vector<16x1xf32> to vector<16x32xf32>
    %453 = arith.subf %438, %452 : vector<16x32xf32>
    %cst_157 = arith.constant 9.99999996E-13 : f32
    %454 = vector.broadcast %cst_157 : f32 to vector<16x1xf32>
    %455 = arith.addf %451, %454 : vector<16x1xf32>
    %456 = math.rsqrt %455 : vector<16x1xf32>
    %457 = vector.broadcast %456 : vector<16x1xf32> to vector<16x32xf32>
    %458 = arith.mulf %453, %457 : vector<16x32xf32>
    %459 = vector.broadcast %439 : vector<1x32xf32> to vector<16x32xf32>
    %460 = arith.mulf %458, %459 : vector<16x32xf32>
    %461 = vector.broadcast %440 : vector<1x32xf32> to vector<16x32xf32>
    %462 = arith.addf %460, %461 : vector<16x32xf32>
    %c1_158 = arith.constant 1 : index
    %c0_159 = arith.constant 0 : index
    %c0_160 = arith.constant 0 : index
    %463 = vector.load %arg10[%c1_158, %c0_159, %c0_160] : memref<2x32x64xf32, #tpu.memory_space<vmem>>, vector<1x32x64xf32>
    %464 = vector.shape_cast %463 : vector<1x32x64xf32> to vector<32x64xf32>
    %cst_161 = arith.constant dense<0.000000e+00> : vector<16x64xf32>
    %465 = tpu.matmul %462, %464, %cst_161 {dimension_numbers = #tpu.dot_dimension_numbers<[1], [0], [0], [1], [0, 0, 1, 1], [], []>} : vector<16x32xf32>, vector<32x64xf32>, vector<16x64xf32> -> vector<16x64xf32>
    %c1_162 = arith.constant 1 : index
    %c0_163 = arith.constant 0 : index
    %466 = vector.load %arg11[%c1_162, %c0_163] : memref<2x64xf32, #tpu.memory_space<vmem>>, vector<1x64xf32>
    %467 = vector.broadcast %466 : vector<1x64xf32> to vector<16x64xf32>
    %468 = arith.addf %465, %467 : vector<16x64xf32>
    %cst_164 = arith.constant 5.000000e-01 : f32
    %469 = vector.broadcast %cst_164 : f32 to vector<16x64xf32>
    %470 = arith.mulf %469, %468 : vector<16x64xf32>
    %cst_165 = arith.constant 0.707106769 : f32
    %471 = vector.broadcast %cst_165 : f32 to vector<16x64xf32>
    %472 = arith.mulf %468, %471 : vector<16x64xf32>
    %473 = math.erf %472 : vector<16x64xf32>
    %cst_166 = arith.constant 1.000000e+00 : f32
    %474 = vector.broadcast %cst_166 : f32 to vector<16x64xf32>
    %475 = arith.addf %474, %473 : vector<16x64xf32>
    %476 = arith.mulf %470, %475 : vector<16x64xf32>
    %c1_167 = arith.constant 1 : index
    %c0_168 = arith.constant 0 : index
    %c0_169 = arith.constant 0 : index
    %477 = vector.load %arg12[%c1_167, %c0_168, %c0_169] : memref<2x64x32xf32, #tpu.memory_space<vmem>>, vector<1x64x32xf32>
    %478 = vector.shape_cast %477 : vector<1x64x32xf32> to vector<64x32xf32>
    %cst_170 = arith.constant dense<0.000000e+00> : vector<16x32xf32>
    %479 = tpu.matmul %476, %478, %cst_170 {dimension_numbers = #tpu.dot_dimension_numbers<[1], [0], [0], [1], [0, 0, 1, 1], [], []>} : vector<16x64xf32>, vector<64x32xf32>, vector<16x32xf32> -> vector<16x32xf32>
    %c1_171 = arith.constant 1 : index
    %c0_172 = arith.constant 0 : index
    %480 = vector.load %arg13[%c1_171, %c0_172] : memref<2x32xf32, #tpu.memory_space<vmem>>, vector<1x32xf32>
    %481 = vector.broadcast %480 : vector<1x32xf32> to vector<16x32xf32>
    %482 = arith.addf %479, %481 : vector<16x32xf32>
    %483 = arith.addf %482, %462 : vector<16x32xf32>
    %c1_173 = arith.constant 1 : index
    %c0_174 = arith.constant 0 : index
    %484 = vector.load %arg14[%c1_173, %c0_174] : memref<2x32xf32, #tpu.memory_space<vmem>>, vector<1x32xf32>
    %c1_175 = arith.constant 1 : index
    %c0_176 = arith.constant 0 : index
    %485 = vector.load %arg15[%c1_175, %c0_176] : memref<2x32xf32, #tpu.memory_space<vmem>>, vector<1x32xf32>
    %cst_177 = arith.constant dense<0.000000e+00> : vector<16xf32>
    %486 = vector.multi_reduction <add>, %483, %cst_177 [1] : vector<16x32xf32> to vector<16xf32>
    %487 = vector.shape_cast %486 : vector<16xf32> to vector<16x1xf32>
    %cst_178 = arith.constant 3.200000e+01 : f32
    %488 = vector.broadcast %cst_178 : f32 to vector<16x1xf32>
    %489 = arith.divf %487, %488 : vector<16x1xf32>
    %490 = vector.broadcast %489 : vector<16x1xf32> to vector<16x32xf32>
    %491 = arith.subf %483, %490 : vector<16x32xf32>
    %492 = arith.mulf %491, %491 : vector<16x32xf32>
    %cst_179 = arith.constant dense<0.000000e+00> : vector<16xf32>
    %493 = vector.multi_reduction <add>, %492, %cst_179 [1] : vector<16x32xf32> to vector<16xf32>
    %494 = vector.shape_cast %493 : vector<16xf32> to vector<16x1xf32>
    %cst_180 = arith.constant 3.200000e+01 : f32
    %495 = vector.broadcast %cst_180 : f32 to vector<16x1xf32>
    %496 = arith.divf %494, %495 : vector<16x1xf32>
    %497 = vector.broadcast %489 : vector<16x1xf32> to vector<16x32xf32>
    %498 = arith.subf %483, %497 : vector<16x32xf32>
    %cst_181 = arith.constant 9.99999996E-13 : f32
    %499 = vector.broadcast %cst_181 : f32 to vector<16x1xf32>
    %500 = arith.addf %496, %499 : vector<16x1xf32>
    %501 = math.rsqrt %500 : vector<16x1xf32>
    %502 = vector.broadcast %501 : vector<16x1xf32> to vector<16x32xf32>
    %503 = arith.mulf %498, %502 : vector<16x32xf32>
    %504 = vector.broadcast %484 : vector<1x32xf32> to vector<16x32xf32>
    %505 = arith.mulf %503, %504 : vector<16x32xf32>
    %506 = vector.broadcast %485 : vector<1x32xf32> to vector<16x32xf32>
    %507 = arith.addf %505, %506 : vector<16x32xf32>
    %508 = vector.extract_strided_slice %507 {offsets = [0, 0], sizes = [1, 32], strides = [1, 1]} : vector<16x32xf32> to vector<1x32xf32>
    %509 = vector.extract_strided_slice %507 {offsets = [8, 0], sizes = [1, 32], strides = [1, 1]} : vector<16x32xf32> to vector<1x32xf32>
    %510 = tpu.concatenate %508, %509 in 0 : vector<1x32xf32>, vector<1x32xf32> -> vector<2x32xf32>
    %c0_182 = arith.constant 0 : index
    %c0_183 = arith.constant 0 : index
    %511 = vector.load %arg16[%c0_182, %c0_183] : memref<32x32xf32, #tpu.memory_space<vmem>>, vector<32x32xf32>
    %cst_184 = arith.constant dense<0.000000e+00> : vector<2x32xf32>
    %512 = tpu.matmul %510, %511, %cst_184 {dimension_numbers = #tpu.dot_dimension_numbers<[1], [0], [0], [1], [0, 0, 1, 1], [], []>} : vector<2x32xf32>, vector<32x32xf32>, vector<2x32xf32> -> vector<2x32xf32>
    %c0_185 = arith.constant 0 : index
    %c0_186 = arith.constant 0 : index
    %513 = vector.load %arg17[%c0_185, %c0_186] : memref<1x32xf32, #tpu.memory_space<vmem>>, vector<1x32xf32>
    %514 = vector.broadcast %513 : vector<1x32xf32> to vector<2x32xf32>
    %515 = arith.addf %512, %514 : vector<2x32xf32>
    %516 = math.tanh %515 : vector<2x32xf32>
    %c0_187 = arith.constant 0 : index
    %c0_188 = arith.constant 0 : index
    %517 = vector.load %arg18[%c0_187, %c0_188] : memref<32x128xf32, #tpu.memory_space<vmem>>, vector<32x128xf32>
    %cst_189 = arith.constant dense<0.000000e+00> : vector<2x128xf32>
    %518 = tpu.matmul %516, %517, %cst_189 {dimension_numbers = #tpu.dot_dimension_numbers<[1], [0], [0], [1], [0, 0, 1, 1], [], []>} : vector<2x32xf32>, vector<32x128xf32>, vector<2x128xf32> -> vector<2x128xf32>
    %c0_190 = arith.constant 0 : index
    %c0_191 = arith.constant 0 : index
    %519 = vector.load %arg19[%c0_190, %c0_191] : memref<1x128xf32, #tpu.memory_space<vmem>>, vector<1x128xf32>
    %520 = vector.broadcast %519 : vector<1x128xf32> to vector<2x128xf32>
    %521 = arith.addf %518, %520 : vector<2x128xf32>
    %c0_192 = arith.constant 0 : index
    %c0_193 = arith.constant 0 : index
    %522 = vector.load %arg20[%c0_192, %c0_193] : memref<2x128xf32, #tpu.memory_space<vmem>>, vector<2x128xf32>
    tpu.vector_store %arg20[%c0_192, %c0_193], %521 {strides = array<i32>} : memref<2x128xf32, #tpu.memory_space<vmem>>, vector<2x128xf32>,
    return
  }
}

</mosaic_0001>

<llo_original>
// kernel: bert_classifier_forward.1
$region0: #{bert_classifier_forward.1}
  #allocation0 [shape = 'u32[]', space=smem, size = 0x4, offset = 0x4, fixed_abs, tag = 'smem constant byte address 0x4 - core index']
  #allocation1 [shape = 'u32[144,128]{1,0:T(1,128)}', space=vmem, size = 0x12000, scoped, tag = 'internal scratch']
  %s0 = inlined_call_operand.vmem [shape: f32[16,32], index: 0, kind: input, shape index: {}]
  %s1 = inlined_call_operand.vmem [shape: f32[2,8], index: 1, kind: input, shape index: {}]
  %s2 = inlined_call_operand.vmem [shape: f32[1,32], index: 2, kind: input, shape index: {}]
  %s3 = inlined_call_operand.vmem [shape: f32[1,32], index: 3, kind: input, shape index: {}]
  %s4 = inlined_call_operand.vmem [shape: f32[2,32,96], index: 4, kind: input, shape index: {}]
  %s5 = inlined_call_operand.vmem [shape: f32[2,96], index: 5, kind: input, shape index: {}]
  %s6 = inlined_call_operand.vmem [shape: f32[2,32,32], index: 6, kind: input, shape index: {}]
  %s7 = inlined_call_operand.vmem [shape: f32[2,32], index: 7, kind: input, shape index: {}]
  %s8 = inlined_call_operand.vmem [shape: f32[2,32], index: 8, kind: input, shape index: {}]
  %s9 = inlined_call_operand.vmem [shape: f32[2,32], index: 9, kind: input, shape index: {}]
  %s10 = inlined_call_operand.vmem [shape: f32[2,32,64], index: 10, kind: input, shape index: {}]
  %s11 = inlined_call_operand.vmem [shape: f32[2,64], index: 11, kind: input, shape index: {}]
  %s12 = inlined_call_operand.vmem [shape: f32[2,64,32], index: 12, kind: input, shape index: {}]
  %s13 = inlined_call_operand.vmem [shape: f32[2,32], index: 13, kind: input, shape index: {}]
  %s14 = inlined_call_operand.vmem [shape: f32[2,32], index: 14, kind: input, shape index: {}]
  %s15 = inlined_call_operand.vmem [shape: f32[2,32], index: 15, kind: input, shape index: {}]
  %s16 = inlined_call_operand.vmem [shape: f32[32,32], index: 16, kind: input, shape index: {}]
  %s17 = inlined_call_operand.vmem [shape: f32[1,32], index: 17, kind: input, shape index: {}]
  %s18 = inlined_call_operand.vmem [shape: f32[32,128], index: 18, kind: input, shape index: {}]
  %s19 = inlined_call_operand.vmem [shape: f32[1,128], index: 19, kind: input, shape index: {}]
  %s20 = inlined_call_operand.hbm [shape: f32[2,128], index: 20, kind: output, shape index: {}]
  %s21 = sld [smem:[#allocation0]]
  $region90: #{bert_classifier_forward.1} parent=0
    _
  %s23 = ssub.s32 1, %s21
  %s24 = scalar_select 0, %s23, %s21
  $region1: #{bert_classifier_forward.1} parent=0
    #allocation2 [shape = 'u8[1024]{0}', space=vmem, size = 0x400, scoped, tag = 'output window, operand 0, single buffered']
    #allocation3 [shape = 's32[1]{0}', space=sflag, size = 0x4, scoped, tag = 'scoped memory for bert_classifier_forward.1']
    %25 = vsyncpa [#allocation3], 0
    // Predicated region
    $region2: #{bert_classifier_forward.1} parent=1 // pred_check
      _
    $region3: #{bert_classifier_forward.1} parent=1 // pred_check_branch
      %27 = sbr.rel (0) target = $region5
    $region4: #{bert_classifier_forward.1} parent=1 // pred_region
      _
    $region5: #{bert_classifier_forward.1} parent=1 // pred_fallthru
      _
    // Predicated region
    $region6: #{bert_classifier_forward.1} parent=1 // pred_check
      _
    $region7: #{bert_classifier_forward.1} parent=1 // pred_check_branch
      %29 = sbr.rel (0) target = $region9
    $region8: #{bert_classifier_forward.1} parent=1 // pred_region
      _
    $region9: #{bert_classifier_forward.1} parent=1 // pred_fallthru
      _
    // Predicated region
    $region10: #{bert_classifier_forward.1} parent=1 // pred_check
      _
    $region11: #{bert_classifier_forward.1} parent=1 // pred_check_branch
      %31 = sbr.rel (0) target = $region13
    $region12: #{bert_classifier_forward.1} parent=1 // pred_region
      _
    $region13: #{bert_classifier_forward.1} parent=1 // pred_fallthru
      _
    // Predicated region
    $region14: #{bert_classifier_forward.1} parent=1 // pred_check
      _
    $region15: #{bert_classifier_forward.1} parent=1 // pred_check_branch
      %33 = sbr.rel (0) target = $region17
    $region16: #{bert_classifier_forward.1} parent=1 // pred_region
      _
    $region17: #{bert_classifier_forward.1} parent=1 // pred_fallthru
      _
    // Predicated region
    $region18: #{bert_classifier_forward.1} parent=1 // pred_check
      _
    $region19: #{bert_classifier_forward.1} parent=1 // pred_check_branch
      %35 = sbr.rel (0) target = $region21
    $region20: #{bert_classifier_forward.1} parent=1 // pred_region
      _
    $region21: #{bert_classifier_forward.1} parent=1 // pred_fallthru
      _
    // Predicated region
    $region22: #{bert_classifier_forward.1} parent=1 // pred_check
      _
    $region23: #{bert_classifier_forward.1} parent=1 // pred_check_branch
      %37 = sbr.rel (0) target = $region25
    $region24: #{bert_classifier_forward.1} parent=1 // pred_region
      _
    $region25: #{bert_classifier_forward.1} parent=1 // pred_fallthru
      _
    // Predicated region
    $region26: #{bert_classifier_forward.1} parent=1 // pred_check
      _
    $region27: #{bert_classifier_forward.1} parent=1 // pred_check_branch
      %39 = sbr.rel (0) target = $region29
    $region28: #{bert_classifier_forward.1} parent=1 // pred_region
      _
    $region29: #{bert_classifier_forward.1} parent=1 // pred_fallthru
      _
    // Predicated region
    $region30: #{bert_classifier_forward.1} parent=1 // pred_check
      _
    $region31: #{bert_classifier_forward.1} parent=1 // pred_check_branch
      %41 = sbr.rel (0) target = $region33
    $region32: #{bert_classifier_forward.1} parent=1 // pred_region
      _
    $region33: #{bert_classifier_forward.1} parent=1 // pred_fallthru
      _
    // Predicated region
    $region34: #{bert_classifier_forward.1} parent=1 // pred_check
      _
    $region35: #{bert_classifier_forward.1} parent=1 // pred_check_branch
      %43 = sbr.rel (0) target = $region37
    $region36: #{bert_classifier_forward.1} parent=1 // pred_region
      _
    $region37: #{bert_classifier_forward.1} parent=1 // pred_fallthru
      _
    // Predicated region
    $region38: #{bert_classifier_forward.1} parent=1 // pred_check
      _
    $region39: #{bert_classifier_forward.1} parent=1 // pred_check_branch
      %45 = sbr.rel (0) target = $region41
    $region40: #{bert_classifier_forward.1} parent=1 // pred_region
      _
    $region41: #{bert_classifier_forward.1} parent=1 // pred_fallthru
      _
    // Predicated region
    $region42: #{bert_classifier_forward.1} parent=1 // pred_check
      _
    $region43: #{bert_classifier_forward.1} parent=1 // pred_check_branch
      %47 = sbr.rel (0) target = $region45
    $region44: #{bert_classifier_forward.1} parent=1 // pred_region
      _
    $region45: #{bert_classifier_forward.1} parent=1 // pred_fallthru
      _
    // Predicated region
    $region46: #{bert_classifier_forward.1} parent=1 // pred_check
      _
    $region47: #{bert_classifier_forward.1} parent=1 // pred_check_branch
      %49 = sbr.rel (0) target = $region49
    $region48: #{bert_classifier_forward.1} parent=1 // pred_region
      _
    $region49: #{bert_classifier_forward.1} parent=1 // pred_fallthru
      _
    // Predicated region
    $region50: #{bert_classifier_forward.1} parent=1 // pred_check
      _
    $region51: #{bert_classifier_forward.1} parent=1 // pred_check_branch
      %51 = sbr.rel (0) target = $region53
    $region52: #{bert_classifier_forward.1} parent=1 // pred_region
      _
    $region53: #{bert_classifier_forward.1} parent=1 // pred_fallthru
      _
    // Predicated region
    $region54: #{bert_classifier_forward.1} parent=1 // pred_check
      _
    $region55: #{bert_classifier_forward.1} parent=1 // pred_check_branch
      %53 = sbr.rel (0) target = $region57
    $region56: #{bert_classifier_forward.1} parent=1 // pred_region
      _
    $region57: #{bert_classifier_forward.1} parent=1 // pred_fallthru
      _
    // Predicated region
    $region58: #{bert_classifier_forward.1} parent=1 // pred_check
      _
    $region59: #{bert_classifier_forward.1} parent=1 // pred_check_branch
      %55 = sbr.rel (0) target = $region61
    $region60: #{bert_classifier_forward.1} parent=1 // pred_region
      _
    $region61: #{bert_classifier_forward.1} parent=1 // pred_fallthru
      _
    // Predicated region
    $region62: #{bert_classifier_forward.1} parent=1 // pred_check
      _
    $region63: #{bert_classifier_forward.1} parent=1 // pred_check_branch
      %57 = sbr.rel (0) target = $region65
    $region64: #{bert_classifier_forward.1} parent=1 // pred_region
      _
    $region65: #{bert_classifier_forward.1} parent=1 // pred_fallthru
      _
    // Predicated region
    $region66: #{bert_classifier_forward.1} parent=1 // pred_check
      _
    $region67: #{bert_classifier_forward.1} parent=1 // pred_check_branch
      %59 = sbr.rel (0) target = $region69
    $region68: #{bert_classifier_forward.1} parent=1 // pred_region
      _
    $region69: #{bert_classifier_forward.1} parent=1 // pred_fallthru
      _
    // Predicated region
    $region70: #{bert_classifier_forward.1} parent=1 // pred_check
      _
    $region71: #{bert_classifier_forward.1} parent=1 // pred_check_branch
      %61 = sbr.rel (0) target = $region73
    $region72: #{bert_classifier_forward.1} parent=1 // pred_region
      _
    $region73: #{bert_classifier_forward.1} parent=1 // pred_fallthru
      _
    // Predicated region
    $region74: #{bert_classifier_forward.1} parent=1 // pred_check
      _
    $region75: #{bert_classifier_forward.1} parent=1 // pred_check_branch
      %63 = sbr.rel (0) target = $region77
    $region76: #{bert_classifier_forward.1} parent=1 // pred_region
      _
    $region77: #{bert_classifier_forward.1} parent=1 // pred_fallthru
      _
    // Predicated region
    $region78: #{bert_classifier_forward.1} parent=1 // pred_check
      _
    $region79: #{bert_classifier_forward.1} parent=1 // pred_check_branch
      %65 = sbr.rel (0) target = $region81
    $region80: #{bert_classifier_forward.1} parent=1 // pred_region
      _
    $region81: #{bert_classifier_forward.1} parent=1 // pred_fallthru
      _
    %v66 = vld [vmem:[%s0] sm:$0xff]
    %v67 = vld [vmem:[%s0 + $0x8] sm:$0xff]
    %v68 = vld [vmem:[%s2] sm:$0x1]
    %v69 = vld [vmem:[%s3] sm:$0x1]
    %vm70 = vcmask 261120
    %v71 = vsel %vm70, %v66, 0.0
    %72 = vadd.xlane.f32.xlu0 %v71
    %v73 = vpop.xlane.xlu0 %72
    %v74 = vsel %vm70, %v67, 0.0
    %75 = vadd.xlane.f32.xlu0 %v74
    %v76 = vpop.xlane.xlu0 %75
    %v77 = vrcp.pop 32.0
    %v78 = vmul.f32 %v73, %v77
    %v79 = vmul.f32 %v76, %v77
    %v80 = vsub.f32 %v66, %v78
    %v81 = vsub.f32 %v67, %v79
    %v82 = vmul.f32 %v80, %v80
    %v83 = vmul.f32 %v81, %v81
    %v84 = vsel %vm70, %v82, 0.0
    %85 = vadd.xlane.f32.xlu0 %v84
    %v86 = vpop.xlane.xlu0 %85
    %v87 = vsel %vm70, %v83, 0.0
    %88 = vadd.xlane.f32.xlu0 %v87
    %v89 = vpop.xlane.xlu0 %88
    %v90 = vmul.f32 %v86, %v77
    %v91 = vmul.f32 %v89, %v77
    %v92 = vadd.f32 %v90, 1e-12
    %v93 = vadd.f32 %v91, 1e-12
    %v94 = vrsqrt.pop %v92
    %v95 = vrsqrt.pop %v93
    %v96 = vmul.f32 %v80, %v94
    %v97 = vmul.f32 %v81, %v95
    %v99 = vlaneseq
    %v100 = vshrl.u32 %v99, 7
    %v101 = vsub.s32 0, %v100
    %v102 = vrot.slane %v68, %v101
    %v104 = vmul.f32 %v96, %v102
    %v105 = vmul.f32 %v97, %v102
    %v107 = vlaneseq
    %v108 = vshrl.u32 %v107, 7
    %v109 = vsub.s32 0, %v108
    %v110 = vrot.slane %v69, %v109
    %v112 = vadd.f32 %v104, %v110
    %v113 = vadd.f32 %v105, %v110
    %v114 = vld [vmem:[%s1] sm:$0x3]
    %v115 = vsub.f32 1.0, %v114
    %v116 = vmul.f32 %v115, -10000.0
    %v117 = vld [vmem:[%s4] sm:$0xff]
    %v118 = vld [vmem:[%s4 + $0x8] sm:$0xff]
    %v119 = vld [vmem:[%s4 + $0x10] sm:$0xff]
    %v120 = vld [vmem:[%s4 + $0x18] sm:$0xff]
    %v121 = vld [vmem:[%s5] sm:$0x1]
    %v122 = vlaneseq
    %v123 = vshrl.u32 %v122, 7
    %v124 = vsub.s32 0, %v123
    %v125 = vrot.slane %v121, %v124
    %v127 = vsel %vm70, %v112, 0
    %v130 = vsel %vm70, %v113, 0
    %132 = vmatprep.subr.mxu0 0.0
    %133 = vmatpush1.msra.mxu0 %v117
    %134 = vmatprep.subr.mxu0 0.0
    %135 = vmatpush1.msra.mxu0 %v118
    %136 = vmatprep.subr.mxu0 0.0
    %137 = vmatpush1.msra.mxu0 %v119
    %138 = vmatprep.subr.mxu0 0.0
    %139 = vmatpush1.msra.mxu0 %v120
    %140 = vmatprep.subr.mxu0 0.0
    %141 = vmatpush1.msra.mxu0 0.0
    %142 = vmatprep.subr.mxu0 0.0
    %143 = vmatpush1.msra.mxu0 0.0
    %144 = vmatprep.subr.mxu0 0.0
    %145 = vmatpush1.msra.mxu0 0.0
    %146 = vmatprep.subr.mxu0 0.0
    %147 = vmatpush1.msra.mxu0 0.0
    %148 = vmatprep.subr.mxu0 0.0
    %149 = vmatpush1.msra.mxu0 0.0
    %150 = vmatprep.subr.mxu0 0.0
    %151 = vmatpush1.msra.mxu0 0.0
    %152 = vmatprep.subr.mxu0 0.0
    %153 = vmatpush1.msra.mxu0 0.0
    %154 = vmatprep.subr.mxu0 0.0
    %155 = vmatpush1.msra.mxu0 0.0
    %156 = vmatprep.subr.mxu0 0.0
    %157 = vmatpush1.msra.mxu0 0.0
    %158 = vmatprep.subr.mxu0 0.0
    %159 = vmatpush1.msra.mxu0 0.0
    %160 = vmatprep.subr.mxu0 0.0
    %161 = vmatpush1.msra.mxu0 0.0
    %162 = vmatprep.subr.mxu0 0.0
    %163 = vmatpush1.msra.mxu0 0.0
    %164 = vmatprep.subr.mxu0 0.0
    %165 = vmatpush1.msra.mxu0 0.0
    %166 = vmatprep.subr.mxu0 0.0
    %167 = vmatpush1.msra.mxu0 0.0
    %168 = vmatprep.subr.mxu0 0.0
    %169 = vmatpush1.msra.mxu0 0.0
    %170 = vmatprep.subr.mxu0 0.0
    %171 = vmatpush1.msra.mxu0 0.0
    %172 = vmatprep.subr.mxu0 0.0
    %173 = vmatpush1.msra.mxu0 0.0
    %174 = vmatprep.subr.mxu0 0.0
    %175 = vmatpush1.msra.mxu0 0.0
    %176 = vmatprep.subr.mxu0 0.0
    %177 = vmatpush1.msra.mxu0 0.0
    %178 = vmatprep.subr.mxu0 0.0
    %179 = vmatpush1.msra.mxu0 0.0
    %180 = vmatprep.subr.mxu0 0.0
    %181 = vmatpush1.msra.mxu0 0.0
    %182 = vmatprep.subr.mxu0 0.0
    %183 = vmatpush1.msra.mxu0 0.0
    %184 = vmatprep.subr.mxu0 0.0
    %185 = vmatpush1.msra.mxu0 0.0
    %186 = vmatprep.subr.mxu0 0.0
    %187 = vmatpush1.msra.mxu0 0.0
    %188 = vmatprep.subr.mxu0 0.0
    %189 = vmatpush1.msra.mxu0 0.0
    %190 = vmatprep.subr.mxu0 0.0
    %191 = vmatpush1.msra.mxu0 0.0
    %192 = vmatprep.subr.mxu0 0.0
    %193 = vmatpush1.msra.mxu0 0.0
    %194 = vmatprep.subr.mxu0 0.0
    %195 = vmatpush1.msra.mxu0 0.0
    %196 = vmatprep.mubr.f32.mxu0 0.0
    %197 = vmatmul.mubr.f32.gmra.mrb[0].mxu0 %v127
    %v198 = vpop.f32.mrb[0].mxu0
    %v199 = vadd.f32 %v125, %v198
    %v200 = vpop.f32.mrb[0].mxu0
    %201 = vmatprep.mubr.f32.mxu0 0.0
    %202 = vmatmul.mubr.f32.gmra.mrb[0].mxu0 %v130
    %v203 = vpop.f32.mrb[0].mxu0
    %v204 = vadd.f32 %v125, %v203
    %v205 = vpop.f32.mrb[0].mxu0
    %206 = vdwg.mxu0
    %208 = vrot.lane.b32.xlu0 %v199, 96
    %v209 = vpop.permute.xlu0 %208
    %vm210 = vcmask 64512
    %v211 = vsel %vm210, %v199, 0
    %v213 = vsel %vm210, %v209, 0
    %215 = vmatprep.subr.mxu0 0.0
    %216 = vmatpush1.xpose.msra.mxu0 %v213
    %217 = vmatprep.subr.mxu0 0.0
    %218 = vmatpush1.xpose.msra.mxu0 0.0
    %219 = vmatprep.subr.mxu0 0.0
    %220 = vmatpush1.xpose.msra.mxu0 0.0
    %221 = vmatprep.subr.mxu0 0.0
    %222 = vmatpush1.xpose.msra.mxu0 0.0
    %223 = vmatprep.subr.mxu0 0.0
    %224 = vmatpush1.xpose.msra.mxu0 0.0
    %225 = vmatprep.subr.mxu0 0.0
    %226 = vmatpush1.xpose.msra.mxu0 0.0
    %227 = vmatprep.subr.mxu0 0.0
    %228 = vmatpush1.xpose.msra.mxu0 0.0
    %229 = vmatprep.subr.mxu0 0.0
    %230 = vmatpush1.xpose.msra.mxu0 0.0
    %231 = vmatprep.subr.mxu0 0.0
    %232 = vmatpush1.xpose.msra.mxu0 0.0
    %233 = vmatprep.subr.mxu0 0.0
    %234 = vmatpush1.xpose.msra.mxu0 0.0
    %235 = vmatprep.subr.mxu0 0.0
    %236 = vmatpush1.xpose.msra.mxu0 0.0
    %237 = vmatprep.subr.mxu0 0.0
    %238 = vmatpush1.xpose.msra.mxu0 0.0
    %239 = vmatprep.subr.mxu0 0.0
    %240 = vmatpush1.xpose.msra.mxu0 0.0
    %241 = vmatprep.subr.mxu0 0.0
    %242 = vmatpush1.xpose.msra.mxu0 0.0
    %243 = vmatprep.subr.mxu0 0.0
    %244 = vmatpush1.xpose.msra.mxu0 0.0
    %245 = vmatprep.subr.mxu0 0.0
    %246 = vmatpush1.xpose.msra.mxu0 0.0
    %247 = vmatprep.subr.mxu0 0.0
    %248 = vmatpush1.xpose.msra.mxu0 0.0
    %249 = vmatprep.subr.mxu0 0.0
    %250 = vmatpush1.xpose.msra.mxu0 0.0
    %251 = vmatprep.subr.mxu0 0.0
    %252 = vmatpush1.xpose.msra.mxu0 0.0
    %253 = vmatprep.subr.mxu0 0.0
    %254 = vmatpush1.xpose.msra.mxu0 0.0
    %255 = vmatprep.subr.mxu0 0.0
    %256 = vmatpush1.xpose.msra.mxu0 0.0
    %257 = vmatprep.subr.mxu0 0.0
    %258 = vmatpush1.xpose.msra.mxu0 0.0
    %259 = vmatprep.subr.mxu0 0.0
    %260 = vmatpush1.xpose.msra.mxu0 0.0
    %261 = vmatprep.subr.mxu0 0.0
    %262 = vmatpush1.xpose.msra.mxu0 0.0
    %263 = vmatprep.subr.mxu0 0.0
    %264 = vmatpush1.xpose.msra.mxu0 0.0
    %265 = vmatprep.subr.mxu0 0.0
    %266 = vmatpush1.xpose.msra.mxu0 0.0
    %267 = vmatprep.subr.mxu0 0.0
    %268 = vmatpush1.xpose.msra.mxu0 0.0
    %269 = vmatprep.subr.mxu0 0.0
    %270 = vmatpush1.xpose.msra.mxu0 0.0
    %271 = vmatprep.subr.mxu0 0.0
    %272 = vmatpush1.xpose.msra.mxu0 0.0
    %273 = vmatprep.subr.mxu0 0.0
    %274 = vmatpush1.xpose.msra.mxu0 0.0
    %275 = vmatprep.subr.mxu0 0.0
    %276 = vmatpush1.xpose.msra.mxu0 0.0
    %277 = vmatprep.subr.mxu0 0.0
    %278 = vmatpush1.xpose.msra.mxu0 0.0
    %279 = vmatprep.mubr.f32.mxu0 0.0
    %280 = vmatmul.mubr.f32.gmra.mrb[0].mxu0 %v211
    %v281 = vpop.f32.mrb[0].mxu0
    %v282 = vadd.f32 0.0, %v281
    %v283 = vpop.f32.mrb[0].mxu0
    %284 = vdwg.mxu0
    %v285 = vmul.f32 %v282, 0.35355338
    %v286 = vlaneseq
    %v287 = vshrl.u32 %v286, 7
    %v288 = vsub.s32 0, %v287
    %v289 = vrot.slane %v116, %v288
    %v290 = vadd.f32 %v285, %v289
    %v291 = vsel %vm210, %v290, -inf
    %292 = vmax.xlane.f32.xlu0 %v291
    %v293 = vpop.xlane.xlu0 %292
    %v294 = vsub.f32 %v290, %v293
    %v295 = vmul.f32 %v294, 1.442695
    %v296 = vpow.pop %v295
    %v297 = vsel %vm210, %v296, 0.0
    %298 = vadd.xlane.f32.xlu0 %v297
    %v299 = vpop.xlane.xlu0 %298
    %v300 = vrcp.pop %v299
    %v301 = vmul.f32 %v296, %v300
    %302 = vrot.lane.b32.xlu0 %v199, 64
    %v303 = vpop.permute.xlu0 %302
    %v306 = vsel %vm210, %v301, 0
    %308 = vmatprep.subr.mxu0 0.0
    %309 = vmatpush1.msra.mxu0 %v303
    %310 = vmatprep.subr.mxu0 0.0
    %311 = vmatpush1.msra.mxu0 0.0
    %312 = vmatprep.subr.mxu0 0.0
    %313 = vmatpush1.msra.mxu0 0.0
    %314 = vmatprep.subr.mxu0 0.0
    %315 = vmatpush1.msra.mxu0 0.0
    %316 = vmatprep.subr.mxu0 0.0
    %317 = vmatpush1.msra.mxu0 0.0
    %318 = vmatprep.subr.mxu0 0.0
    %319 = vmatpush1.msra.mxu0 0.0
    %320 = vmatprep.subr.mxu0 0.0
    %321 = vmatpush1.msra.mxu0 0.0
    %322 = vmatprep.subr.mxu0 0.0
    %323 = vmatpush1.msra.mxu0 0.0
    %324 = vmatprep.subr.mxu0 0.0
    %325 = vmatpush1.msra.mxu0 0.0
    %326 = vmatprep.subr.mxu0 0.0
    %327 = vmatpush1.msra.mxu0 0.0
    %328 = vmatprep.subr.mxu0 0.0
    %329 = vmatpush1.msra.mxu0 0.0
    %330 = vmatprep.subr.mxu0 0.0
    %331 = vmatpush1.msra.mxu0 0.0
    %332 = vmatprep.subr.mxu0 0.0
    %333 = vmatpush1.msra.mxu0 0.0
    %334 = vmatprep.subr.mxu0 0.0
    %335 = vmatpush1.msra.mxu0 0.0
    %336 = vmatprep.subr.mxu0 0.0
    %337 = vmatpush1.msra.mxu0 0.0
    %338 = vmatprep.subr.mxu0 0.0
    %339 = vmatpush1.msra.mxu0 0.0
    %340 = vmatprep.subr.mxu0 0.0
    %341 = vmatpush1.msra.mxu0 0.0
    %342 = vmatprep.subr.mxu0 0.0
    %343 = vmatpush1.msra.mxu0 0.0
    %344 = vmatprep.subr.mxu0 0.0
    %345 = vmatpush1.msra.mxu0 0.0
    %346 = vmatprep.subr.mxu0 0.0
    %347 = vmatpush1.msra.mxu0 0.0
    %348 = vmatprep.subr.mxu0 0.0
    %349 = vmatpush1.msra.mxu0 0.0
    %350 = vmatprep.subr.mxu0 0.0
    %351 = vmatpush1.msra.mxu0 0.0
    %352 = vmatprep.subr.mxu0 0.0
    %353 = vmatpush1.msra.mxu0 0.0
    %354 = vmatprep.subr.mxu0 0.0
    %355 = vmatpush1.msra.mxu0 0.0
    %356 = vmatprep.subr.mxu0 0.0
    %357 = vmatpush1.msra.mxu0 0.0
    %358 = vmatprep.subr.mxu0 0.0
    %359 = vmatpush1.msra.mxu0 0.0
    %360 = vmatprep.subr.mxu0 0.0
    %361 = vmatpush1.msra.mxu0 0.0
    %362 = vmatprep.subr.mxu0 0.0
    %363 = vmatpush1.msra.mxu0 0.0
    %364 = vmatprep.subr.mxu0 0.0
    %365 = vmatpush1.msra.mxu0 0.0
    %366 = vmatprep.subr.mxu0 0.0
    %367 = vmatpush1.msra.mxu0 0.0
    %368 = vmatprep.subr.mxu0 0.0
    %369 = vmatpush1.msra.mxu0 0.0
    %370 = vmatprep.subr.mxu0 0.0
    %371 = vmatpush1.msra.mxu0 0.0
    %372 = vmatprep.mubr.f32.mxu0 0.0
    %373 = vmatmul.mubr.f32.gmra.mrb[0].mxu0 %v306
    %v374 = vpop.f32.mrb[0].mxu0
    %v375 = vadd.f32 0.0, %v374
    %v376 = vpop.f32.mrb[0].mxu0
    %377 = vdwg.mxu0
    %378 = vrot.lane.b32.xlu0 %v199, 120
    %v379 = vpop.permute.xlu0 %378
    %380 = vrot.lane.b32.xlu0 %v199, 88
    %v381 = vpop.permute.xlu0 %380
    %v382 = vsel %vm210, %v379, 0
    %v384 = vsel %vm210, %v381, 0
    %386 = vmatprep.subr.mxu0 0.0
    %387 = vmatpush1.xpose.msra.mxu0 %v384
    %388 = vmatprep.subr.mxu0 0.0
    %389 = vmatpush1.xpose.msra.mxu0 0.0
    %390 = vmatprep.subr.mxu0 0.0
    %391 = vmatpush1.xpose.msra.mxu0 0.0
    %392 = vmatprep.subr.mxu0 0.0
    %393 = vmatpush1.xpose.msra.mxu0 0.0
    %394 = vmatprep.subr.mxu0 0.0
    %395 = vmatpush1.xpose.msra.mxu0 0.0
    %396 = vmatprep.subr.mxu0 0.0
    %397 = vmatpush1.xpose.msra.mxu0 0.0
    %398 = vmatprep.subr.mxu0 0.0
    %399 = vmatpush1.xpose.msra.mxu0 0.0
    %400 = vmatprep.subr.mxu0 0.0
    %401 = vmatpush1.xpose.msra.mxu0 0.0
    %402 = vmatprep.subr.mxu0 0.0
    %403 = vmatpush1.xpose.msra.mxu0 0.0
    %404 = vmatprep.subr.mxu0 0.0
    %405 = vmatpush1.xpose.msra.mxu0 0.0
    %406 = vmatprep.subr.mxu0 0.0
    %407 = vmatpush1.xpose.msra.mxu0 0.0
    %408 = vmatprep.subr.mxu0 0.0
    %409 = vmatpush1.xpose.msra.mxu0 0.0
    %410 = vmatprep.subr.mxu0 0.0
    %411 = vmatpush1.xpose.msra.mxu0 0.0
    %412 = vmatprep.subr.mxu0 0.0
    %413 = vmatpush1.xpose.msra.mxu0 0.0
    %414 = vmatprep.subr.mxu0 0.0
    %415 = vmatpush1.xpose.msra.mxu0 0.0
    %416 = vmatprep.subr.mxu0 0.0
    %417 = vmatpush1.xpose.msra.mxu0 0.0
    %418 = vmatprep.subr.mxu0 0.0
    %419 = vmatpush1.xpose.msra.mxu0 0.0
    %420 = vmatprep.subr.mxu0 0.0
    %421 = vmatpush1.xpose.msra.mxu0 0.0
    %422 = vmatprep.subr.mxu0 0.0
    %423 = vmatpush1.xpose.msra.mxu0 0.0
    %424 = vmatprep.subr.mxu0 0.0
    %425 = vmatpush1.xpose.msra.mxu0 0.0
    %426 = vmatprep.subr.mxu0 0.0
    %427 = vmatpush1.xpose.msra.mxu0 0.0
    %428 = vmatprep.subr.mxu0 0.0
    %429 = vmatpush1.xpose.msra.mxu0 0.0
    %430 = vmatprep.subr.mxu0 0.0
    %431 = vmatpush1.xpose.msra.mxu0 0.0
    %432 = vmatprep.subr.mxu0 0.0
    %433 = vmatpush1.xpose.msra.mxu0 0.0
    %434 = vmatprep.subr.mxu0 0.0
    %435 = vmatpush1.xpose.msra.mxu0 0.0
    %436 = vmatprep.subr.mxu0 0.0
    %437 = vmatpush1.xpose.msra.mxu0 0.0
    %438 = vmatprep.subr.mxu0 0.0
    %439 = vmatpush1.xpose.msra.mxu0 0.0
    %440 = vmatprep.subr.mxu0 0.0
    %441 = vmatpush1.xpose.msra.mxu0 0.0
    %442 = vmatprep.subr.mxu0 0.0
    %443 = vmatpush1.xpose.msra.mxu0 0.0
    %444 = vmatprep.subr.mxu0 0.0
    %445 = vmatpush1.xpose.msra.mxu0 0.0
    %446 = vmatprep.subr.mxu0 0.0
    %447 = vmatpush1.xpose.msra.mxu0 0.0
    %448 = vmatprep.subr.mxu0 0.0
    %449 = vmatpush1.xpose.msra.mxu0 0.0
    %450 = vmatprep.mubr.f32.mxu0 0.0
    %451 = vmatmul.mubr.f32.gmra.mrb[0].mxu0 %v382
    %v452 = vpop.f32.mrb[0].mxu0
    %v453 = vadd.f32 0.0, %v452
    %v454 = vpop.f32.mrb[0].mxu0
    %455 = vdwg.mxu0
    %v456 = vmul.f32 %v453, 0.35355338
    %v457 = vadd.f32 %v456, %v289
    %v458 = vsel %vm210, %v457, -inf
    %459 = vmax.xlane.f32.xlu0 %v458
    %v460 = vpop.xlane.xlu0 %459
    %v461 = vsub.f32 %v457, %v460
    %v462 = vmul.f32 %v461, 1.442695
    %v463 = vpow.pop %v462
    %v464 = vsel %vm210, %v463, 0.0
    %465 = vadd.xlane.f32.xlu0 %v464
    %v466 = vpop.xlane.xlu0 %465
    %v467 = vrcp.pop %v466
    %v468 = vmul.f32 %v463, %v467
    %469 = vrot.lane.b32.xlu0 %v199, 56
    %v470 = vpop.permute.xlu0 %469
    %v473 = vsel %vm210, %v468, 0
    %475 = vmatprep.subr.mxu0 0.0
    %476 = vmatpush1.msra.mxu0 %v470
    %477 = vmatprep.subr.mxu0 0.0
    %478 = vmatpush1.msra.mxu0 0.0
    %479 = vmatprep.subr.mxu0 0.0
    %480 = vmatpush1.msra.mxu0 0.0
    %481 = vmatprep.subr.mxu0 0.0
    %482 = vmatpush1.msra.mxu0 0.0
    %483 = vmatprep.subr.mxu0 0.0
    %484 = vmatpush1.msra.mxu0 0.0
    %485 = vmatprep.subr.mxu0 0.0
    %486 = vmatpush1.msra.mxu0 0.0
    %487 = vmatprep.subr.mxu0 0.0
    %488 = vmatpush1.msra.mxu0 0.0
    %489 = vmatprep.subr.mxu0 0.0
    %490 = vmatpush1.msra.mxu0 0.0
    %491 = vmatprep.subr.mxu0 0.0
    %492 = vmatpush1.msra.mxu0 0.0
    %493 = vmatprep.subr.mxu0 0.0
    %494 = vmatpush1.msra.mxu0 0.0
    %495 = vmatprep.subr.mxu0 0.0
    %496 = vmatpush1.msra.mxu0 0.0
    %497 = vmatprep.subr.mxu0 0.0
    %498 = vmatpush1.msra.mxu0 0.0
    %499 = vmatprep.subr.mxu0 0.0
    %500 = vmatpush1.msra.mxu0 0.0
    %501 = vmatprep.subr.mxu0 0.0
    %502 = vmatpush1.msra.mxu0 0.0
    %503 = vmatprep.subr.mxu0 0.0
    %504 = vmatpush1.msra.mxu0 0.0
    %505 = vmatprep.subr.mxu0 0.0
    %506 = vmatpush1.msra.mxu0 0.0
    %507 = vmatprep.subr.mxu0 0.0
    %508 = vmatpush1.msra.mxu0 0.0
    %509 = vmatprep.subr.mxu0 0.0
    %510 = vmatpush1.msra.mxu0 0.0
    %511 = vmatprep.subr.mxu0 0.0
    %512 = vmatpush1.msra.mxu0 0.0
    %513 = vmatprep.subr.mxu0 0.0
    %514 = vmatpush1.msra.mxu0 0.0
    %515 = vmatprep.subr.mxu0 0.0
    %516 = vmatpush1.msra.mxu0 0.0
    %517 = vmatprep.subr.mxu0 0.0
    %518 = vmatpush1.msra.mxu0 0.0
    %519 = vmatprep.subr.mxu0 0.0
    %520 = vmatpush1.msra.mxu0 0.0
    %521 = vmatprep.subr.mxu0 0.0
    %522 = vmatpush1.msra.mxu0 0.0
    %523 = vmatprep.subr.mxu0 0.0
    %524 = vmatpush1.msra.mxu0 0.0
    %525 = vmatprep.subr.mxu0 0.0
    %526 = vmatpush1.msra.mxu0 0.0
    %527 = vmatprep.subr.mxu0 0.0
    %528 = vmatpush1.msra.mxu0 0.0
    %529 = vmatprep.subr.mxu0 0.0
    %530 = vmatpush1.msra.mxu0 0.0
    %531 = vmatprep.subr.mxu0 0.0
    %532 = vmatpush1.msra.mxu0 0.0
    %533 = vmatprep.subr.mxu0 0.0
    %534 = vmatpush1.msra.mxu0 0.0
    %535 = vmatprep.subr.mxu0 0.0
    %536 = vmatpush1.msra.mxu0 0.0
    %537 = vmatprep.subr.mxu0 0.0
    %538 = vmatpush1.msra.mxu0 0.0
    %539 = vmatprep.mubr.f32.mxu0 0.0
    %540 = vmatmul.mubr.f32.gmra.mrb[0].mxu0 %v473
    %v541 = vpop.f32.mrb[0].mxu0
    %v542 = vadd.f32 0.0, %v541
    %v543 = vpop.f32.mrb[0].mxu0
    %544 = vdwg.mxu0
    %545 = vrot.lane.b32.xlu0 %v199, 112
    %v546 = vpop.permute.xlu0 %545
    %547 = vrot.lane.b32.xlu0 %v199, 80
    %v548 = vpop.permute.xlu0 %547
    %v549 = vsel %vm210, %v546, 0
    %v551 = vsel %vm210, %v548, 0
    %553 = vmatprep.subr.mxu0 0.0
    %554 = vmatpush1.xpose.msra.mxu0 %v551
    %555 = vmatprep.subr.mxu0 0.0
    %556 = vmatpush1.xpose.msra.mxu0 0.0
    %557 = vmatprep.subr.mxu0 0.0
    %558 = vmatpush1.xpose.msra.mxu0 0.0
    %559 = vmatprep.subr.mxu0 0.0
    %560 = vmatpush1.xpose.msra.mxu0 0.0
    %561 = vmatprep.subr.mxu0 0.0
    %562 = vmatpush1.xpose.msra.mxu0 0.0
    %563 = vmatprep.subr.mxu0 0.0
    %564 = vmatpush1.xpose.msra.mxu0 0.0
    %565 = vmatprep.subr.mxu0 0.0
    %566 = vmatpush1.xpose.msra.mxu0 0.0
    %567 = vmatprep.subr.mxu0 0.0
    %568 = vmatpush1.xpose.msra.mxu0 0.0
    %569 = vmatprep.subr.mxu0 0.0
    %570 = vmatpush1.xpose.msra.mxu0 0.0
    %571 = vmatprep.subr.mxu0 0.0
    %572 = vmatpush1.xpose.msra.mxu0 0.0
    %573 = vmatprep.subr.mxu0 0.0
    %574 = vmatpush1.xpose.msra.mxu0 0.0
    %575 = vmatprep.subr.mxu0 0.0
    %576 = vmatpush1.xpose.msra.mxu0 0.0
    %577 = vmatprep.subr.mxu0 0.0
    %578 = vmatpush1.xpose.msra.mxu0 0.0
    %579 = vmatprep.subr.mxu0 0.0
    %580 = vmatpush1.xpose.msra.mxu0 0.0
    %581 = vmatprep.subr.mxu0 0.0
    %582 = vmatpush1.xpose.msra.mxu0 0.0
    %583 = vmatprep.subr.mxu0 0.0
    %584 = vmatpush1.xpose.msra.mxu0 0.0
    %585 = vmatprep.subr.mxu0 0.0
    %586 = vmatpush1.xpose.msra.mxu0 0.0
    %587 = vmatprep.subr.mxu0 0.0
    %588 = vmatpush1.xpose.msra.mxu0 0.0
    %589 = vmatprep.subr.mxu0 0.0
    %590 = vmatpush1.xpose.msra.mxu0 0.0
    %591 = vmatprep.subr.mxu0 0.0
    %592 = vmatpush1.xpose.msra.mxu0 0.0
    %593 = vmatprep.subr.mxu0 0.0
    %594 = vmatpush1.xpose.msra.mxu0 0.0
    %595 = vmatprep.subr.mxu0 0.0
    %596 = vmatpush1.xpose.msra.mxu0 0.0
    %597 = vmatprep.subr.mxu0 0.0
    %598 = vmatpush1.xpose.msra.mxu0 0.0
    %599 = vmatprep.subr.mxu0 0.0
    %600 = vmatpush1.xpose.msra.mxu0 0.0
    %601 = vmatprep.subr.mxu0 0.0
    %602 = vmatpush1.xpose.msra.mxu0 0.0
    %603 = vmatprep.subr.mxu0 0.0
    %604 = vmatpush1.xpose.msra.mxu0 0.0
    %605 = vmatprep.subr.mxu0 0.0
    %606 = vmatpush1.xpose.msra.mxu0 0.0
    %607 = vmatprep.subr.mxu0 0.0
    %608 = vmatpush1.xpose.msra.mxu0 0.0
    %609 = vmatprep.subr.mxu0 0.0
    %610 = vmatpush1.xpose.msra.mxu0 0.0
    %611 = vmatprep.subr.mxu0 0.0
    %612 = vmatpush1.xpose.msra.mxu0 0.0
    %613 = vmatprep.subr.mxu0 0.0
    %614 = vmatpush1.xpose.msra.mxu0 0.0
    %615 = vmatprep.subr.mxu0 0.0
    %616 = vmatpush1.xpose.msra.mxu0 0.0
    %617 = vmatprep.mubr.f32.mxu0 0.0
    %618 = vmatmul.mubr.f32.gmra.mrb[0].mxu0 %v549
    %v619 = vpop.f32.mrb[0].mxu0
    %v620 = vadd.f32 0.0, %v619
    %v621 = vpop.f32.mrb[0].mxu0
    %622 = vdwg.mxu0
    %v623 = vmul.f32 %v620, 0.35355338
    %v624 = vadd.f32 %v623, %v289
    %v625 = vsel %vm210, %v624, -inf
    %626 = vmax.xlane.f32.xlu0 %v625
    %v627 = vpop.xlane.xlu0 %626
    %v628 = vsub.f32 %v624, %v627
    %v629 = vmul.f32 %v628, 1.442695
    %v630 = vpow.pop %v629
    %v631 = vsel %vm210, %v630, 0.0
    %632 = vadd.xlane.f32.xlu0 %v631
    %v633 = vpop.xlane.xlu0 %632
    %v634 = vrcp.pop %v633
    %v635 = vmul.f32 %v630, %v634
    %636 = vrot.lane.b32.xlu0 %v199, 48
    %v637 = vpop.permute.xlu0 %636
    %v640 = vsel %vm210, %v635, 0
    %642 = vmatprep.subr.mxu0 0.0
    %643 = vmatpush1.msra.mxu0 %v637
    %644 = vmatprep.subr.mxu0 0.0
    %645 = vmatpush1.msra.mxu0 0.0
    %646 = vmatprep.subr.mxu0 0.0
    %647 = vmatpush1.msra.mxu0 0.0
    %648 = vmatprep.subr.mxu0 0.0
    %649 = vmatpush1.msra.mxu0 0.0
    %650 = vmatprep.subr.mxu0 0.0
    %651 = vmatpush1.msra.mxu0 0.0
    %652 = vmatprep.subr.mxu0 0.0
    %653 = vmatpush1.msra.mxu0 0.0
    %654 = vmatprep.subr.mxu0 0.0
    %655 = vmatpush1.msra.mxu0 0.0
    %656 = vmatprep.subr.mxu0 0.0
    %657 = vmatpush1.msra.mxu0 0.0
    %658 = vmatprep.subr.mxu0 0.0
    %659 = vmatpush1.msra.mxu0 0.0
    %660 = vmatprep.subr.mxu0 0.0
    %661 = vmatpush1.msra.mxu0 0.0
    %662 = vmatprep.subr.mxu0 0.0
    %663 = vmatpush1.msra.mxu0 0.0
    %664 = vmatprep.subr.mxu0 0.0
    %665 = vmatpush1.msra.mxu0 0.0
    %666 = vmatprep.subr.mxu0 0.0
    %667 = vmatpush1.msra.mxu0 0.0
    %668 = vmatprep.subr.mxu0 0.0
    %669 = vmatpush1.msra.mxu0 0.0
    %670 = vmatprep.subr.mxu0 0.0
    %671 = vmatpush1.msra.mxu0 0.0
    %672 = vmatprep.subr.mxu0 0.0
    %673 = vmatpush1.msra.mxu0 0.0
    %674 = vmatprep.subr.mxu0 0.0
    %675 = vmatpush1.msra.mxu0 0.0
    %676 = vmatprep.subr.mxu0 0.0
    %677 = vmatpush1.msra.mxu0 0.0
    %678 = vmatprep.subr.mxu0 0.0
    %679 = vmatpush1.msra.mxu0 0.0
    %680 = vmatprep.subr.mxu0 0.0
    %681 = vmatpush1.msra.mxu0 0.0
    %682 = vmatprep.subr.mxu0 0.0
    %683 = vmatpush1.msra.mxu0 0.0
    %684 = vmatprep.subr.mxu0 0.0
    %685 = vmatpush1.msra.mxu0 0.0
    %686 = vmatprep.subr.mxu0 0.0
    %687 = vmatpush1.msra.mxu0 0.0
    %688 = vmatprep.subr.mxu0 0.0
    %689 = vmatpush1.msra.mxu0 0.0
    %690 = vmatprep.subr.mxu0 0.0
    %691 = vmatpush1.msra.mxu0 0.0
    %692 = vmatprep.subr.mxu0 0.0
    %693 = vmatpush1.msra.mxu0 0.0
    %694 = vmatprep.subr.mxu0 0.0
    %695 = vmatpush1.msra.mxu0 0.0
    %696 = vmatprep.subr.mxu0 0.0
    %697 = vmatpush1.msra.mxu0 0.0
    %698 = vmatprep.subr.mxu0 0.0
    %699 = vmatpush1.msra.mxu0 0.0
    %700 = vmatprep.subr.mxu0 0.0
    %701 = vmatpush1.msra.mxu0 0.0
    %702 = vmatprep.subr.mxu0 0.0
    %703 = vmatpush1.msra.mxu0 0.0
    %704 = vmatprep.subr.mxu0 0.0
    %705 = vmatpush1.msra.mxu0 0.0
    %706 = vmatprep.mubr.f32.mxu0 0.0
    %707 = vmatmul.mubr.f32.gmra.mrb[0].mxu0 %v640
    %v708 = vpop.f32.mrb[0].mxu0
    %v709 = vadd.f32 0.0, %v708
    %v710 = vpop.f32.mrb[0].mxu0
    %711 = vdwg.mxu0
    %712 = vrot.lane.b32.xlu0 %v199, 104
    %v713 = vpop.permute.xlu0 %712
    %714 = vrot.lane.b32.xlu0 %v199, 72
    %v715 = vpop.permute.xlu0 %714
    %v716 = vsel %vm210, %v713, 0
    %v718 = vsel %vm210, %v715, 0
    %720 = vmatprep.subr.mxu0 0.0
    %721 = vmatpush1.xpose.msra.mxu0 %v718
    %722 = vmatprep.subr.mxu0 0.0
    %723 = vmatpush1.xpose.msra.mxu0 0.0
    %724 = vmatprep.subr.mxu0 0.0
    %725 = vmatpush1.xpose.msra.mxu0 0.0
    %726 = vmatprep.subr.mxu0 0.0
    %727 = vmatpush1.xpose.msra.mxu0 0.0
    %728 = vmatprep.subr.mxu0 0.0
    %729 = vmatpush1.xpose.msra.mxu0 0.0
    %730 = vmatprep.subr.mxu0 0.0
    %731 = vmatpush1.xpose.msra.mxu0 0.0
    %732 = vmatprep.subr.mxu0 0.0
    %733 = vmatpush1.xpose.msra.mxu0 0.0
    %734 = vmatprep.subr.mxu0 0.0
    %735 = vmatpush1.xpose.msra.mxu0 0.0
    %736 = vmatprep.subr.mxu0 0.0
    %737 = vmatpush1.xpose.msra.mxu0 0.0
    %738 = vmatprep.subr.mxu0 0.0
    %739 = vmatpush1.xpose.msra.mxu0 0.0
    %740 = vmatprep.subr.mxu0 0.0
    %741 = vmatpush1.xpose.msra.mxu0 0.0
    %742 = vmatprep.subr.mxu0 0.0
    %743 = vmatpush1.xpose.msra.mxu0 0.0
    %744 = vmatprep.subr.mxu0 0.0
    %745 = vmatpush1.xpose.msra.mxu0 0.0
    %746 = vmatprep.subr.mxu0 0.0
    %747 = vmatpush1.xpose.msra.mxu0 0.0
    %748 = vmatprep.subr.mxu0 0.0
    %749 = vmatpush1.xpose.msra.mxu0 0.0
    %750 = vmatprep.subr.mxu0 0.0
    %751 = vmatpush1.xpose.msra.mxu0 0.0
    %752 = vmatprep.subr.mxu0 0.0
    %753 = vmatpush1.xpose.msra.mxu0 0.0
    %754 = vmatprep.subr.mxu0 0.0
    %755 = vmatpush1.xpose.msra.mxu0 0.0
    %756 = vmatprep.subr.mxu0 0.0
    %757 = vmatpush1.xpose.msra.mxu0 0.0
    %758 = vmatprep.subr.mxu0 0.0
    %759 = vmatpush1.xpose.msra.mxu0 0.0
    %760 = vmatprep.subr.mxu0 0.0
    %761 = vmatpush1.xpose.msra.mxu0 0.0
    %762 = vmatprep.subr.mxu0 0.0
    %763 = vmatpush1.xpose.msra.mxu0 0.0
    %764 = vmatprep.subr.mxu0 0.0
    %765 = vmatpush1.xpose.msra.mxu0 0.0
    %766 = vmatprep.subr.mxu0 0.0
    %767 = vmatpush1.xpose.msra.mxu0 0.0
    %768 = vmatprep.subr.mxu0 0.0
    %769 = vmatpush1.xpose.msra.mxu0 0.0
    %770 = vmatprep.subr.mxu0 0.0
    %771 = vmatpush1.xpose.msra.mxu0 0.0
    %772 = vmatprep.subr.mxu0 0.0
    %773 = vmatpush1.xpose.msra.mxu0 0.0
    %774 = vmatprep.subr.mxu0 0.0
    %775 = vmatpush1.xpose.msra.mxu0 0.0
    %776 = vmatprep.subr.mxu0 0.0
    %777 = vmatpush1.xpose.msra.mxu0 0.0
    %778 = vmatprep.subr.mxu0 0.0
    %779 = vmatpush1.xpose.msra.mxu0 0.0
    %780 = vmatprep.subr.mxu0 0.0
    %781 = vmatpush1.xpose.msra.mxu0 0.0
    %782 = vmatprep.subr.mxu0 0.0
    %783 = vmatpush1.xpose.msra.mxu0 0.0
    %784 = vmatprep.mubr.f32.mxu0 0.0
    %785 = vmatmul.mubr.f32.gmra.mrb[0].mxu0 %v716
    %v786 = vpop.f32.mrb[0].mxu0
    %v787 = vadd.f32 0.0, %v786
    %v788 = vpop.f32.mrb[0].mxu0
    %789 = vdwg.mxu0
    %v790 = vmul.f32 %v787, 0.35355338
    %v791 = vadd.f32 %v790, %v289
    %v792 = vsel %vm210, %v791, -inf
    %793 = vmax.xlane.f32.xlu0 %v792
    %v794 = vpop.xlane.xlu0 %793
    %v795 = vsub.f32 %v791, %v794
    %v796 = vmul.f32 %v795, 1.442695
    %v797 = vpow.pop %v796
    %v798 = vsel %vm210, %v797, 0.0
    %799 = vadd.xlane.f32.xlu0 %v798
    %v800 = vpop.xlane.xlu0 %799
    %v801 = vrcp.pop %v800
    %v802 = vmul.f32 %v797, %v801
    %803 = vrot.lane.b32.xlu0 %v199, 40
    %v804 = vpop.permute.xlu0 %803
    %v807 = vsel %vm210, %v802, 0
    %809 = vmatprep.subr.mxu0 0.0
    %810 = vmatpush1.msra.mxu0 %v804
    %811 = vmatprep.subr.mxu0 0.0
    %812 = vmatpush1.msra.mxu0 0.0
    %813 = vmatprep.subr.mxu0 0.0
    %814 = vmatpush1.msra.mxu0 0.0
    %815 = vmatprep.subr.mxu0 0.0
    %816 = vmatpush1.msra.mxu0 0.0
    %817 = vmatprep.subr.mxu0 0.0
    %818 = vmatpush1.msra.mxu0 0.0
    %819 = vmatprep.subr.mxu0 0.0
    %820 = vmatpush1.msra.mxu0 0.0
    %821 = vmatprep.subr.mxu0 0.0
    %822 = vmatpush1.msra.mxu0 0.0
    %823 = vmatprep.subr.mxu0 0.0
    %824 = vmatpush1.msra.mxu0 0.0
    %825 = vmatprep.subr.mxu0 0.0
    %826 = vmatpush1.msra.mxu0 0.0
    %827 = vmatprep.subr.mxu0 0.0
    %828 = vmatpush1.msra.mxu0 0.0
    %829 = vmatprep.subr.mxu0 0.0
    %830 = vmatpush1.msra.mxu0 0.0
    %831 = vmatprep.subr.mxu0 0.0
    %832 = vmatpush1.msra.mxu0 0.0
    %833 = vmatprep.subr.mxu0 0.0
    %834 = vmatpush1.msra.mxu0 0.0
    %835 = vmatprep.subr.mxu0 0.0
    %836 = vmatpush1.msra.mxu0 0.0
    %837 = vmatprep.subr.mxu0 0.0
    %838 = vmatpush1.msra.mxu0 0.0
    %839 = vmatprep.subr.mxu0 0.0
    %840 = vmatpush1.msra.mxu0 0.0
    %841 = vmatprep.subr.mxu0 0.0
    %842 = vmatpush1.msra.mxu0 0.0
    %843 = vmatprep.subr.mxu0 0.0
    %844 = vmatpush1.msra.mxu0 0.0
    %845 = vmatprep.subr.mxu0 0.0
    %846 = vmatpush1.msra.mxu0 0.0
    %847 = vmatprep.subr.mxu0 0.0
    %848 = vmatpush1.msra.mxu0 0.0
    %849 = vmatprep.subr.mxu0 0.0
    %850 = vmatpush1.msra.mxu0 0.0
    %851 = vmatprep.subr.mxu0 0.0
    %852 = vmatpush1.msra.mxu0 0.0
    %853 = vmatprep.subr.mxu0 0.0
    %854 = vmatpush1.msra.mxu0 0.0
    %855 = vmatprep.subr.mxu0 0.0
    %856 = vmatpush1.msra.mxu0 0.0
    %857 = vmatprep.subr.mxu0 0.0
    %858 = vmatpush1.msra.mxu0 0.0
    %859 = vmatprep.subr.mxu0 0.0
    %860 = vmatpush1.msra.mxu0 0.0
    %861 = vmatprep.subr.mxu0 0.0
    %862 = vmatpush1.msra.mxu0 0.0
    %863 = vmatprep.subr.mxu0 0.0
    %864 = vmatpush1.msra.mxu0 0.0
    %865 = vmatprep.subr.mxu0 0.0
    %866 = vmatpush1.msra.mxu0 0.0
    %867 = vmatprep.subr.mxu0 0.0
    %868 = vmatpush1.msra.mxu0 0.0
    %869 = vmatprep.subr.mxu0 0.0
    %870 = vmatpush1.msra.mxu0 0.0
    %871 = vmatprep.subr.mxu0 0.0
    %872 = vmatpush1.msra.mxu0 0.0
    %873 = vmatprep.mubr.f32.mxu0 0.0
    %874 = vmatmul.mubr.f32.gmra.mrb[0].mxu0 %v807
    %v875 = vpop.f32.mrb[0].mxu0
    %v876 = vadd.f32 0.0, %v875
    %v877 = vpop.f32.mrb[0].mxu0
    %878 = vdwg.mxu0
    %880 = vrot.lane.b32.xlu0 %v542, 8
    %v881 = vpop.permute.xlu0 %880
    %884 = vrot.lane.b32.xlu0 %v709, 16
    %v885 = vpop.permute.xlu0 %884
    %888 = vrot.lane.b32.xlu0 %v876, 24
    %v889 = vpop.permute.xlu0 %888
    %v891 = vsel %vm210, %v375, %v881
    %vm892 = vcmask 130048
    %v893 = vsel %vm892, %v891, %v885
    %vm894 = vcmask 195584
    %v895 = vsel %vm894, %v893, %v889
    %897 = vrot.lane.b32.xlu0 %v204, 96
    %v898 = vpop.permute.xlu0 %897
    %v899 = vsel %vm210, %v204, 0
    %v901 = vsel %vm210, %v898, 0
    %903 = vmatprep.subr.mxu0 0.0
    %904 = vmatpush1.xpose.msra.mxu0 %v901
    %905 = vmatprep.subr.mxu0 0.0
    %906 = vmatpush1.xpose.msra.mxu0 0.0
    %907 = vmatprep.subr.mxu0 0.0
    %908 = vmatpush1.xpose.msra.mxu0 0.0
    %909 = vmatprep.subr.mxu0 0.0
    %910 = vmatpush1.xpose.msra.mxu0 0.0
    %911 = vmatprep.subr.mxu0 0.0
    %912 = vmatpush1.xpose.msra.mxu0 0.0
    %913 = vmatprep.subr.mxu0 0.0
    %914 = vmatpush1.xpose.msra.mxu0 0.0
    %915 = vmatprep.subr.mxu0 0.0
    %916 = vmatpush1.xpose.msra.mxu0 0.0
    %917 = vmatprep.subr.mxu0 0.0
    %918 = vmatpush1.xpose.msra.mxu0 0.0
    %919 = vmatprep.subr.mxu0 0.0
    %920 = vmatpush1.xpose.msra.mxu0 0.0
    %921 = vmatprep.subr.mxu0 0.0
    %922 = vmatpush1.xpose.msra.mxu0 0.0
    %923 = vmatprep.subr.mxu0 0.0
    %924 = vmatpush1.xpose.msra.mxu0 0.0
    %925 = vmatprep.subr.mxu0 0.0
    %926 = vmatpush1.xpose.msra.mxu0 0.0
    %927 = vmatprep.subr.mxu0 0.0
    %928 = vmatpush1.xpose.msra.mxu0 0.0
    %929 = vmatprep.subr.mxu0 0.0
    %930 = vmatpush1.xpose.msra.mxu0 0.0
    %931 = vmatprep.subr.mxu0 0.0
    %932 = vmatpush1.xpose.msra.mxu0 0.0
    %933 = vmatprep.subr.mxu0 0.0
    %934 = vmatpush1.xpose.msra.mxu0 0.0
    %935 = vmatprep.subr.mxu0 0.0
    %936 = vmatpush1.xpose.msra.mxu0 0.0
    %937 = vmatprep.subr.mxu0 0.0
    %938 = vmatpush1.xpose.msra.mxu0 0.0
    %939 = vmatprep.subr.mxu0 0.0
    %940 = vmatpush1.xpose.msra.mxu0 0.0
    %941 = vmatprep.subr.mxu0 0.0
    %942 = vmatpush1.xpose.msra.mxu0 0.0
    %943 = vmatprep.subr.mxu0 0.0
    %944 = vmatpush1.xpose.msra.mxu0 0.0
    %945 = vmatprep.subr.mxu0 0.0
    %946 = vmatpush1.xpose.msra.mxu0 0.0
    %947 = vmatprep.subr.mxu0 0.0
    %948 = vmatpush1.xpose.msra.mxu0 0.0
    %949 = vmatprep.subr.mxu0 0.0
    %950 = vmatpush1.xpose.msra.mxu0 0.0
    %951 = vmatprep.subr.mxu0 0.0
    %952 = vmatpush1.xpose.msra.mxu0 0.0
    %953 = vmatprep.subr.mxu0 0.0
    %954 = vmatpush1.xpose.msra.mxu0 0.0
    %955 = vmatprep.subr.mxu0 0.0
    %956 = vmatpush1.xpose.msra.mxu0 0.0
    %957 = vmatprep.subr.mxu0 0.0
    %958 = vmatpush1.xpose.msra.mxu0 0.0
    %959 = vmatprep.subr.mxu0 0.0
    %960 = vmatpush1.xpose.msra.mxu0 0.0
    %961 = vmatprep.subr.mxu0 0.0
    %962 = vmatpush1.xpose.msra.mxu0 0.0
    %963 = vmatprep.subr.mxu0 0.0
    %964 = vmatpush1.xpose.msra.mxu0 0.0
    %965 = vmatprep.subr.mxu0 0.0
    %966 = vmatpush1.xpose.msra.mxu0 0.0
    %967 = vmatprep.mubr.f32.mxu0 0.0
    %968 = vmatmul.mubr.f32.gmra.mrb[0].mxu0 %v899
    %v969 = vpop.f32.mrb[0].mxu0
    %v970 = vadd.f32 0.0, %v969
    %v971 = vpop.f32.mrb[0].mxu0
    %972 = vdwg.mxu0
    %v973 = vmul.f32 %v970, 0.35355338
    %v974 = vlaneseq
    %v975 = vshrl.u32 %v974, 7
    %v976 = vsub.s32 1, %v975
    %v977 = vrot.slane %v116, %v976
    %v978 = vadd.f32 %v973, %v977
    %v979 = vsel %vm210, %v978, -inf
    %980 = vmax.xlane.f32.xlu0 %v979
    %v981 = vpop.xlane.xlu0 %980
    %v982 = vsub.f32 %v978, %v981
    %v983 = vmul.f32 %v982, 1.442695
    %v984 = vpow.pop %v983
    %v985 = vsel %vm210, %v984, 0.0
    %986 = vadd.xlane.f32.xlu0 %v985
    %v987 = vpop.xlane.xlu0 %986
    %v988 = vrcp.pop %v987
    %v989 = vmul.f32 %v984, %v988
    %990 = vrot.lane.b32.xlu0 %v204, 64
    %v991 = vpop.permute.xlu0 %990
    %v994 = vsel %vm210, %v989, 0
    %996 = vmatprep.subr.mxu0 0.0
    %997 = vmatpush1.msra.mxu0 %v991
    %998 = vmatprep.subr.mxu0 0.0
    %999 = vmatpush1.msra.mxu0 0.0
    %1000 = vmatprep.subr.mxu0 0.0
    %1001 = vmatpush1.msra.mxu0 0.0
    %1002 = vmatprep.subr.mxu0 0.0
    %1003 = vmatpush1.msra.mxu0 0.0
    %1004 = vmatprep.subr.mxu0 0.0
    %1005 = vmatpush1.msra.mxu0 0.0
    %1006 = vmatprep.subr.mxu0 0.0
    %1007 = vmatpush1.msra.mxu0 0.0
    %1008 = vmatprep.subr.mxu0 0.0
    %1009 = vmatpush1.msra.mxu0 0.0
    %1010 = vmatprep.subr.mxu0 0.0
    %1011 = vmatpush1.msra.mxu0 0.0
    %1012 = vmatprep.subr.mxu0 0.0
    %1013 = vmatpush1.msra.mxu0 0.0
    %1014 = vmatprep.subr.mxu0 0.0
    %1015 = vmatpush1.msra.mxu0 0.0
    %1016 = vmatprep.subr.mxu0 0.0
    %1017 = vmatpush1.msra.mxu0 0.0
    %1018 = vmatprep.subr.mxu0 0.0
    %1019 = vmatpush1.msra.mxu0 0.0
    %1020 = vmatprep.subr.mxu0 0.0
    %1021 = vmatpush1.msra.mxu0 0.0
    %1022 = vmatprep.subr.mxu0 0.0
    %1023 = vmatpush1.msra.mxu0 0.0
    %1024 = vmatprep.subr.mxu0 0.0
    %1025 = vmatpush1.msra.mxu0 0.0
    %1026 = vmatprep.subr.mxu0 0.0
    %1027 = vmatpush1.msra.mxu0 0.0
    %1028 = vmatprep.subr.mxu0 0.0
    %1029 = vmatpush1.msra.mxu0 0.0
    %1030 = vmatprep.subr.mxu0 0.0
    %1031 = vmatpush1.msra.mxu0 0.0
    %1032 = vmatprep.subr.mxu0 0.0
    %1033 = vmatpush1.msra.mxu0 0.0
    %1034 = vmatprep.subr.mxu0 0.0
    %1035 = vmatpush1.msra.mxu0 0.0
    %1036 = vmatprep.subr.mxu0 0.0
    %1037 = vmatpush1.msra.mxu0 0.0
    %1038 = vmatprep.subr.mxu0 0.0
    %1039 = vmatpush1.msra.mxu0 0.0
    %1040 = vmatprep.subr.mxu0 0.0
    %1041 = vmatpush1.msra.mxu0 0.0
    %1042 = vmatprep.subr.mxu0 0.0
    %1043 = vmatpush1.msra.mxu0 0.0
    %1044 = vmatprep.subr.mxu0 0.0
    %1045 = vmatpush1.msra.mxu0 0.0
    %1046 = vmatprep.subr.mxu0 0.0
    %1047 = vmatpush1.msra.mxu0 0.0
    %1048 = vmatprep.subr.mxu0 0.0
    %1049 = vmatpush1.msra.mxu0 0.0
    %1050 = vmatprep.subr.mxu0 0.0
    %1051 = vmatpush1.msra.mxu0 0.0
    %1052 = vmatprep.subr.mxu0 0.0
    %1053 = vmatpush1.msra.mxu0 0.0
    %1054 = vmatprep.subr.mxu0 0.0
    %1055 = vmatpush1.msra.mxu0 0.0
    %1056 = vmatprep.subr.mxu0 0.0
    %1057 = vmatpush1.msra.mxu0 0.0
    %1058 = vmatprep.subr.mxu0 0.0
    %1059 = vmatpush1.msra.mxu0 0.0
    %1060 = vmatprep.mubr.f32.mxu0 0.0
    %1061 = vmatmul.mubr.f32.gmra.mrb[0].mxu0 %v994
    %v1062 = vpop.f32.mrb[0].mxu0
    %v1063 = vadd.f32 0.0, %v1062
    %v1064 = vpop.f32.mrb[0].mxu0
    %1065 = vdwg.mxu0
    %1066 = vrot.lane.b32.xlu0 %v204, 120
    %v1067 = vpop.permute.xlu0 %1066
    %1068 = vrot.lane.b32.xlu0 %v204, 88
    %v1069 = vpop.permute.xlu0 %1068
    %v1070 = vsel %vm210, %v1067, 0
    %v1072 = vsel %vm210, %v1069, 0
    %1074 = vmatprep.subr.mxu0 0.0
    %1075 = vmatpush1.xpose.msra.mxu0 %v1072
    %1076 = vmatprep.subr.mxu0 0.0
    %1077 = vmatpush1.xpose.msra.mxu0 0.0
    %1078 = vmatprep.subr.mxu0 0.0
    %1079 = vmatpush1.xpose.msra.mxu0 0.0
    %1080 = vmatprep.subr.mxu0 0.0
    %1081 = vmatpush1.xpose.msra.mxu0 0.0
    %1082 = vmatprep.subr.mxu0 0.0
    %1083 = vmatpush1.xpose.msra.mxu0 0.0
    %1084 = vmatprep.subr.mxu0 0.0
    %1085 = vmatpush1.xpose.msra.mxu0 0.0
    %1086 = vmatprep.subr.mxu0 0.0
    %1087 = vmatpush1.xpose.msra.mxu0 0.0
    %1088 = vmatprep.subr.mxu0 0.0
    %1089 = vmatpush1.xpose.msra.mxu0 0.0
    %1090 = vmatprep.subr.mxu0 0.0
    %1091 = vmatpush1.xpose.msra.mxu0 0.0
    %1092 = vmatprep.subr.mxu0 0.0
    %1093 = vmatpush1.xpose.msra.mxu0 0.0
    %1094 = vmatprep.subr.mxu0 0.0
    %1095 = vmatpush1.xpose.msra.mxu0 0.0
    %1096 = vmatprep.subr.mxu0 0.0
    %1097 = vmatpush1.xpose.msra.mxu0 0.0
    %1098 = vmatprep.subr.mxu0 0.0
    %1099 = vmatpush1.xpose.msra.mxu0 0.0
    %1100 = vmatprep.subr.mxu0 0.0
    %1101 = vmatpush1.xpose.msra.mxu0 0.0
    %1102 = vmatprep.subr.mxu0 0.0
    %1103 = vmatpush1.xpose.msra.mxu0 0.0
    %1104 = vmatprep.subr.mxu0 0.0
    %1105 = vmatpush1.xpose.msra.mxu0 0.0
    %1106 = vmatprep.subr.mxu0 0.0
    %1107 = vmatpush1.xpose.msra.mxu0 0.0
    %1108 = vmatprep.subr.mxu0 0.0
    %1109 = vmatpush1.xpose.msra.mxu0 0.0
    %1110 = vmatprep.subr.mxu0 0.0
    %1111 = vmatpush1.xpose.msra.mxu0 0.0
    %1112 = vmatprep.subr.mxu0 0.0
    %1113 = vmatpush1.xpose.msra.mxu0 0.0
    %1114 = vmatprep.subr.mxu0 0.0
    %1115 = vmatpush1.xpose.msra.mxu0 0.0
    %1116 = vmatprep.subr.mxu0 0.0
    %1117 = vmatpush1.xpose.msra.mxu0 0.0
    %1118 = vmatprep.subr.mxu0 0.0
    %1119 = vmatpush1.xpose.msra.mxu0 0.0
    %1120 = vmatprep.subr.mxu0 0.0
    %1121 = vmatpush1.xpose.msra.mxu0 0.0
    %1122 = vmatprep.subr.mxu0 0.0
    %1123 = vmatpush1.xpose.msra.mxu0 0.0
    %1124 = vmatprep.subr.mxu0 0.0
    %1125 = vmatpush1.xpose.msra.mxu0 0.0
    %1126 = vmatprep.subr.mxu0 0.0
    %1127 = vmatpush1.xpose.msra.mxu0 0.0
    %1128 = vmatprep.subr.mxu0 0.0
    %1129 = vmatpush1.xpose.msra.mxu0 0.0
    %1130 = vmatprep.subr.mxu0 0.0
    %1131 = vmatpush1.xpose.msra.mxu0 0.0
    %1132 = vmatprep.subr.mxu0 0.0
    %1133 = vmatpush1.xpose.msra.mxu0 0.0
    %1134 = vmatprep.subr.mxu0 0.0
    %1135 = vmatpush1.xpose.msra.mxu0 0.0
    %1136 = vmatprep.subr.mxu0 0.0
    %1137 = vmatpush1.xpose.msra.mxu0 0.0
    %1138 = vmatprep.mubr.f32.mxu0 0.0
    %1139 = vmatmul.mubr.f32.gmra.mrb[0].mxu0 %v1070
    %v1140 = vpop.f32.mrb[0].mxu0
    %v1141 = vadd.f32 0.0, %v1140
    %v1142 = vpop.f32.mrb[0].mxu0
    %1143 = vdwg.mxu0
    %v1144 = vmul.f32 %v1141, 0.35355338
    %v1145 = vadd.f32 %v1144, %v977
    %v1146 = vsel %vm210, %v1145, -inf
    %1147 = vmax.xlane.f32.xlu0 %v1146
    %v1148 = vpop.xlane.xlu0 %1147
    %v1149 = vsub.f32 %v1145, %v1148
    %v1150 = vmul.f32 %v1149, 1.442695
    %v1151 = vpow.pop %v1150
    %v1152 = vsel %vm210, %v1151, 0.0
    %1153 = vadd.xlane.f32.xlu0 %v1152
    %v1154 = vpop.xlane.xlu0 %1153
    %v1155 = vrcp.pop %v1154
    %v1156 = vmul.f32 %v1151, %v1155
    %1157 = vrot.lane.b32.xlu0 %v204, 56
    %v1158 = vpop.permute.xlu0 %1157
    %v1161 = vsel %vm210, %v1156, 0
    %1163 = vmatprep.subr.mxu0 0.0
    %1164 = vmatpush1.msra.mxu0 %v1158
    %1165 = vmatprep.subr.mxu0 0.0
    %1166 = vmatpush1.msra.mxu0 0.0
    %1167 = vmatprep.subr.mxu0 0.0
    %1168 = vmatpush1.msra.mxu0 0.0
    %1169 = vmatprep.subr.mxu0 0.0
    %1170 = vmatpush1.msra.mxu0 0.0
    %1171 = vmatprep.subr.mxu0 0.0
    %1172 = vmatpush1.msra.mxu0 0.0
    %1173 = vmatprep.subr.mxu0 0.0
    %1174 = vmatpush1.msra.mxu0 0.0
    %1175 = vmatprep.subr.mxu0 0.0
    %1176 = vmatpush1.msra.mxu0 0.0
    %1177 = vmatprep.subr.mxu0 0.0
    %1178 = vmatpush1.msra.mxu0 0.0
    %1179 = vmatprep.subr.mxu0 0.0
    %1180 = vmatpush1.msra.mxu0 0.0
    %1181 = vmatprep.subr.mxu0 0.0
    %1182 = vmatpush1.msra.mxu0 0.0
    %1183 = vmatprep.subr.mxu0 0.0
    %1184 = vmatpush1.msra.mxu0 0.0
    %1185 = vmatprep.subr.mxu0 0.0
    %1186 = vmatpush1.msra.mxu0 0.0
    %1187 = vmatprep.subr.mxu0 0.0
    %1188 = vmatpush1.msra.mxu0 0.0
    %1189 = vmatprep.subr.mxu0 0.0
    %1190 = vmatpush1.msra.mxu0 0.0
    %1191 = vmatprep.subr.mxu0 0.0
    %1192 = vmatpush1.msra.mxu0 0.0
    %1193 = vmatprep.subr.mxu0 0.0
    %1194 = vmatpush1.msra.mxu0 0.0
    %1195 = vmatprep.subr.mxu0 0.0
    %1196 = vmatpush1.msra.mxu0 0.0
    %1197 = vmatprep.subr.mxu0 0.0
    %1198 = vmatpush1.msra.mxu0 0.0
    %1199 = vmatprep.subr.mxu0 0.0
    %1200 = vmatpush1.msra.mxu0 0.0
    %1201 = vmatprep.subr.mxu0 0.0
    %1202 = vmatpush1.msra.mxu0 0.0
    %1203 = vmatprep.subr.mxu0 0.0
    %1204 = vmatpush1.msra.mxu0 0.0
    %1205 = vmatprep.subr.mxu0 0.0
    %1206 = vmatpush1.msra.mxu0 0.0
    %1207 = vmatprep.subr.mxu0 0.0
    %1208 = vmatpush1.msra.mxu0 0.0
    %1209 = vmatprep.subr.mxu0 0.0
    %1210 = vmatpush1.msra.mxu0 0.0
    %1211 = vmatprep.subr.mxu0 0.0
    %1212 = vmatpush1.msra.mxu0 0.0
    %1213 = vmatprep.subr.mxu0 0.0
    %1214 = vmatpush1.msra.mxu0 0.0
    %1215 = vmatprep.subr.mxu0 0.0
    %1216 = vmatpush1.msra.mxu0 0.0
    %1217 = vmatprep.subr.mxu0 0.0
    %1218 = vmatpush1.msra.mxu0 0.0
    %1219 = vmatprep.subr.mxu0 0.0
    %1220 = vmatpush1.msra.mxu0 0.0
    %1221 = vmatprep.subr.mxu0 0.0
    %1222 = vmatpush1.msra.mxu0 0.0
    %1223 = vmatprep.subr.mxu0 0.0
    %1224 = vmatpush1.msra.mxu0 0.0
    %1225 = vmatprep.subr.mxu0 0.0
    %1226 = vmatpush1.msra.mxu0 0.0
    %1227 = vmatprep.mubr.f32.mxu0 0.0
    %1228 = vmatmul.mubr.f32.gmra.mrb[0].mxu0 %v1161
    %v1229 = vpop.f32.mrb[0].mxu0
    %v1230 = vadd.f32 0.0, %v1229
    %v1231 = vpop.f32.mrb[0].mxu0
    %1232 = vdwg.mxu0
    %1233 = vrot.lane.b32.xlu0 %v204, 112
    %v1234 = vpop.permute.xlu0 %1233
    %1235 = vrot.lane.b32.xlu0 %v204, 80
    %v1236 = vpop.permute.xlu0 %1235
    %v1237 = vsel %vm210, %v1234, 0
    %v1239 = vsel %vm210, %v1236, 0
    %1241 = vmatprep.subr.mxu0 0.0
    %1242 = vmatpush1.xpose.msra.mxu0 %v1239
    %1243 = vmatprep.subr.mxu0 0.0
    %1244 = vmatpush1.xpose.msra.mxu0 0.0
    %1245 = vmatprep.subr.mxu0 0.0
    %1246 = vmatpush1.xpose.msra.mxu0 0.0
    %1247 = vmatprep.subr.mxu0 0.0
    %1248 = vmatpush1.xpose.msra.mxu0 0.0
    %1249 = vmatprep.subr.mxu0 0.0
    %1250 = vmatpush1.xpose.msra.mxu0 0.0
    %1251 = vmatprep.subr.mxu0 0.0
    %1252 = vmatpush1.xpose.msra.mxu0 0.0
    %1253 = vmatprep.subr.mxu0 0.0
    %1254 = vmatpush1.xpose.msra.mxu0 0.0
    %1255 = vmatprep.subr.mxu0 0.0
    %1256 = vmatpush1.xpose.msra.mxu0 0.0
    %1257 = vmatprep.subr.mxu0 0.0
    %1258 = vmatpush1.xpose.msra.mxu0 0.0
    %1259 = vmatprep.subr.mxu0 0.0
    %1260 = vmatpush1.xpose.msra.mxu0 0.0
    %1261 = vmatprep.subr.mxu0 0.0
    %1262 = vmatpush1.xpose.msra.mxu0 0.0
    %1263 = vmatprep.subr.mxu0 0.0
    %1264 = vmatpush1.xpose.msra.mxu0 0.0
    %1265 = vmatprep.subr.mxu0 0.0
    %1266 = vmatpush1.xpose.msra.mxu0 0.0
    %1267 = vmatprep.subr.mxu0 0.0
    %1268 = vmatpush1.xpose.msra.mxu0 0.0
    %1269 = vmatprep.subr.mxu0 0.0
    %1270 = vmatpush1.xpose.msra.mxu0 0.0
    %1271 = vmatprep.subr.mxu0 0.0
    %1272 = vmatpush1.xpose.msra.mxu0 0.0
    %1273 = vmatprep.subr.mxu0 0.0
    %1274 = vmatpush1.xpose.msra.mxu0 0.0
    %1275 = vmatprep.subr.mxu0 0.0
    %1276 = vmatpush1.xpose.msra.mxu0 0.0
    %1277 = vmatprep.subr.mxu0 0.0
    %1278 = vmatpush1.xpose.msra.mxu0 0.0
    %1279 = vmatprep.subr.mxu0 0.0
    %1280 = vmatpush1.xpose.msra.mxu0 0.0
    %1281 = vmatprep.subr.mxu0 0.0
    %1282 = vmatpush1.xpose.msra.mxu0 0.0
    %1283 = vmatprep.subr.mxu0 0.0
    %1284 = vmatpush1.xpose.msra.mxu0 0.0
    %1285 = vmatprep.subr.mxu0 0.0
    %1286 = vmatpush1.xpose.msra.mxu0 0.0
    %1287 = vmatprep.subr.mxu0 0.0
    %1288 = vmatpush1.xpose.msra.mxu0 0.0
    %1289 = vmatprep.subr.mxu0 0.0
    %1290 = vmatpush1.xpose.msra.mxu0 0.0
    %1291 = vmatprep.subr.mxu0 0.0
    %1292 = vmatpush1.xpose.msra.mxu0 0.0
    %1293 = vmatprep.subr.mxu0 0.0
    %1294 = vmatpush1.xpose.msra.mxu0 0.0
    %1295 = vmatprep.subr.mxu0 0.0
    %1296 = vmatpush1.xpose.msra.mxu0 0.0
    %1297 = vmatprep.subr.mxu0 0.0
    %1298 = vmatpush1.xpose.msra.mxu0 0.0
    %1299 = vmatprep.subr.mxu0 0.0
    %1300 = vmatpush1.xpose.msra.mxu0 0.0
    %1301 = vmatprep.subr.mxu0 0.0
    %1302 = vmatpush1.xpose.msra.mxu0 0.0
    %1303 = vmatprep.subr.mxu0 0.0
    %1304 = vmatpush1.xpose.msra.mxu0 0.0
    %1305 = vmatprep.mubr.f32.mxu0 0.0
    %1306 = vmatmul.mubr.f32.gmra.mrb[0].mxu0 %v1237
    %v1307 = vpop.f32.mrb[0].mxu0
    %v1308 = vadd.f32 0.0, %v1307
    %v1309 = vpop.f32.mrb[0].mxu0
    %1310 = vdwg.mxu0
    %v1311 = vmul.f32 %v1308, 0.35355338
    %v1312 = vadd.f32 %v1311, %v977
    %v1313 = vsel %vm210, %v1312, -inf
    %1314 = vmax.xlane.f32.xlu0 %v1313
    %v1315 = vpop.xlane.xlu0 %1314
    %v1316 = vsub.f32 %v1312, %v1315
    %v1317 = vmul.f32 %v1316, 1.442695
    %v1318 = vpow.pop %v1317
    %v1319 = vsel %vm210, %v1318, 0.0
    %1320 = vadd.xlane.f32.xlu0 %v1319
    %v1321 = vpop.xlane.xlu0 %1320
    %v1322 = vrcp.pop %v1321
    %v1323 = vmul.f32 %v1318, %v1322
    %1324 = vrot.lane.b32.xlu0 %v204, 48
    %v1325 = vpop.permute.xlu0 %1324
    %v1328 = vsel %vm210, %v1323, 0
    %1330 = vmatprep.subr.mxu0 0.0
    %1331 = vmatpush1.msra.mxu0 %v1325
    %1332 = vmatprep.subr.mxu0 0.0
    %1333 = vmatpush1.msra.mxu0 0.0
    %1334 = vmatprep.subr.mxu0 0.0
    %1335 = vmatpush1.msra.mxu0 0.0
    %1336 = vmatprep.subr.mxu0 0.0
    %1337 = vmatpush1.msra.mxu0 0.0
    %1338 = vmatprep.subr.mxu0 0.0
    %1339 = vmatpush1.msra.mxu0 0.0
    %1340 = vmatprep.subr.mxu0 0.0
    %1341 = vmatpush1.msra.mxu0 0.0
    %1342 = vmatprep.subr.mxu0 0.0
    %1343 = vmatpush1.msra.mxu0 0.0
    %1344 = vmatprep.subr.mxu0 0.0
    %1345 = vmatpush1.msra.mxu0 0.0
    %1346 = vmatprep.subr.mxu0 0.0
    %1347 = vmatpush1.msra.mxu0 0.0
    %1348 = vmatprep.subr.mxu0 0.0
    %1349 = vmatpush1.msra.mxu0 0.0
    %1350 = vmatprep.subr.mxu0 0.0
    %1351 = vmatpush1.msra.mxu0 0.0
    %1352 = vmatprep.subr.mxu0 0.0
    %1353 = vmatpush1.msra.mxu0 0.0
    %1354 = vmatprep.subr.mxu0 0.0
    %1355 = vmatpush1.msra.mxu0 0.0
    %1356 = vmatprep.subr.mxu0 0.0
    %1357 = vmatpush1.msra.mxu0 0.0
    %1358 = vmatprep.subr.mxu0 0.0
    %1359 = vmatpush1.msra.mxu0 0.0
    %1360 = vmatprep.subr.mxu0 0.0
    %1361 = vmatpush1.msra.mxu0 0.0
    %1362 = vmatprep.subr.mxu0 0.0
    %1363 = vmatpush1.msra.mxu0 0.0
    %1364 = vmatprep.subr.mxu0 0.0
    %1365 = vmatpush1.msra.mxu0 0.0
    %1366 = vmatprep.subr.mxu0 0.0
    %1367 = vmatpush1.msra.mxu0 0.0
    %1368 = vmatprep.subr.mxu0 0.0
    %1369 = vmatpush1.msra.mxu0 0.0
    %1370 = vmatprep.subr.mxu0 0.0
    %1371 = vmatpush1.msra.mxu0 0.0
    %1372 = vmatprep.subr.mxu0 0.0
    %1373 = vmatpush1.msra.mxu0 0.0
    %1374 = vmatprep.subr.mxu0 0.0
    %1375 = vmatpush1.msra.mxu0 0.0
    %1376 = vmatprep.subr.mxu0 0.0
    %1377 = vmatpush1.msra.mxu0 0.0
    %1378 = vmatprep.subr.mxu0 0.0
    %1379 = vmatpush1.msra.mxu0 0.0
    %1380 = vmatprep.subr.mxu0 0.0
    %1381 = vmatpush1.msra.mxu0 0.0
    %1382 = vmatprep.subr.mxu0 0.0
    %1383 = vmatpush1.msra.mxu0 0.0
    %1384 = vmatprep.subr.mxu0 0.0
    %1385 = vmatpush1.msra.mxu0 0.0
    %1386 = vmatprep.subr.mxu0 0.0
    %1387 = vmatpush1.msra.mxu0 0.0
    %1388 = vmatprep.subr.mxu0 0.0
    %1389 = vmatpush1.msra.mxu0 0.0
    %1390 = vmatprep.subr.mxu0 0.0
    %1391 = vmatpush1.msra.mxu0 0.0
    %1392 = vmatprep.subr.mxu0 0.0
    %1393 = vmatpush1.msra.mxu0 0.0
    %1394 = vmatprep.mubr.f32.mxu0 0.0
    %1395 = vmatmul.mubr.f32.gmra.mrb[0].mxu0 %v1328
    %v1396 = vpop.f32.mrb[0].mxu0
    %v1397 = vadd.f32 0.0, %v1396
    %v1398 = vpop.f32.mrb[0].mxu0
    %1399 = vdwg.mxu0
    %1400 = vrot.lane.b32.xlu0 %v204, 104
    %v1401 = vpop.permute.xlu0 %1400
    %1402 = vrot.lane.b32.xlu0 %v204, 72
    %v1403 = vpop.permute.xlu0 %1402
    %v1404 = vsel %vm210, %v1401, 0
    %v1406 = vsel %vm210, %v1403, 0
    %1408 = vmatprep.subr.mxu0 0.0
    %1409 = vmatpush1.xpose.msra.mxu0 %v1406
    %1410 = vmatprep.subr.mxu0 0.0
    %1411 = vmatpush1.xpose.msra.mxu0 0.0
    %1412 = vmatprep.subr.mxu0 0.0
    %1413 = vmatpush1.xpose.msra.mxu0 0.0
    %1414 = vmatprep.subr.mxu0 0.0
    %1415 = vmatpush1.xpose.msra.mxu0 0.0
    %1416 = vmatprep.subr.mxu0 0.0
    %1417 = vmatpush1.xpose.msra.mxu0 0.0
    %1418 = vmatprep.subr.mxu0 0.0
    %1419 = vmatpush1.xpose.msra.mxu0 0.0
    %1420 = vmatprep.subr.mxu0 0.0
    %1421 = vmatpush1.xpose.msra.mxu0 0.0
    %1422 = vmatprep.subr.mxu0 0.0
    %1423 = vmatpush1.xpose.msra.mxu0 0.0
    %1424 = vmatprep.subr.mxu0 0.0
    %1425 = vmatpush1.xpose.msra.mxu0 0.0
    %1426 = vmatprep.subr.mxu0 0.0
    %1427 = vmatpush1.xpose.msra.mxu0 0.0
    %1428 = vmatprep.subr.mxu0 0.0
    %1429 = vmatpush1.xpose.msra.mxu0 0.0
    %1430 = vmatprep.subr.mxu0 0.0
    %1431 = vmatpush1.xpose.msra.mxu0 0.0
    %1432 = vmatprep.subr.mxu0 0.0
    %1433 = vmatpush1.xpose.msra.mxu0 0.0
    %1434 = vmatprep.subr.mxu0 0.0
    %1435 = vmatpush1.xpose.msra.mxu0 0.0
    %1436 = vmatprep.subr.mxu0 0.0
    %1437 = vmatpush1.xpose.msra.mxu0 0.0
    %1438 = vmatprep.subr.mxu0 0.0
    %1439 = vmatpush1.xpose.msra.mxu0 0.0
    %1440 = vmatprep.subr.mxu0 0.0
    %1441 = vmatpush1.xpose.msra.mxu0 0.0
    %1442 = vmatprep.subr.mxu0 0.0
    %1443 = vmatpush1.xpose.msra.mxu0 0.0
    %1444 = vmatprep.subr.mxu0 0.0
    %1445 = vmatpush1.xpose.msra.mxu0 0.0
    %1446 = vmatprep.subr.mxu0 0.0
    %1447 = vmatpush1.xpose.msra.mxu0 0.0
    %1448 = vmatprep.subr.mxu0 0.0
    %1449 = vmatpush1.xpose.msra.mxu0 0.0
    %1450 = vmatprep.subr.mxu0 0.0
    %1451 = vmatpush1.xpose.msra.mxu0 0.0
    %1452 = vmatprep.subr.mxu0 0.0
    %1453 = vmatpush1.xpose.msra.mxu0 0.0
    %1454 = vmatprep.subr.mxu0 0.0
    %1455 = vmatpush1.xpose.msra.mxu0 0.0
    %1456 = vmatprep.subr.mxu0 0.0
    %1457 = vmatpush1.xpose.msra.mxu0 0.0
    %1458 = vmatprep.subr.mxu0 0.0
    %1459 = vmatpush1.xpose.msra.mxu0 0.0
    %1460 = vmatprep.subr.mxu0 0.0
    %1461 = vmatpush1.xpose.msra.mxu0 0.0
    %1462 = vmatprep.subr.mxu0 0.0
    %1463 = vmatpush1.xpose.msra.mxu0 0.0
    %1464 = vmatprep.subr.mxu0 0.0
    %1465 = vmatpush1.xpose.msra.mxu0 0.0
    %1466 = vmatprep.subr.mxu0 0.0
    %1467 = vmatpush1.xpose.msra.mxu0 0.0
    %1468 = vmatprep.subr.mxu0 0.0
    %1469 = vmatpush1.xpose.msra.mxu0 0.0
    %1470 = vmatprep.subr.mxu0 0.0
    %1471 = vmatpush1.xpose.msra.mxu0 0.0
    %1472 = vmatprep.mubr.f32.mxu0 0.0
    %1473 = vmatmul.mubr.f32.gmra.mrb[0].mxu0 %v1404
    %v1474 = vpop.f32.mrb[0].mxu0
    %v1475 = vadd.f32 0.0, %v1474
    %v1476 = vpop.f32.mrb[0].mxu0
    %1477 = vdwg.mxu0
    %v1478 = vmul.f32 %v1475, 0.35355338
    %v1479 = vadd.f32 %v1478, %v977
    %v1480 = vsel %vm210, %v1479, -inf
    %1481 = vmax.xlane.f32.xlu0 %v1480
    %v1482 = vpop.xlane.xlu0 %1481
    %v1483 = vsub.f32 %v1479, %v1482
    %v1484 = vmul.f32 %v1483, 1.442695
    %v1485 = vpow.pop %v1484
    %v1486 = vsel %vm210, %v1485, 0.0
    %1487 = vadd.xlane.f32.xlu0 %v1486
    %v1488 = vpop.xlane.xlu0 %1487
    %v1489 = vrcp.pop %v1488
    %v1490 = vmul.f32 %v1485, %v1489
    %1491 = vrot.lane.b32.xlu0 %v204, 40
    %v1492 = vpop.permute.xlu0 %1491
    %v1495 = vsel %vm210, %v1490, 0
    %1497 = vmatprep.subr.mxu0 0.0
    %1498 = vmatpush1.msra.mxu0 %v1492
    %1499 = vmatprep.subr.mxu0 0.0
    %1500 = vmatpush1.msra.mxu0 0.0
    %1501 = vmatprep.subr.mxu0 0.0
    %1502 = vmatpush1.msra.mxu0 0.0
    %1503 = vmatprep.subr.mxu0 0.0
    %1504 = vmatpush1.msra.mxu0 0.0
    %1505 = vmatprep.subr.mxu0 0.0
    %1506 = vmatpush1.msra.mxu0 0.0
    %1507 = vmatprep.subr.mxu0 0.0
    %1508 = vmatpush1.msra.mxu0 0.0
    %1509 = vmatprep.subr.mxu0 0.0
    %1510 = vmatpush1.msra.mxu0 0.0
    %1511 = vmatprep.subr.mxu0 0.0
    %1512 = vmatpush1.msra.mxu0 0.0
    %1513 = vmatprep.subr.mxu0 0.0
    %1514 = vmatpush1.msra.mxu0 0.0
    %1515 = vmatprep.subr.mxu0 0.0
    %1516 = vmatpush1.msra.mxu0 0.0
    %1517 = vmatprep.subr.mxu0 0.0
    %1518 = vmatpush1.msra.mxu0 0.0
    %1519 = vmatprep.subr.mxu0 0.0
    %1520 = vmatpush1.msra.mxu0 0.0
    %1521 = vmatprep.subr.mxu0 0.0
    %1522 = vmatpush1.msra.mxu0 0.0
    %1523 = vmatprep.subr.mxu0 0.0
    %1524 = vmatpush1.msra.mxu0 0.0
    %1525 = vmatprep.subr.mxu0 0.0
    %1526 = vmatpush1.msra.mxu0 0.0
    %1527 = vmatprep.subr.mxu0 0.0
    %1528 = vmatpush1.msra.mxu0 0.0
    %1529 = vmatprep.subr.mxu0 0.0
    %1530 = vmatpush1.msra.mxu0 0.0
    %1531 = vmatprep.subr.mxu0 0.0
    %1532 = vmatpush1.msra.mxu0 0.0
    %1533 = vmatprep.subr.mxu0 0.0
    %1534 = vmatpush1.msra.mxu0 0.0
    %1535 = vmatprep.subr.mxu0 0.0
    %1536 = vmatpush1.msra.mxu0 0.0
    %1537 = vmatprep.subr.mxu0 0.0
    %1538 = vmatpush1.msra.mxu0 0.0
    %1539 = vmatprep.subr.mxu0 0.0
    %1540 = vmatpush1.msra.mxu0 0.0
    %1541 = vmatprep.subr.mxu0 0.0
    %1542 = vmatpush1.msra.mxu0 0.0
    %1543 = vmatprep.subr.mxu0 0.0
    %1544 = vmatpush1.msra.mxu0 0.0
    %1545 = vmatprep.subr.mxu0 0.0
    %1546 = vmatpush1.msra.mxu0 0.0
    %1547 = vmatprep.subr.mxu0 0.0
    %1548 = vmatpush1.msra.mxu0 0.0
    %1549 = vmatprep.subr.mxu0 0.0
    %1550 = vmatpush1.msra.mxu0 0.0
    %1551 = vmatprep.subr.mxu0 0.0
    %1552 = vmatpush1.msra.mxu0 0.0
    %1553 = vmatprep.subr.mxu0 0.0
    %1554 = vmatpush1.msra.mxu0 0.0
    %1555 = vmatprep.subr.mxu0 0.0
    %1556 = vmatpush1.msra.mxu0 0.0
    %1557 = vmatprep.subr.mxu0 0.0
    %1558 = vmatpush1.msra.mxu0 0.0
    %1559 = vmatprep.subr.mxu0 0.0
    %1560 = vmatpush1.msra.mxu0 0.0
    %1561 = vmatprep.mubr.f32.mxu0 0.0
    %1562 = vmatmul.mubr.f32.gmra.mrb[0].mxu0 %v1495
    %v1563 = vpop.f32.mrb[0].mxu0
    %v1564 = vadd.f32 0.0, %v1563
    %v1565 = vpop.f32.mrb[0].mxu0
    %1566 = vdwg.mxu0
    %1568 = vrot.lane.b32.xlu0 %v1230, 8
    %v1569 = vpop.permute.xlu0 %1568
    %1572 = vrot.lane.b32.xlu0 %v1397, 16
    %v1573 = vpop.permute.xlu0 %1572
    %1576 = vrot.lane.b32.xlu0 %v1564, 24
    %v1577 = vpop.permute.xlu0 %1576
    %v1579 = vsel %vm210, %v1063, %v1569
    %v1580 = vsel %vm892, %v1579, %v1573
    %v1581 = vsel %vm894, %v1580, %v1577
    %v1582 = vld [vmem:[%s6] sm:$0xff]
    %v1583 = vld [vmem:[%s6 + $0x8] sm:$0xff]
    %v1584 = vld [vmem:[%s6 + $0x10] sm:$0xff]
    %v1585 = vld [vmem:[%s6 + $0x18] sm:$0xff]
    %v1586 = vld [vmem:[%s7] sm:$0x1]
    %v1587 = vlaneseq
    %v1588 = vshrl.u32 %v1587, 7
    %v1589 = vsub.s32 0, %v1588
    %v1590 = vrot.slane %v1586, %v1589
    %v1592 = vsel %vm70, %v895, 0
    %v1595 = vsel %vm70, %v1581, 0
    %1597 = vmatprep.subr.mxu0 0.0
    %1598 = vmatpush1.msra.mxu0 %v1582
    %1599 = vmatprep.subr.mxu0 0.0
    %1600 = vmatpush1.msra.mxu0 %v1583
    %1601 = vmatprep.subr.mxu0 0.0
    %1602 = vmatpush1.msra.mxu0 %v1584
    %1603 = vmatprep.subr.mxu0 0.0
    %1604 = vmatpush1.msra.mxu0 %v1585
    %1605 = vmatprep.subr.mxu0 0.0
    %1606 = vmatpush1.msra.mxu0 0.0
    %1607 = vmatprep.subr.mxu0 0.0
    %1608 = vmatpush1.msra.mxu0 0.0
    %1609 = vmatprep.subr.mxu0 0.0
    %1610 = vmatpush1.msra.mxu0 0.0
    %1611 = vmatprep.subr.mxu0 0.0
    %1612 = vmatpush1.msra.mxu0 0.0
    %1613 = vmatprep.subr.mxu0 0.0
    %1614 = vmatpush1.msra.mxu0 0.0
    %1615 = vmatprep.subr.mxu0 0.0
    %1616 = vmatpush1.msra.mxu0 0.0
    %1617 = vmatprep.subr.mxu0 0.0
    %1618 = vmatpush1.msra.mxu0 0.0
    %1619 = vmatprep.subr.mxu0 0.0
    %1620 = vmatpush1.msra.mxu0 0.0
    %1621 = vmatprep.subr.mxu0 0.0
    %1622 = vmatpush1.msra.mxu0 0.0
    %1623 = vmatprep.subr.mxu0 0.0
    %1624 = vmatpush1.msra.mxu0 0.0
    %1625 = vmatprep.subr.mxu0 0.0
    %1626 = vmatpush1.msra.mxu0 0.0
    %1627 = vmatprep.subr.mxu0 0.0
    %1628 = vmatpush1.msra.mxu0 0.0
    %1629 = vmatprep.subr.mxu0 0.0
    %1630 = vmatpush1.msra.mxu0 0.0
    %1631 = vmatprep.subr.mxu0 0.0
    %1632 = vmatpush1.msra.mxu0 0.0
    %1633 = vmatprep.subr.mxu0 0.0
    %1634 = vmatpush1.msra.mxu0 0.0
    %1635 = vmatprep.subr.mxu0 0.0
    %1636 = vmatpush1.msra.mxu0 0.0
    %1637 = vmatprep.subr.mxu0 0.0
    %1638 = vmatpush1.msra.mxu0 0.0
    %1639 = vmatprep.subr.mxu0 0.0
    %1640 = vmatpush1.msra.mxu0 0.0
    %1641 = vmatprep.subr.mxu0 0.0
    %1642 = vmatpush1.msra.mxu0 0.0
    %1643 = vmatprep.subr.mxu0 0.0
    %1644 = vmatpush1.msra.mxu0 0.0
    %1645 = vmatprep.subr.mxu0 0.0
    %1646 = vmatpush1.msra.mxu0 0.0
    %1647 = vmatprep.subr.mxu0 0.0
    %1648 = vmatpush1.msra.mxu0 0.0
    %1649 = vmatprep.subr.mxu0 0.0
    %1650 = vmatpush1.msra.mxu0 0.0
    %1651 = vmatprep.subr.mxu0 0.0
    %1652 = vmatpush1.msra.mxu0 0.0
    %1653 = vmatprep.subr.mxu0 0.0
    %1654 = vmatpush1.msra.mxu0 0.0
    %1655 = vmatprep.subr.mxu0 0.0
    %1656 = vmatpush1.msra.mxu0 0.0
    %1657 = vmatprep.subr.mxu0 0.0
    %1658 = vmatpush1.msra.mxu0 0.0
    %1659 = vmatprep.subr.mxu0 0.0
    %1660 = vmatpush1.msra.mxu0 0.0
    %1661 = vmatprep.mubr.f32.mxu0 0.0
    %1662 = vmatmul.mubr.f32.gmra.mrb[0].mxu0 %v1592
    %v1663 = vpop.f32.mrb[0].mxu0
    %v1664 = vadd.f32 %v1590, %v1663
    %v1665 = vpop.f32.mrb[0].mxu0
    %1666 = vmatprep.mubr.f32.mxu0 0.0
    %1667 = vmatmul.mubr.f32.gmra.mrb[0].mxu0 %v1595
    %v1668 = vpop.f32.mrb[0].mxu0
    %v1669 = vadd.f32 %v1590, %v1668
    %v1670 = vpop.f32.mrb[0].mxu0
    %1671 = vdwg.mxu0
    %v1672 = vadd.f32 %v1664, %v112
    %v1673 = vadd.f32 %v1669, %v113
    %v1674 = vld [vmem:[%s8] sm:$0x1]
    %v1675 = vld [vmem:[%s9] sm:$0x1]
    %v1676 = vsel %vm70, %v1672, 0.0
    %1677 = vadd.xlane.f32.xlu0 %v1676
    %v1678 = vpop.xlane.xlu0 %1677
    %v1679 = vsel %vm70, %v1673, 0.0
    %1680 = vadd.xlane.f32.xlu0 %v1679
    %v1681 = vpop.xlane.xlu0 %1680
    %v1682 = vmul.f32 %v1678, %v77
    %v1683 = vmul.f32 %v1681, %v77
    %v1684 = vsub.f32 %v1672, %v1682
    %v1685 = vsub.f32 %v1673, %v1683
    %v1686 = vmul.f32 %v1684, %v1684
    %v1687 = vmul.f32 %v1685, %v1685
    %v1688 = vsel %vm70, %v1686, 0.0
    %1689 = vadd.xlane.f32.xlu0 %v1688
    %v1690 = vpop.xlane.xlu0 %1689
    %v1691 = vsel %vm70, %v1687, 0.0
    %1692 = vadd.xlane.f32.xlu0 %v1691
    %v1693 = vpop.xlane.xlu0 %1692
    %v1694 = vmul.f32 %v1690, %v77
    %v1695 = vmul.f32 %v1693, %v77
    %v1696 = vadd.f32 %v1694, 1e-12
    %v1697 = vadd.f32 %v1695, 1e-12
    %v1698 = vrsqrt.pop %v1696
    %v1699 = vrsqrt.pop %v1697
    %v1700 = vmul.f32 %v1684, %v1698
    %v1701 = vmul.f32 %v1685, %v1699
    %v1702 = vlaneseq
    %v1703 = vshrl.u32 %v1702, 7
    %v1704 = vsub.s32 0, %v1703
    %v1705 = vrot.slane %v1674, %v1704
    %v1706 = vmul.f32 %v1700, %v1705
    %v1707 = vmul.f32 %v1701, %v1705
    %v1708 = vlaneseq
    %v1709 = vshrl.u32 %v1708, 7
    %v1710 = vsub.s32 0, %v1709
    %v1711 = vrot.slane %v1675, %v1710
    %v1712 = vadd.f32 %v1706, %v1711
    %v1713 = vadd.f32 %v1707, %v1711
    %v1714 = vld [vmem:[%s10] sm:$0xff]
    %v1715 = vld [vmem:[%s10 + $0x8] sm:$0xff]
    %v1716 = vld [vmem:[%s10 + $0x10] sm:$0xff]
    %v1717 = vld [vmem:[%s10 + $0x18] sm:$0xff]
    %v1718 = vld [vmem:[%s11] sm:$0x1]
    %v1719 = vlaneseq
    %v1720 = vshrl.u32 %v1719, 7
    %v1721 = vsub.s32 0, %v1720
    %v1722 = vrot.slane %v1718, %v1721
    %v1724 = vsel %vm70, %v1712, 0
    %v1727 = vsel %vm70, %v1713, 0
    %1729 = vmatprep.subr.mxu0 0.0
    %1730 = vmatpush1.msra.mxu0 %v1714
    %1731 = vmatprep.subr.mxu0 0.0
    %1732 = vmatpush1.msra.mxu0 %v1715
    %1733 = vmatprep.subr.mxu0 0.0
    %1734 = vmatpush1.msra.mxu0 %v1716
    %1735 = vmatprep.subr.mxu0 0.0
    %1736 = vmatpush1.msra.mxu0 %v1717
    %1737 = vmatprep.subr.mxu0 0.0
    %1738 = vmatpush1.msra.mxu0 0.0
    %1739 = vmatprep.subr.mxu0 0.0
    %1740 = vmatpush1.msra.mxu0 0.0
    %1741 = vmatprep.subr.mxu0 0.0
    %1742 = vmatpush1.msra.mxu0 0.0
    %1743 = vmatprep.subr.mxu0 0.0
    %1744 = vmatpush1.msra.mxu0 0.0
    %1745 = vmatprep.subr.mxu0 0.0
    %1746 = vmatpush1.msra.mxu0 0.0
    %1747 = vmatprep.subr.mxu0 0.0
    %1748 = vmatpush1.msra.mxu0 0.0
    %1749 = vmatprep.subr.mxu0 0.0
    %1750 = vmatpush1.msra.mxu0 0.0
    %1751 = vmatprep.subr.mxu0 0.0
    %1752 = vmatpush1.msra.mxu0 0.0
    %1753 = vmatprep.subr.mxu0 0.0
    %1754 = vmatpush1.msra.mxu0 0.0
    %1755 = vmatprep.subr.mxu0 0.0
    %1756 = vmatpush1.msra.mxu0 0.0
    %1757 = vmatprep.subr.mxu0 0.0
    %1758 = vmatpush1.msra.mxu0 0.0
    %1759 = vmatprep.subr.mxu0 0.0
    %1760 = vmatpush1.msra.mxu0 0.0
    %1761 = vmatprep.subr.mxu0 0.0
    %1762 = vmatpush1.msra.mxu0 0.0
    %1763 = vmatprep.subr.mxu0 0.0
    %1764 = vmatpush1.msra.mxu0 0.0
    %1765 = vmatprep.subr.mxu0 0.0
    %1766 = vmatpush1.msra.mxu0 0.0
    %1767 = vmatprep.subr.mxu0 0.0
    %1768 = vmatpush1.msra.mxu0 0.0
    %1769 = vmatprep.subr.mxu0 0.0
    %1770 = vmatpush1.msra.mxu0 0.0
    %1771 = vmatprep.subr.mxu0 0.0
    %1772 = vmatpush1.msra.mxu0 0.0
    %1773 = vmatprep.subr.mxu0 0.0
    %1774 = vmatpush1.msra.mxu0 0.0
    %1775 = vmatprep.subr.mxu0 0.0
    %1776 = vmatpush1.msra.mxu0 0.0
    %1777 = vmatprep.subr.mxu0 0.0
    %1778 = vmatpush1.msra.mxu0 0.0
    %1779 = vmatprep.subr.mxu0 0.0
    %1780 = vmatpush1.msra.mxu0 0.0
    %1781 = vmatprep.subr.mxu0 0.0
    %1782 = vmatpush1.msra.mxu0 0.0
    %1783 = vmatprep.subr.mxu0 0.0
    %1784 = vmatpush1.msra.mxu0 0.0
    %1785 = vmatprep.subr.mxu0 0.0
    %1786 = vmatpush1.msra.mxu0 0.0
    %1787 = vmatprep.subr.mxu0 0.0
    %1788 = vmatpush1.msra.mxu0 0.0
    %1789 = vmatprep.subr.mxu0 0.0
    %1790 = vmatpush1.msra.mxu0 0.0
    %1791 = vmatprep.subr.mxu0 0.0
    %1792 = vmatpush1.msra.mxu0 0.0
    %1793 = vmatprep.mubr.f32.mxu0 0.0
    %1794 = vmatmul.mubr.f32.gmra.mrb[0].mxu0 %v1724
    %v1795 = vpop.f32.mrb[0].mxu0
    %v1796 = vadd.f32 %v1722, %v1795
    %v1797 = vpop.f32.mrb[0].mxu0
    %1798 = vmatprep.mubr.f32.mxu0 0.0
    %1799 = vmatmul.mubr.f32.gmra.mrb[0].mxu0 %v1727
    %v1800 = vpop.f32.mrb[0].mxu0
    %v1801 = vadd.f32 %v1722, %v1800
    %v1802 = vpop.f32.mrb[0].mxu0
    %1803 = vdwg.mxu0
    %v1804 = vmul.f32 %v1796, 0.5
    %v1805 = vmul.f32 %v1801, 0.5
    %v1806 = vmul.f32 %v1796, 0.70710677
    %v1807 = vmul.f32 %v1801, 0.70710677
    %v1808 = verf.f32.pop %v1806
    %v1809 = verf.f32.pop %v1807
    %v1810 = vadd.f32 %v1808, 1.0
    %v1811 = vadd.f32 %v1809, 1.0
    %v1812 = vmul.f32 %v1804, %v1810
    %v1813 = vmul.f32 %v1805, %v1811
    %v1814 = vld [vmem:[%s12] sm:$0xff]
    %v1815 = vld [vmem:[%s12 + $0x8] sm:$0xff]
    %v1816 = vld [vmem:[%s12 + $0x10] sm:$0xff]
    %v1817 = vld [vmem:[%s12 + $0x18] sm:$0xff]
    %v1818 = vld [vmem:[%s12 + $0x20] sm:$0xff]
    %v1819 = vld [vmem:[%s12 + $0x28] sm:$0xff]
    %v1820 = vld [vmem:[%s12 + $0x30] sm:$0xff]
    %v1821 = vld [vmem:[%s12 + $0x38] sm:$0xff]
    %v1822 = vld [vmem:[%s13] sm:$0x1]
    %v1823 = vlaneseq
    %v1824 = vshrl.u32 %v1823, 7
    %v1825 = vsub.s32 0, %v1824
    %v1826 = vrot.slane %v1822, %v1825
    %vm1827 = vcmask 523264
    %v1829 = vsel %vm1827, %v1812, 0
    %v1832 = vsel %vm1827, %v1813, 0
    %1834 = vmatprep.subr.mxu0 0.0
    %1835 = vmatpush1.msra.mxu0 %v1814
    %1836 = vmatprep.subr.mxu0 0.0
    %1837 = vmatpush1.msra.mxu0 %v1815
    %1838 = vmatprep.subr.mxu0 0.0
    %1839 = vmatpush1.msra.mxu0 %v1816
    %1840 = vmatprep.subr.mxu0 0.0
    %1841 = vmatpush1.msra.mxu0 %v1817
    %1842 = vmatprep.subr.mxu0 0.0
    %1843 = vmatpush1.msra.mxu0 %v1818
    %1844 = vmatprep.subr.mxu0 0.0
    %1845 = vmatpush1.msra.mxu0 %v1819
    %1846 = vmatprep.subr.mxu0 0.0
    %1847 = vmatpush1.msra.mxu0 %v1820
    %1848 = vmatprep.subr.mxu0 0.0
    %1849 = vmatpush1.msra.mxu0 %v1821
    %1850 = vmatprep.subr.mxu0 0.0
    %1851 = vmatpush1.msra.mxu0 0.0
    %1852 = vmatprep.subr.mxu0 0.0
    %1853 = vmatpush1.msra.mxu0 0.0
    %1854 = vmatprep.subr.mxu0 0.0
    %1855 = vmatpush1.msra.mxu0 0.0
    %1856 = vmatprep.subr.mxu0 0.0
    %1857 = vmatpush1.msra.mxu0 0.0
    %1858 = vmatprep.subr.mxu0 0.0
    %1859 = vmatpush1.msra.mxu0 0.0
    %1860 = vmatprep.subr.mxu0 0.0
    %1861 = vmatpush1.msra.mxu0 0.0
    %1862 = vmatprep.subr.mxu0 0.0
    %1863 = vmatpush1.msra.mxu0 0.0
    %1864 = vmatprep.subr.mxu0 0.0
    %1865 = vmatpush1.msra.mxu0 0.0
    %1866 = vmatprep.subr.mxu0 0.0
    %1867 = vmatpush1.msra.mxu0 0.0
    %1868 = vmatprep.subr.mxu0 0.0
    %1869 = vmatpush1.msra.mxu0 0.0
    %1870 = vmatprep.subr.mxu0 0.0
    %1871 = vmatpush1.msra.mxu0 0.0
    %1872 = vmatprep.subr.mxu0 0.0
    %1873 = vmatpush1.msra.mxu0 0.0
    %1874 = vmatprep.subr.mxu0 0.0
    %1875 = vmatpush1.msra.mxu0 0.0
    %1876 = vmatprep.subr.mxu0 0.0
    %1877 = vmatpush1.msra.mxu0 0.0
    %1878 = vmatprep.subr.mxu0 0.0
    %1879 = vmatpush1.msra.mxu0 0.0
    %1880 = vmatprep.subr.mxu0 0.0
    %1881 = vmatpush1.msra.mxu0 0.0
    %1882 = vmatprep.subr.mxu0 0.0
    %1883 = vmatpush1.msra.mxu0 0.0
    %1884 = vmatprep.subr.mxu0 0.0
    %1885 = vmatpush1.msra.mxu0 0.0
    %1886 = vmatprep.subr.mxu0 0.0
    %1887 = vmatpush1.msra.mxu0 0.0
    %1888 = vmatprep.subr.mxu0 0.0
    %1889 = vmatpush1.msra.mxu0 0.0
    %1890 = vmatprep.subr.mxu0 0.0
    %1891 = vmatpush1.msra.mxu0 0.0
    %1892 = vmatprep.subr.mxu0 0.0
    %1893 = vmatpush1.msra.mxu0 0.0
    %1894 = vmatprep.subr.mxu0 0.0
    %1895 = vmatpush1.msra.mxu0 0.0
    %1896 = vmatprep.subr.mxu0 0.0
    %1897 = vmatpush1.msra.mxu0 0.0
    %1898 = vmatprep.mubr.f32.mxu0 0.0
    %1899 = vmatmul.mubr.f32.gmra.mrb[0].mxu0 %v1829
    %v1900 = vpop.f32.mrb[0].mxu0
    %v1901 = vadd.f32 %v1826, %v1900
    %v1902 = vpop.f32.mrb[0].mxu0
    %1903 = vmatprep.mubr.f32.mxu0 0.0
    %1904 = vmatmul.mubr.f32.gmra.mrb[0].mxu0 %v1832
    %v1905 = vpop.f32.mrb[0].mxu0
    %v1906 = vadd.f32 %v1826, %v1905
    %v1907 = vpop.f32.mrb[0].mxu0
    %1908 = vdwg.mxu0
    %v1909 = vadd.f32 %v1901, %v1712
    %v1910 = vadd.f32 %v1906, %v1713
    %v1911 = vld [vmem:[%s14] sm:$0x1]
    %v1912 = vld [vmem:[%s15] sm:$0x1]
    %v1913 = vsel %vm70, %v1909, 0.0
    %1914 = vadd.xlane.f32.xlu0 %v1913
    %v1915 = vpop.xlane.xlu0 %1914
    %v1916 = vsel %vm70, %v1910, 0.0
    %1917 = vadd.xlane.f32.xlu0 %v1916
    %v1918 = vpop.xlane.xlu0 %1917
    %v1919 = vmul.f32 %v1915, %v77
    %v1920 = vmul.f32 %v1918, %v77
    %v1921 = vsub.f32 %v1909, %v1919
    %v1922 = vsub.f32 %v1910, %v1920
    %v1923 = vmul.f32 %v1921, %v1921
    %v1924 = vmul.f32 %v1922, %v1922
    %v1925 = vsel %vm70, %v1923, 0.0
    %1926 = vadd.xlane.f32.xlu0 %v1925
    %v1927 = vpop.xlane.xlu0 %1926
    %v1928 = vsel %vm70, %v1924, 0.0
    %1929 = vadd.xlane.f32.xlu0 %v1928
    %v1930 = vpop.xlane.xlu0 %1929
    %v1931 = vmul.f32 %v1927, %v77
    %v1932 = vmul.f32 %v1930, %v77
    %v1933 = vadd.f32 %v1931, 1e-12
    %v1934 = vadd.f32 %v1932, 1e-12
    %v1935 = vrsqrt.pop %v1933
    %v1936 = vrsqrt.pop %v1934
    %v1937 = vmul.f32 %v1921, %v1935
    %v1938 = vmul.f32 %v1922, %v1936
    %v1939 = vlaneseq
    %v1940 = vshrl.u32 %v1939, 7
    %v1941 = vsub.s32 0, %v1940
    %v1942 = vrot.slane %v1911, %v1941
    %v1943 = vmul.f32 %v1937, %v1942
    %v1944 = vmul.f32 %v1938, %v1942
    %v1945 = vlaneseq
    %v1946 = vshrl.u32 %v1945, 7
    %v1947 = vsub.s32 0, %v1946
    %v1948 = vrot.slane %v1912, %v1947
    %v1949 = vadd.f32 %v1943, %v1948
    %v1950 = vadd.f32 %v1944, %v1948
    %s1951 = scalar_lea.vmem %s4, 32
    %v1952 = vld [vmem:[%s1951] sm:$0xff]
    %v1953 = vld [vmem:[%s1951 + $0x8] sm:$0xff]
    %v1954 = vld [vmem:[%s1951 + $0x10] sm:$0xff]
    %v1955 = vld [vmem:[%s1951 + $0x18] sm:$0xff]
    %v1956 = vld [vmem:[%s5 + $0x1] sm:$0x1]
    %v1957 = vlaneseq
    %v1958 = vshrl.u32 %v1957, 7
    %v1959 = vsub.s32 0, %v1958
    %v1960 = vrot.slane %v1956, %v1959
    %v1962 = vsel %vm70, %v1949, 0
    %v1965 = vsel %vm70, %v1950, 0
    %1967 = vmatprep.subr.mxu0 0.0
    %1968 = vmatpush1.msra.mxu0 %v1952
    %1969 = vmatprep.subr.mxu0 0.0
    %1970 = vmatpush1.msra.mxu0 %v1953
    %1971 = vmatprep.subr.mxu0 0.0
    %1972 = vmatpush1.msra.mxu0 %v1954
    %1973 = vmatprep.subr.mxu0 0.0
    %1974 = vmatpush1.msra.mxu0 %v1955
    %1975 = vmatprep.subr.mxu0 0.0
    %1976 = vmatpush1.msra.mxu0 0.0
    %1977 = vmatprep.subr.mxu0 0.0
    %1978 = vmatpush1.msra.mxu0 0.0
    %1979 = vmatprep.subr.mxu0 0.0
    %1980 = vmatpush1.msra.mxu0 0.0
    %1981 = vmatprep.subr.mxu0 0.0
    %1982 = vmatpush1.msra.mxu0 0.0
    %1983 = vmatprep.subr.mxu0 0.0
    %1984 = vmatpush1.msra.mxu0 0.0
    %1985 = vmatprep.subr.mxu0 0.0
    %1986 = vmatpush1.msra.mxu0 0.0
    %1987 = vmatprep.subr.mxu0 0.0
    %1988 = vmatpush1.msra.mxu0 0.0
    %1989 = vmatprep.subr.mxu0 0.0
    %1990 = vmatpush1.msra.mxu0 0.0
    %1991 = vmatprep.subr.mxu0 0.0
    %1992 = vmatpush1.msra.mxu0 0.0
    %1993 = vmatprep.subr.mxu0 0.0
    %1994 = vmatpush1.msra.mxu0 0.0
    %1995 = vmatprep.subr.mxu0 0.0
    %1996 = vmatpush1.msra.mxu0 0.0
    %1997 = vmatprep.subr.mxu0 0.0
    %1998 = vmatpush1.msra.mxu0 0.0
    %1999 = vmatprep.subr.mxu0 0.0
    %2000 = vmatpush1.msra.mxu0 0.0
    %2001 = vmatprep.subr.mxu0 0.0
    %2002 = vmatpush1.msra.mxu0 0.0
    %2003 = vmatprep.subr.mxu0 0.0
    %2004 = vmatpush1.msra.mxu0 0.0
    %2005 = vmatprep.subr.mxu0 0.0
    %2006 = vmatpush1.msra.mxu0 0.0
    %2007 = vmatprep.subr.mxu0 0.0
    %2008 = vmatpush1.msra.mxu0 0.0
    %2009 = vmatprep.subr.mxu0 0.0
    %2010 = vmatpush1.msra.mxu0 0.0
    %2011 = vmatprep.subr.mxu0 0.0
    %2012 = vmatpush1.msra.mxu0 0.0
    %2013 = vmatprep.subr.mxu0 0.0
    %2014 = vmatpush1.msra.mxu0 0.0
    %2015 = vmatprep.subr.mxu0 0.0
    %2016 = vmatpush1.msra.mxu0 0.0
    %2017 = vmatprep.subr.mxu0 0.0
    %2018 = vmatpush1.msra.mxu0 0.0
    %2019 = vmatprep.subr.mxu0 0.0
    %2020 = vmatpush1.msra.mxu0 0.0
    %2021 = vmatprep.subr.mxu0 0.0
    %2022 = vmatpush1.msra.mxu0 0.0
    %2023 = vmatprep.subr.mxu0 0.0
    %2024 = vmatpush1.msra.mxu0 0.0
    %2025 = vmatprep.subr.mxu0 0.0
    %2026 = vmatpush1.msra.mxu0 0.0
    %2027 = vmatprep.subr.mxu0 0.0
    %2028 = vmatpush1.msra.mxu0 0.0
    %2029 = vmatprep.subr.mxu0 0.0
    %2030 = vmatpush1.msra.mxu0 0.0
    %2031 = vmatprep.mubr.f32.mxu0 0.0
    %2032 = vmatmul.mubr.f32.gmra.mrb[0].mxu0 %v1962
    %v2033 = vpop.f32.mrb[0].mxu0
    %v2034 = vadd.f32 %v1960, %v2033
    %v2035 = vpop.f32.mrb[0].mxu0
    %2036 = vmatprep.mubr.f32.mxu0 0.0
    %2037 = vmatmul.mubr.f32.gmra.mrb[0].mxu0 %v1965
    %v2038 = vpop.f32.mrb[0].mxu0
    %v2039 = vadd.f32 %v1960, %v2038
    %v2040 = vpop.f32.mrb[0].mxu0
    %2041 = vdwg.mxu0
    %2043 = vrot.lane.b32.xlu0 %v2034, 96
    %v2044 = vpop.permute.xlu0 %2043
    %v2045 = vsel %vm210, %v2034, 0
    %v2047 = vsel %vm210, %v2044, 0
    %2049 = vmatprep.subr.mxu0 0.0
    %2050 = vmatpush1.xpose.msra.mxu0 %v2047
    %2051 = vmatprep.subr.mxu0 0.0
    %2052 = vmatpush1.xpose.msra.mxu0 0.0
    %2053 = vmatprep.subr.mxu0 0.0
    %2054 = vmatpush1.xpose.msra.mxu0 0.0
    %2055 = vmatprep.subr.mxu0 0.0
    %2056 = vmatpush1.xpose.msra.mxu0 0.0
    %2057 = vmatprep.subr.mxu0 0.0
    %2058 = vmatpush1.xpose.msra.mxu0 0.0
    %2059 = vmatprep.subr.mxu0 0.0
    %2060 = vmatpush1.xpose.msra.mxu0 0.0
    %2061 = vmatprep.subr.mxu0 0.0
    %2062 = vmatpush1.xpose.msra.mxu0 0.0
    %2063 = vmatprep.subr.mxu0 0.0
    %2064 = vmatpush1.xpose.msra.mxu0 0.0
    %2065 = vmatprep.subr.mxu0 0.0
    %2066 = vmatpush1.xpose.msra.mxu0 0.0
    %2067 = vmatprep.subr.mxu0 0.0
    %2068 = vmatpush1.xpose.msra.mxu0 0.0
    %2069 = vmatprep.subr.mxu0 0.0
    %2070 = vmatpush1.xpose.msra.mxu0 0.0
    %2071 = vmatprep.subr.mxu0 0.0
    %2072 = vmatpush1.xpose.msra.mxu0 0.0
    %2073 = vmatprep.subr.mxu0 0.0
    %2074 = vmatpush1.xpose.msra.mxu0 0.0
    %2075 = vmatprep.subr.mxu0 0.0
    %2076 = vmatpush1.xpose.msra.mxu0 0.0
    %2077 = vmatprep.subr.mxu0 0.0
    %2078 = vmatpush1.xpose.msra.mxu0 0.0
    %2079 = vmatprep.subr.mxu0 0.0
    %2080 = vmatpush1.xpose.msra.mxu0 0.0
    %2081 = vmatprep.subr.mxu0 0.0
    %2082 = vmatpush1.xpose.msra.mxu0 0.0
    %2083 = vmatprep.subr.mxu0 0.0
    %2084 = vmatpush1.xpose.msra.mxu0 0.0
    %2085 = vmatprep.subr.mxu0 0.0
    %2086 = vmatpush1.xpose.msra.mxu0 0.0
    %2087 = vmatprep.subr.mxu0 0.0
    %2088 = vmatpush1.xpose.msra.mxu0 0.0
    %2089 = vmatprep.subr.mxu0 0.0
    %2090 = vmatpush1.xpose.msra.mxu0 0.0
    %2091 = vmatprep.subr.mxu0 0.0
    %2092 = vmatpush1.xpose.msra.mxu0 0.0
    %2093 = vmatprep.subr.mxu0 0.0
    %2094 = vmatpush1.xpose.msra.mxu0 0.0
    %2095 = vmatprep.subr.mxu0 0.0
    %2096 = vmatpush1.xpose.msra.mxu0 0.0
    %2097 = vmatprep.subr.mxu0 0.0
    %2098 = vmatpush1.xpose.msra.mxu0 0.0
    %2099 = vmatprep.subr.mxu0 0.0
    %2100 = vmatpush1.xpose.msra.mxu0 0.0
    %2101 = vmatprep.subr.mxu0 0.0
    %2102 = vmatpush1.xpose.msra.mxu0 0.0
    %2103 = vmatprep.subr.mxu0 0.0
    %2104 = vmatpush1.xpose.msra.mxu0 0.0
    %2105 = vmatprep.subr.mxu0 0.0
    %2106 = vmatpush1.xpose.msra.mxu0 0.0
    %2107 = vmatprep.subr.mxu0 0.0
    %2108 = vmatpush1.xpose.msra.mxu0 0.0
    %2109 = vmatprep.subr.mxu0 0.0
    %2110 = vmatpush1.xpose.msra.mxu0 0.0
    %2111 = vmatprep.subr.mxu0 0.0
    %2112 = vmatpush1.xpose.msra.mxu0 0.0
    %2113 = vmatprep.mubr.f32.mxu0 0.0
    %2114 = vmatmul.mubr.f32.gmra.mrb[0].mxu0 %v2045
    %v2115 = vpop.f32.mrb[0].mxu0
    %v2116 = vadd.f32 0.0, %v2115
    %v2117 = vpop.f32.mrb[0].mxu0
    %2118 = vdwg.mxu0
    %v2119 = vmul.f32 %v2116, 0.35355338
    %v2120 = vadd.f32 %v2119, %v289
    %v2121 = vsel %vm210, %v2120, -inf
    %2122 = vmax.xlane.f32.xlu0 %v2121
    %v2123 = vpop.xlane.xlu0 %2122
    %v2124 = vsub.f32 %v2120, %v2123
    %v2125 = vmul.f32 %v2124, 1.442695
    %v2126 = vpow.pop %v2125
    %v2127 = vsel %vm210, %v2126, 0.0
    %2128 = vadd.xlane.f32.xlu0 %v2127
    %v2129 = vpop.xlane.xlu0 %2128
    %v2130 = vrcp.pop %v2129
    %v2131 = vmul.f32 %v2126, %v2130
    %2132 = vrot.lane.b32.xlu0 %v2034, 64
    %v2133 = vpop.permute.xlu0 %2132
    %v2136 = vsel %vm210, %v2131, 0
    %2138 = vmatprep.subr.mxu0 0.0
    %2139 = vmatpush1.msra.mxu0 %v2133
    %2140 = vmatprep.subr.mxu0 0.0
    %2141 = vmatpush1.msra.mxu0 0.0
    %2142 = vmatprep.subr.mxu0 0.0
    %2143 = vmatpush1.msra.mxu0 0.0
    %2144 = vmatprep.subr.mxu0 0.0
    %2145 = vmatpush1.msra.mxu0 0.0
    %2146 = vmatprep.subr.mxu0 0.0
    %2147 = vmatpush1.msra.mxu0 0.0
    %2148 = vmatprep.subr.mxu0 0.0
    %2149 = vmatpush1.msra.mxu0 0.0
    %2150 = vmatprep.subr.mxu0 0.0
    %2151 = vmatpush1.msra.mxu0 0.0
    %2152 = vmatprep.subr.mxu0 0.0
    %2153 = vmatpush1.msra.mxu0 0.0
    %2154 = vmatprep.subr.mxu0 0.0
    %2155 = vmatpush1.msra.mxu0 0.0
    %2156 = vmatprep.subr.mxu0 0.0
    %2157 = vmatpush1.msra.mxu0 0.0
    %2158 = vmatprep.subr.mxu0 0.0
    %2159 = vmatpush1.msra.mxu0 0.0
    %2160 = vmatprep.subr.mxu0 0.0
    %2161 = vmatpush1.msra.mxu0 0.0
    %2162 = vmatprep.subr.mxu0 0.0
    %2163 = vmatpush1.msra.mxu0 0.0
    %2164 = vmatprep.subr.mxu0 0.0
    %2165 = vmatpush1.msra.mxu0 0.0
    %2166 = vmatprep.subr.mxu0 0.0
    %2167 = vmatpush1.msra.mxu0 0.0
    %2168 = vmatprep.subr.mxu0 0.0
    %2169 = vmatpush1.msra.mxu0 0.0
    %2170 = vmatprep.subr.mxu0 0.0
    %2171 = vmatpush1.msra.mxu0 0.0
    %2172 = vmatprep.subr.mxu0 0.0
    %2173 = vmatpush1.msra.mxu0 0.0
    %2174 = vmatprep.subr.mxu0 0.0
    %2175 = vmatpush1.msra.mxu0 0.0
    %2176 = vmatprep.subr.mxu0 0.0
    %2177 = vmatpush1.msra.mxu0 0.0
    %2178 = vmatprep.subr.mxu0 0.0
    %2179 = vmatpush1.msra.mxu0 0.0
    %2180 = vmatprep.subr.mxu0 0.0
    %2181 = vmatpush1.msra.mxu0 0.0
    %2182 = vmatprep.subr.mxu0 0.0
    %2183 = vmatpush1.msra.mxu0 0.0
    %2184 = vmatprep.subr.mxu0 0.0
    %2185 = vmatpush1.msra.mxu0 0.0
    %2186 = vmatprep.subr.mxu0 0.0
    %2187 = vmatpush1.msra.mxu0 0.0
    %2188 = vmatprep.subr.mxu0 0.0
    %2189 = vmatpush1.msra.mxu0 0.0
    %2190 = vmatprep.subr.mxu0 0.0
    %2191 = vmatpush1.msra.mxu0 0.0
    %2192 = vmatprep.subr.mxu0 0.0
    %2193 = vmatpush1.msra.mxu0 0.0
    %2194 = vmatprep.subr.mxu0 0.0
    %2195 = vmatpush1.msra.mxu0 0.0
    %2196 = vmatprep.subr.mxu0 0.0
    %2197 = vmatpush1.msra.mxu0 0.0
    %2198 = vmatprep.subr.mxu0 0.0
    %2199 = vmatpush1.msra.mxu0 0.0
    %2200 = vmatprep.subr.mxu0 0.0
    %2201 = vmatpush1.msra.mxu0 0.0
    %2202 = vmatprep.mubr.f32.mxu0 0.0
    %2203 = vmatmul.mubr.f32.gmra.mrb[0].mxu0 %v2136
    %v2204 = vpop.f32.mrb[0].mxu0
    %v2205 = vadd.f32 0.0, %v2204
    %v2206 = vpop.f32.mrb[0].mxu0
    %2207 = vdwg.mxu0
    %2208 = vrot.lane.b32.xlu0 %v2034, 120
    %v2209 = vpop.permute.xlu0 %2208
    %2210 = vrot.lane.b32.xlu0 %v2034, 88
    %v2211 = vpop.permute.xlu0 %2210
    %v2212 = vsel %vm210, %v2209, 0
    %v2214 = vsel %vm210, %v2211, 0
    %2216 = vmatprep.subr.mxu0 0.0
    %2217 = vmatpush1.xpose.msra.mxu0 %v2214
    %2218 = vmatprep.subr.mxu0 0.0
    %2219 = vmatpush1.xpose.msra.mxu0 0.0
    %2220 = vmatprep.subr.mxu0 0.0
    %2221 = vmatpush1.xpose.msra.mxu0 0.0
    %2222 = vmatprep.subr.mxu0 0.0
    %2223 = vmatpush1.xpose.msra.mxu0 0.0
    %2224 = vmatprep.subr.mxu0 0.0
    %2225 = vmatpush1.xpose.msra.mxu0 0.0
    %2226 = vmatprep.subr.mxu0 0.0
    %2227 = vmatpush1.xpose.msra.mxu0 0.0
    %2228 = vmatprep.subr.mxu0 0.0
    %2229 = vmatpush1.xpose.msra.mxu0 0.0
    %2230 = vmatprep.subr.mxu0 0.0
    %2231 = vmatpush1.xpose.msra.mxu0 0.0
    %2232 = vmatprep.subr.mxu0 0.0
    %2233 = vmatpush1.xpose.msra.mxu0 0.0
    %2234 = vmatprep.subr.mxu0 0.0
    %2235 = vmatpush1.xpose.msra.mxu0 0.0
    %2236 = vmatprep.subr.mxu0 0.0
    %2237 = vmatpush1.xpose.msra.mxu0 0.0
    %2238 = vmatprep.subr.mxu0 0.0
    %2239 = vmatpush1.xpose.msra.mxu0 0.0
    %2240 = vmatprep.subr.mxu0 0.0
    %2241 = vmatpush1.xpose.msra.mxu0 0.0
    %2242 = vmatprep.subr.mxu0 0.0
    %2243 = vmatpush1.xpose.msra.mxu0 0.0
    %2244 = vmatprep.subr.mxu0 0.0
    %2245 = vmatpush1.xpose.msra.mxu0 0.0
    %2246 = vmatprep.subr.mxu0 0.0
    %2247 = vmatpush1.xpose.msra.mxu0 0.0
    %2248 = vmatprep.subr.mxu0 0.0
    %2249 = vmatpush1.xpose.msra.mxu0 0.0
    %2250 = vmatprep.subr.mxu0 0.0
    %2251 = vmatpush1.xpose.msra.mxu0 0.0
    %2252 = vmatprep.subr.mxu0 0.0
    %2253 = vmatpush1.xpose.msra.mxu0 0.0
    %2254 = vmatprep.subr.mxu0 0.0
    %2255 = vmatpush1.xpose.msra.mxu0 0.0
    %2256 = vmatprep.subr.mxu0 0.0
    %2257 = vmatpush1.xpose.msra.mxu0 0.0
    %2258 = vmatprep.subr.mxu0 0.0
    %2259 = vmatpush1.xpose.msra.mxu0 0.0
    %2260 = vmatprep.subr.mxu0 0.0
    %2261 = vmatpush1.xpose.msra.mxu0 0.0
    %2262 = vmatprep.subr.mxu0 0.0
    %2263 = vmatpush1.xpose.msra.mxu0 0.0
    %2264 = vmatprep.subr.mxu0 0.0
    %2265 = vmatpush1.xpose.msra.mxu0 0.0
    %2266 = vmatprep.subr.mxu0 0.0
    %2267 = vmatpush1.xpose.msra.mxu0 0.0
    %2268 = vmatprep.subr.mxu0 0.0
    %2269 = vmatpush1.xpose.msra.mxu0 0.0
    %2270 = vmatprep.subr.mxu0 0.0
    %2271 = vmatpush1.xpose.msra.mxu0 0.0
    %2272 = vmatprep.subr.mxu0 0.0
    %2273 = vmatpush1.xpose.msra.mxu0 0.0
    %2274 = vmatprep.subr.mxu0 0.0
    %2275 = vmatpush1.xpose.msra.mxu0 0.0
    %2276 = vmatprep.subr.mxu0 0.0
    %2277 = vmatpush1.xpose.msra.mxu0 0.0
    %2278 = vmatprep.subr.mxu0 0.0
    %2279 = vmatpush1.xpose.msra.mxu0 0.0
    %2280 = vmatprep.mubr.f32.mxu0 0.0
    %2281 = vmatmul.mubr.f32.gmra.mrb[0].mxu0 %v2212
    %v2282 = vpop.f32.mrb[0].mxu0
    %v2283 = vadd.f32 0.0, %v2282
    %v2284 = vpop.f32.mrb[0].mxu0
    %2285 = vdwg.mxu0
    %v2286 = vmul.f32 %v2283, 0.35355338
    %v2287 = vadd.f32 %v2286, %v289
    %v2288 = vsel %vm210, %v2287, -inf
    %2289 = vmax.xlane.f32.xlu0 %v2288
    %v2290 = vpop.xlane.xlu0 %2289
    %v2291 = vsub.f32 %v2287, %v2290
    %v2292 = vmul.f32 %v2291, 1.442695
    %v2293 = vpow.pop %v2292
    %v2294 = vsel %vm210, %v2293, 0.0
    %2295 = vadd.xlane.f32.xlu0 %v2294
    %v2296 = vpop.xlane.xlu0 %2295
    %v2297 = vrcp.pop %v2296
    %v2298 = vmul.f32 %v2293, %v2297
    %2299 = vrot.lane.b32.xlu0 %v2034, 56
    %v2300 = vpop.permute.xlu0 %2299
    %v2303 = vsel %vm210, %v2298, 0
    %2305 = vmatprep.subr.mxu0 0.0
    %2306 = vmatpush1.msra.mxu0 %v2300
    %2307 = vmatprep.subr.mxu0 0.0
    %2308 = vmatpush1.msra.mxu0 0.0
    %2309 = vmatprep.subr.mxu0 0.0
    %2310 = vmatpush1.msra.mxu0 0.0
    %2311 = vmatprep.subr.mxu0 0.0
    %2312 = vmatpush1.msra.mxu0 0.0
    %2313 = vmatprep.subr.mxu0 0.0
    %2314 = vmatpush1.msra.mxu0 0.0
    %2315 = vmatprep.subr.mxu0 0.0
    %2316 = vmatpush1.msra.mxu0 0.0
    %2317 = vmatprep.subr.mxu0 0.0
    %2318 = vmatpush1.msra.mxu0 0.0
    %2319 = vmatprep.subr.mxu0 0.0
    %2320 = vmatpush1.msra.mxu0 0.0
    %2321 = vmatprep.subr.mxu0 0.0
    %2322 = vmatpush1.msra.mxu0 0.0
    %2323 = vmatprep.subr.mxu0 0.0
    %2324 = vmatpush1.msra.mxu0 0.0
    %2325 = vmatprep.subr.mxu0 0.0
    %2326 = vmatpush1.msra.mxu0 0.0
    %2327 = vmatprep.subr.mxu0 0.0
    %2328 = vmatpush1.msra.mxu0 0.0
    %2329 = vmatprep.subr.mxu0 0.0
    %2330 = vmatpush1.msra.mxu0 0.0
    %2331 = vmatprep.subr.mxu0 0.0
    %2332 = vmatpush1.msra.mxu0 0.0
    %2333 = vmatprep.subr.mxu0 0.0
    %2334 = vmatpush1.msra.mxu0 0.0
    %2335 = vmatprep.subr.mxu0 0.0
    %2336 = vmatpush1.msra.mxu0 0.0
    %2337 = vmatprep.subr.mxu0 0.0
    %2338 = vmatpush1.msra.mxu0 0.0
    %2339 = vmatprep.subr.mxu0 0.0
    %2340 = vmatpush1.msra.mxu0 0.0
    %2341 = vmatprep.subr.mxu0 0.0
    %2342 = vmatpush1.msra.mxu0 0.0
    %2343 = vmatprep.subr.mxu0 0.0
    %2344 = vmatpush1.msra.mxu0 0.0
    %2345 = vmatprep.subr.mxu0 0.0
    %2346 = vmatpush1.msra.mxu0 0.0
    %2347 = vmatprep.subr.mxu0 0.0
    %2348 = vmatpush1.msra.mxu0 0.0
    %2349 = vmatprep.subr.mxu0 0.0
    %2350 = vmatpush1.msra.mxu0 0.0
    %2351 = vmatprep.subr.mxu0 0.0
    %2352 = vmatpush1.msra.mxu0 0.0
    %2353 = vmatprep.subr.mxu0 0.0
    %2354 = vmatpush1.msra.mxu0 0.0
    %2355 = vmatprep.subr.mxu0 0.0
    %2356 = vmatpush1.msra.mxu0 0.0
    %2357 = vmatprep.subr.mxu0 0.0
    %2358 = vmatpush1.msra.mxu0 0.0
    %2359 = vmatprep.subr.mxu0 0.0
    %2360 = vmatpush1.msra.mxu0 0.0
    %2361 = vmatprep.subr.mxu0 0.0
    %2362 = vmatpush1.msra.mxu0 0.0
    %2363 = vmatprep.subr.mxu0 0.0
    %2364 = vmatpush1.msra.mxu0 0.0
    %2365 = vmatprep.subr.mxu0 0.0
    %2366 = vmatpush1.msra.mxu0 0.0
    %2367 = vmatprep.subr.mxu0 0.0
    %2368 = vmatpush1.msra.mxu0 0.0
    %2369 = vmatprep.mubr.f32.mxu0 0.0
    %2370 = vmatmul.mubr.f32.gmra.mrb[0].mxu0 %v2303
    %v2371 = vpop.f32.mrb[0].mxu0
    %v2372 = vadd.f32 0.0, %v2371
    %v2373 = vpop.f32.mrb[0].mxu0
    %2374 = vdwg.mxu0
    %2375 = vrot.lane.b32.xlu0 %v2034, 112
    %v2376 = vpop.permute.xlu0 %2375
    %2377 = vrot.lane.b32.xlu0 %v2034, 80
    %v2378 = vpop.permute.xlu0 %2377
    %v2379 = vsel %vm210, %v2376, 0
    %v2381 = vsel %vm210, %v2378, 0
    %2383 = vmatprep.subr.mxu0 0.0
    %2384 = vmatpush1.xpose.msra.mxu0 %v2381
    %2385 = vmatprep.subr.mxu0 0.0
    %2386 = vmatpush1.xpose.msra.mxu0 0.0
    %2387 = vmatprep.subr.mxu0 0.0
    %2388 = vmatpush1.xpose.msra.mxu0 0.0
    %2389 = vmatprep.subr.mxu0 0.0
    %2390 = vmatpush1.xpose.msra.mxu0 0.0
    %2391 = vmatprep.subr.mxu0 0.0
    %2392 = vmatpush1.xpose.msra.mxu0 0.0
    %2393 = vmatprep.subr.mxu0 0.0
    %2394 = vmatpush1.xpose.msra.mxu0 0.0
    %2395 = vmatprep.subr.mxu0 0.0
    %2396 = vmatpush1.xpose.msra.mxu0 0.0
    %2397 = vmatprep.subr.mxu0 0.0
    %2398 = vmatpush1.xpose.msra.mxu0 0.0
    %2399 = vmatprep.subr.mxu0 0.0
    %2400 = vmatpush1.xpose.msra.mxu0 0.0
    %2401 = vmatprep.subr.mxu0 0.0
    %2402 = vmatpush1.xpose.msra.mxu0 0.0
    %2403 = vmatprep.subr.mxu0 0.0
    %2404 = vmatpush1.xpose.msra.mxu0 0.0
    %2405 = vmatprep.subr.mxu0 0.0
    %2406 = vmatpush1.xpose.msra.mxu0 0.0
    %2407 = vmatprep.subr.mxu0 0.0
    %2408 = vmatpush1.xpose.msra.mxu0 0.0
    %2409 = vmatprep.subr.mxu0 0.0
    %2410 = vmatpush1.xpose.msra.mxu0 0.0
    %2411 = vmatprep.subr.mxu0 0.0
    %2412 = vmatpush1.xpose.msra.mxu0 0.0
    %2413 = vmatprep.subr.mxu0 0.0
    %2414 = vmatpush1.xpose.msra.mxu0 0.0
    %2415 = vmatprep.subr.mxu0 0.0
    %2416 = vmatpush1.xpose.msra.mxu0 0.0
    %2417 = vmatprep.subr.mxu0 0.0
    %2418 = vmatpush1.xpose.msra.mxu0 0.0
    %2419 = vmatprep.subr.mxu0 0.0
    %2420 = vmatpush1.xpose.msra.mxu0 0.0
    %2421 = vmatprep.subr.mxu0 0.0
    %2422 = vmatpush1.xpose.msra.mxu0 0.0
    %2423 = vmatprep.subr.mxu0 0.0
    %2424 = vmatpush1.xpose.msra.mxu0 0.0
    %2425 = vmatprep.subr.mxu0 0.0
    %2426 = vmatpush1.xpose.msra.mxu0 0.0
    %2427 = vmatprep.subr.mxu0 0.0
    %2428 = vmatpush1.xpose.msra.mxu0 0.0
    %2429 = vmatprep.subr.mxu0 0.0
    %2430 = vmatpush1.xpose.msra.mxu0 0.0
    %2431 = vmatprep.subr.mxu0 0.0
    %2432 = vmatpush1.xpose.msra.mxu0 0.0
    %2433 = vmatprep.subr.mxu0 0.0
    %2434 = vmatpush1.xpose.msra.mxu0 0.0
    %2435 = vmatprep.subr.mxu0 0.0
    %2436 = vmatpush1.xpose.msra.mxu0 0.0
    %2437 = vmatprep.subr.mxu0 0.0
    %2438 = vmatpush1.xpose.msra.mxu0 0.0
    %2439 = vmatprep.subr.mxu0 0.0
    %2440 = vmatpush1.xpose.msra.mxu0 0.0
    %2441 = vmatprep.subr.mxu0 0.0
    %2442 = vmatpush1.xpose.msra.mxu0 0.0
    %2443 = vmatprep.subr.mxu0 0.0
    %2444 = vmatpush1.xpose.msra.mxu0 0.0
    %2445 = vmatprep.subr.mxu0 0.0
    %2446 = vmatpush1.xpose.msra.mxu0 0.0
    %2447 = vmatprep.mubr.f32.mxu0 0.0
    %2448 = vmatmul.mubr.f32.gmra.mrb[0].mxu0 %v2379
    %v2449 = vpop.f32.mrb[0].mxu0
    %v2450 = vadd.f32 0.0, %v2449
    %v2451 = vpop.f32.mrb[0].mxu0
    %2452 = vdwg.mxu0
    %v2453 = vmul.f32 %v2450, 0.35355338
    %v2454 = vadd.f32 %v2453, %v289
    %v2455 = vsel %vm210, %v2454, -inf
    %2456 = vmax.xlane.f32.xlu0 %v2455
    %v2457 = vpop.xlane.xlu0 %2456
    %v2458 = vsub.f32 %v2454, %v2457
    %v2459 = vmul.f32 %v2458, 1.442695
    %v2460 = vpow.pop %v2459
    %v2461 = vsel %vm210, %v2460, 0.0
    %2462 = vadd.xlane.f32.xlu0 %v2461
    %v2463 = vpop.xlane.xlu0 %2462
    %v2464 = vrcp.pop %v2463
    %v2465 = vmul.f32 %v2460, %v2464
    %2466 = vrot.lane.b32.xlu0 %v2034, 48
    %v2467 = vpop.permute.xlu0 %2466
    %v2470 = vsel %vm210, %v2465, 0
    %2472 = vmatprep.subr.mxu0 0.0
    %2473 = vmatpush1.msra.mxu0 %v2467
    %2474 = vmatprep.subr.mxu0 0.0
    %2475 = vmatpush1.msra.mxu0 0.0
    %2476 = vmatprep.subr.mxu0 0.0
    %2477 = vmatpush1.msra.mxu0 0.0
    %2478 = vmatprep.subr.mxu0 0.0
    %2479 = vmatpush1.msra.mxu0 0.0
    %2480 = vmatprep.subr.mxu0 0.0
    %2481 = vmatpush1.msra.mxu0 0.0
    %2482 = vmatprep.subr.mxu0 0.0
    %2483 = vmatpush1.msra.mxu0 0.0
    %2484 = vmatprep.subr.mxu0 0.0
    %2485 = vmatpush1.msra.mxu0 0.0
    %2486 = vmatprep.subr.mxu0 0.0
    %2487 = vmatpush1.msra.mxu0 0.0
    %2488 = vmatprep.subr.mxu0 0.0
    %2489 = vmatpush1.msra.mxu0 0.0
    %2490 = vmatprep.subr.mxu0 0.0
    %2491 = vmatpush1.msra.mxu0 0.0
    %2492 = vmatprep.subr.mxu0 0.0
    %2493 = vmatpush1.msra.mxu0 0.0
    %2494 = vmatprep.subr.mxu0 0.0
    %2495 = vmatpush1.msra.mxu0 0.0
    %2496 = vmatprep.subr.mxu0 0.0
    %2497 = vmatpush1.msra.mxu0 0.0
    %2498 = vmatprep.subr.mxu0 0.0
    %2499 = vmatpush1.msra.mxu0 0.0
    %2500 = vmatprep.subr.mxu0 0.0
    %2501 = vmatpush1.msra.mxu0 0.0
    %2502 = vmatprep.subr.mxu0 0.0
    %2503 = vmatpush1.msra.mxu0 0.0
    %2504 = vmatprep.subr.mxu0 0.0
    %2505 = vmatpush1.msra.mxu0 0.0
    %2506 = vmatprep.subr.mxu0 0.0
    %2507 = vmatpush1.msra.mxu0 0.0
    %2508 = vmatprep.subr.mxu0 0.0
    %2509 = vmatpush1.msra.mxu0 0.0
    %2510 = vmatprep.subr.mxu0 0.0
    %2511 = vmatpush1.msra.mxu0 0.0
    %2512 = vmatprep.subr.mxu0 0.0
    %2513 = vmatpush1.msra.mxu0 0.0
    %2514 = vmatprep.subr.mxu0 0.0
    %2515 = vmatpush1.msra.mxu0 0.0
    %2516 = vmatprep.subr.mxu0 0.0
    %2517 = vmatpush1.msra.mxu0 0.0
    %2518 = vmatprep.subr.mxu0 0.0
    %2519 = vmatpush1.msra.mxu0 0.0
    %2520 = vmatprep.subr.mxu0 0.0
    %2521 = vmatpush1.msra.mxu0 0.0
    %2522 = vmatprep.subr.mxu0 0.0
    %2523 = vmatpush1.msra.mxu0 0.0
    %2524 = vmatprep.subr.mxu0 0.0
    %2525 = vmatpush1.msra.mxu0 0.0
    %2526 = vmatprep.subr.mxu0 0.0
    %2527 = vmatpush1.msra.mxu0 0.0
    %2528 = vmatprep.subr.mxu0 0.0
    %2529 = vmatpush1.msra.mxu0 0.0
    %2530 = vmatprep.subr.mxu0 0.0
    %2531 = vmatpush1.msra.mxu0 0.0
    %2532 = vmatprep.subr.mxu0 0.0
    %2533 = vmatpush1.msra.mxu0 0.0
    %2534 = vmatprep.subr.mxu0 0.0
    %2535 = vmatpush1.msra.mxu0 0.0
    %2536 = vmatprep.mubr.f32.mxu0 0.0
    %2537 = vmatmul.mubr.f32.gmra.mrb[0].mxu0 %v2470
    %v2538 = vpop.f32.mrb[0].mxu0
    %v2539 = vadd.f32 0.0, %v2538
    %v2540 = vpop.f32.mrb[0].mxu0
    %2541 = vdwg.mxu0
    %2542 = vrot.lane.b32.xlu0 %v2034, 104
    %v2543 = vpop.permute.xlu0 %2542
    %2544 = vrot.lane.b32.xlu0 %v2034, 72
    %v2545 = vpop.permute.xlu0 %2544
    %v2546 = vsel %vm210, %v2543, 0
    %v2548 = vsel %vm210, %v2545, 0
    %2550 = vmatprep.subr.mxu0 0.0
    %2551 = vmatpush1.xpose.msra.mxu0 %v2548
    %2552 = vmatprep.subr.mxu0 0.0
    %2553 = vmatpush1.xpose.msra.mxu0 0.0
    %2554 = vmatprep.subr.mxu0 0.0
    %2555 = vmatpush1.xpose.msra.mxu0 0.0
    %2556 = vmatprep.subr.mxu0 0.0
    %2557 = vmatpush1.xpose.msra.mxu0 0.0
    %2558 = vmatprep.subr.mxu0 0.0
    %2559 = vmatpush1.xpose.msra.mxu0 0.0
    %2560 = vmatprep.subr.mxu0 0.0
    %2561 = vmatpush1.xpose.msra.mxu0 0.0
    %2562 = vmatprep.subr.mxu0 0.0
    %2563 = vmatpush1.xpose.msra.mxu0 0.0
    %2564 = vmatprep.subr.mxu0 0.0
    %2565 = vmatpush1.xpose.msra.mxu0 0.0
    %2566 = vmatprep.subr.mxu0 0.0
    %2567 = vmatpush1.xpose.msra.mxu0 0.0
    %2568 = vmatprep.subr.mxu0 0.0
    %2569 = vmatpush1.xpose.msra.mxu0 0.0
    %2570 = vmatprep.subr.mxu0 0.0
    %2571 = vmatpush1.xpose.msra.mxu0 0.0
    %2572 = vmatprep.subr.mxu0 0.0
    %2573 = vmatpush1.xpose.msra.mxu0 0.0
    %2574 = vmatprep.subr.mxu0 0.0
    %2575 = vmatpush1.xpose.msra.mxu0 0.0
    %2576 = vmatprep.subr.mxu0 0.0
    %2577 = vmatpush1.xpose.msra.mxu0 0.0
    %2578 = vmatprep.subr.mxu0 0.0
    %2579 = vmatpush1.xpose.msra.mxu0 0.0
    %2580 = vmatprep.subr.mxu0 0.0
    %2581 = vmatpush1.xpose.msra.mxu0 0.0
    %2582 = vmatprep.subr.mxu0 0.0
    %2583 = vmatpush1.xpose.msra.mxu0 0.0
    %2584 = vmatprep.subr.mxu0 0.0
    %2585 = vmatpush1.xpose.msra.mxu0 0.0
    %2586 = vmatprep.subr.mxu0 0.0
    %2587 = vmatpush1.xpose.msra.mxu0 0.0
    %2588 = vmatprep.subr.mxu0 0.0
    %2589 = vmatpush1.xpose.msra.mxu0 0.0
    %2590 = vmatprep.subr.mxu0 0.0
    %2591 = vmatpush1.xpose.msra.mxu0 0.0
    %2592 = vmatprep.subr.mxu0 0.0
    %2593 = vmatpush1.xpose.msra.mxu0 0.0
    %2594 = vmatprep.subr.mxu0 0.0
    %2595 = vmatpush1.xpose.msra.mxu0 0.0
    %2596 = vmatprep.subr.mxu0 0.0
    %2597 = vmatpush1.xpose.msra.mxu0 0.0
    %2598 = vmatprep.subr.mxu0 0.0
    %2599 = vmatpush1.xpose.msra.mxu0 0.0
    %2600 = vmatprep.subr.mxu0 0.0
    %2601 = vmatpush1.xpose.msra.mxu0 0.0
    %2602 = vmatprep.subr.mxu0 0.0
    %2603 = vmatpush1.xpose.msra.mxu0 0.0
    %2604 = vmatprep.subr.mxu0 0.0
    %2605 = vmatpush1.xpose.msra.mxu0 0.0
    %2606 = vmatprep.subr.mxu0 0.0
    %2607 = vmatpush1.xpose.msra.mxu0 0.0
    %2608 = vmatprep.subr.mxu0 0.0
    %2609 = vmatpush1.xpose.msra.mxu0 0.0
    %2610 = vmatprep.subr.mxu0 0.0
    %2611 = vmatpush1.xpose.msra.mxu0 0.0
    %2612 = vmatprep.subr.mxu0 0.0
    %2613 = vmatpush1.xpose.msra.mxu0 0.0
    %2614 = vmatprep.mubr.f32.mxu0 0.0
    %2615 = vmatmul.mubr.f32.gmra.mrb[0].mxu0 %v2546
    %v2616 = vpop.f32.mrb[0].mxu0
    %v2617 = vadd.f32 0.0, %v2616
    %v2618 = vpop.f32.mrb[0].mxu0
    %2619 = vdwg.mxu0
    %v2620 = vmul.f32 %v2617, 0.35355338
    %v2621 = vadd.f32 %v2620, %v289
    %v2622 = vsel %vm210, %v2621, -inf
    %2623 = vmax.xlane.f32.xlu0 %v2622
    %v2624 = vpop.xlane.xlu0 %2623
    %v2625 = vsub.f32 %v2621, %v2624
    %v2626 = vmul.f32 %v2625, 1.442695
    %v2627 = vpow.pop %v2626
    %v2628 = vsel %vm210, %v2627, 0.0
    %2629 = vadd.xlane.f32.xlu0 %v2628
    %v2630 = vpop.xlane.xlu0 %2629
    %v2631 = vrcp.pop %v2630
    %v2632 = vmul.f32 %v2627, %v2631
    %2633 = vrot.lane.b32.xlu0 %v2034, 40
    %v2634 = vpop.permute.xlu0 %2633
    %v2637 = vsel %vm210, %v2632, 0
    %2639 = vmatprep.subr.mxu0 0.0
    %2640 = vmatpush1.msra.mxu0 %v2634
    %2641 = vmatprep.subr.mxu0 0.0
    %2642 = vmatpush1.msra.mxu0 0.0
    %2643 = vmatprep.subr.mxu0 0.0
    %2644 = vmatpush1.msra.mxu0 0.0
    %2645 = vmatprep.subr.mxu0 0.0
    %2646 = vmatpush1.msra.mxu0 0.0
    %2647 = vmatprep.subr.mxu0 0.0
    %2648 = vmatpush1.msra.mxu0 0.0
    %2649 = vmatprep.subr.mxu0 0.0
    %2650 = vmatpush1.msra.mxu0 0.0
    %2651 = vmatprep.subr.mxu0 0.0
    %2652 = vmatpush1.msra.mxu0 0.0
    %2653 = vmatprep.subr.mxu0 0.0
    %2654 = vmatpush1.msra.mxu0 0.0
    %2655 = vmatprep.subr.mxu0 0.0
    %2656 = vmatpush1.msra.mxu0 0.0
    %2657 = vmatprep.subr.mxu0 0.0
    %2658 = vmatpush1.msra.mxu0 0.0
    %2659 = vmatprep.subr.mxu0 0.0
    %2660 = vmatpush1.msra.mxu0 0.0
    %2661 = vmatprep.subr.mxu0 0.0
    %2662 = vmatpush1.msra.mxu0 0.0
    %2663 = vmatprep.subr.mxu0 0.0
    %2664 = vmatpush1.msra.mxu0 0.0
    %2665 = vmatprep.subr.mxu0 0.0
    %2666 = vmatpush1.msra.mxu0 0.0
    %2667 = vmatprep.subr.mxu0 0.0
    %2668 = vmatpush1.msra.mxu0 0.0
    %2669 = vmatprep.subr.mxu0 0.0
    %2670 = vmatpush1.msra.mxu0 0.0
    %2671 = vmatprep.subr.mxu0 0.0
    %2672 = vmatpush1.msra.mxu0 0.0
    %2673 = vmatprep.subr.mxu0 0.0
    %2674 = vmatpush1.msra.mxu0 0.0
    %2675 = vmatprep.subr.mxu0 0.0
    %2676 = vmatpush1.msra.mxu0 0.0
    %2677 = vmatprep.subr.mxu0 0.0
    %2678 = vmatpush1.msra.mxu0 0.0
    %2679 = vmatprep.subr.mxu0 0.0
    %2680 = vmatpush1.msra.mxu0 0.0
    %2681 = vmatprep.subr.mxu0 0.0
    %2682 = vmatpush1.msra.mxu0 0.0
    %2683 = vmatprep.subr.mxu0 0.0
    %2684 = vmatpush1.msra.mxu0 0.0
    %2685 = vmatprep.subr.mxu0 0.0
    %2686 = vmatpush1.msra.mxu0 0.0
    %2687 = vmatprep.subr.mxu0 0.0
    %2688 = vmatpush1.msra.mxu0 0.0
    %2689 = vmatprep.subr.mxu0 0.0
    %2690 = vmatpush1.msra.mxu0 0.0
    %2691 = vmatprep.subr.mxu0 0.0
    %2692 = vmatpush1.msra.mxu0 0.0
    %2693 = vmatprep.subr.mxu0 0.0
    %2694 = vmatpush1.msra.mxu0 0.0
    %2695 = vmatprep.subr.mxu0 0.0
    %2696 = vmatpush1.msra.mxu0 0.0
    %2697 = vmatprep.subr.mxu0 0.0
    %2698 = vmatpush1.msra.mxu0 0.0
    %2699 = vmatprep.subr.mxu0 0.0
    %2700 = vmatpush1.msra.mxu0 0.0
    %2701 = vmatprep.subr.mxu0 0.0
    %2702 = vmatpush1.msra.mxu0 0.0
    %2703 = vmatprep.mubr.f32.mxu0 0.0
    %2704 = vmatmul.mubr.f32.gmra.mrb[0].mxu0 %v2637
    %v2705 = vpop.f32.mrb[0].mxu0
    %v2706 = vadd.f32 0.0, %v2705
    %v2707 = vpop.f32.mrb[0].mxu0
    %2708 = vdwg.mxu0
    %2710 = vrot.lane.b32.xlu0 %v2372, 8
    %v2711 = vpop.permute.xlu0 %2710
    %2714 = vrot.lane.b32.xlu0 %v2539, 16
    %v2715 = vpop.permute.xlu0 %2714
    %2718 = vrot.lane.b32.xlu0 %v2706, 24
    %v2719 = vpop.permute.xlu0 %2718
    %v2721 = vsel %vm210, %v2205, %v2711
    %v2722 = vsel %vm892, %v2721, %v2715
    %v2723 = vsel %vm894, %v2722, %v2719
    %2725 = vrot.lane.b32.xlu0 %v2039, 96
    %v2726 = vpop.permute.xlu0 %2725
    %v2727 = vsel %vm210, %v2039, 0
    %v2729 = vsel %vm210, %v2726, 0
    %2731 = vmatprep.subr.mxu0 0.0
    %2732 = vmatpush1.xpose.msra.mxu0 %v2729
    %2733 = vmatprep.subr.mxu0 0.0
    %2734 = vmatpush1.xpose.msra.mxu0 0.0
    %2735 = vmatprep.subr.mxu0 0.0
    %2736 = vmatpush1.xpose.msra.mxu0 0.0
    %2737 = vmatprep.subr.mxu0 0.0
    %2738 = vmatpush1.xpose.msra.mxu0 0.0
    %2739 = vmatprep.subr.mxu0 0.0
    %2740 = vmatpush1.xpose.msra.mxu0 0.0
    %2741 = vmatprep.subr.mxu0 0.0
    %2742 = vmatpush1.xpose.msra.mxu0 0.0
    %2743 = vmatprep.subr.mxu0 0.0
    %2744 = vmatpush1.xpose.msra.mxu0 0.0
    %2745 = vmatprep.subr.mxu0 0.0
    %2746 = vmatpush1.xpose.msra.mxu0 0.0
    %2747 = vmatprep.subr.mxu0 0.0
    %2748 = vmatpush1.xpose.msra.mxu0 0.0
    %2749 = vmatprep.subr.mxu0 0.0
    %2750 = vmatpush1.xpose.msra.mxu0 0.0
    %2751 = vmatprep.subr.mxu0 0.0
    %2752 = vmatpush1.xpose.msra.mxu0 0.0
    %2753 = vmatprep.subr.mxu0 0.0
    %2754 = vmatpush1.xpose.msra.mxu0 0.0
    %2755 = vmatprep.subr.mxu0 0.0
    %2756 = vmatpush1.xpose.msra.mxu0 0.0
    %2757 = vmatprep.subr.mxu0 0.0
    %2758 = vmatpush1.xpose.msra.mxu0 0.0
    %2759 = vmatprep.subr.mxu0 0.0
    %2760 = vmatpush1.xpose.msra.mxu0 0.0
    %2761 = vmatprep.subr.mxu0 0.0
    %2762 = vmatpush1.xpose.msra.mxu0 0.0
    %2763 = vmatprep.subr.mxu0 0.0
    %2764 = vmatpush1.xpose.msra.mxu0 0.0
    %2765 = vmatprep.subr.mxu0 0.0
    %2766 = vmatpush1.xpose.msra.mxu0 0.0
    %2767 = vmatprep.subr.mxu0 0.0
    %2768 = vmatpush1.xpose.msra.mxu0 0.0
    %2769 = vmatprep.subr.mxu0 0.0
    %2770 = vmatpush1.xpose.msra.mxu0 0.0
    %2771 = vmatprep.subr.mxu0 0.0
    %2772 = vmatpush1.xpose.msra.mxu0 0.0
    %2773 = vmatprep.subr.mxu0 0.0
    %2774 = vmatpush1.xpose.msra.mxu0 0.0
    %2775 = vmatprep.subr.mxu0 0.0
    %2776 = vmatpush1.xpose.msra.mxu0 0.0
    %2777 = vmatprep.subr.mxu0 0.0
    %2778 = vmatpush1.xpose.msra.mxu0 0.0
    %2779 = vmatprep.subr.mxu0 0.0
    %2780 = vmatpush1.xpose.msra.mxu0 0.0
    %2781 = vmatprep.subr.mxu0 0.0
    %2782 = vmatpush1.xpose.msra.mxu0 0.0
    %2783 = vmatprep.subr.mxu0 0.0
    %2784 = vmatpush1.xpose.msra.mxu0 0.0
    %2785 = vmatprep.subr.mxu0 0.0
    %2786 = vmatpush1.xpose.msra.mxu0 0.0
    %2787 = vmatprep.subr.mxu0 0.0
    %2788 = vmatpush1.xpose.msra.mxu0 0.0
    %2789 = vmatprep.subr.mxu0 0.0
    %2790 = vmatpush1.xpose.msra.mxu0 0.0
    %2791 = vmatprep.subr.mxu0 0.0
    %2792 = vmatpush1.xpose.msra.mxu0 0.0
    %2793 = vmatprep.subr.mxu0 0.0
    %2794 = vmatpush1.xpose.msra.mxu0 0.0
    %2795 = vmatprep.mubr.f32.mxu0 0.0
    %2796 = vmatmul.mubr.f32.gmra.mrb[0].mxu0 %v2727
    %v2797 = vpop.f32.mrb[0].mxu0
    %v2798 = vadd.f32 0.0, %v2797
    %v2799 = vpop.f32.mrb[0].mxu0
    %2800 = vdwg.mxu0
    %v2801 = vmul.f32 %v2798, 0.35355338
    %v2802 = vadd.f32 %v2801, %v977
    %v2803 = vsel %vm210, %v2802, -inf
    %2804 = vmax.xlane.f32.xlu0 %v2803
    %v2805 = vpop.xlane.xlu0 %2804
    %v2806 = vsub.f32 %v2802, %v2805
    %v2807 = vmul.f32 %v2806, 1.442695
    %v2808 = vpow.pop %v2807
    %v2809 = vsel %vm210, %v2808, 0.0
    %2810 = vadd.xlane.f32.xlu0 %v2809
    %v2811 = vpop.xlane.xlu0 %2810
    %v2812 = vrcp.pop %v2811
    %v2813 = vmul.f32 %v2808, %v2812
    %2814 = vrot.lane.b32.xlu0 %v2039, 64
    %v2815 = vpop.permute.xlu0 %2814
    %v2818 = vsel %vm210, %v2813, 0
    %2820 = vmatprep.subr.mxu0 0.0
    %2821 = vmatpush1.msra.mxu0 %v2815
    %2822 = vmatprep.subr.mxu0 0.0
    %2823 = vmatpush1.msra.mxu0 0.0
    %2824 = vmatprep.subr.mxu0 0.0
    %2825 = vmatpush1.msra.mxu0 0.0
    %2826 = vmatprep.subr.mxu0 0.0
    %2827 = vmatpush1.msra.mxu0 0.0
    %2828 = vmatprep.subr.mxu0 0.0
    %2829 = vmatpush1.msra.mxu0 0.0
    %2830 = vmatprep.subr.mxu0 0.0
    %2831 = vmatpush1.msra.mxu0 0.0
    %2832 = vmatprep.subr.mxu0 0.0
    %2833 = vmatpush1.msra.mxu0 0.0
    %2834 = vmatprep.subr.mxu0 0.0
    %2835 = vmatpush1.msra.mxu0 0.0
    %2836 = vmatprep.subr.mxu0 0.0
    %2837 = vmatpush1.msra.mxu0 0.0
    %2838 = vmatprep.subr.mxu0 0.0
    %2839 = vmatpush1.msra.mxu0 0.0
    %2840 = vmatprep.subr.mxu0 0.0
    %2841 = vmatpush1.msra.mxu0 0.0
    %2842 = vmatprep.subr.mxu0 0.0
    %2843 = vmatpush1.msra.mxu0 0.0
    %2844 = vmatprep.subr.mxu0 0.0
    %2845 = vmatpush1.msra.mxu0 0.0
    %2846 = vmatprep.subr.mxu0 0.0
    %2847 = vmatpush1.msra.mxu0 0.0
    %2848 = vmatprep.subr.mxu0 0.0
    %2849 = vmatpush1.msra.mxu0 0.0
    %2850 = vmatprep.subr.mxu0 0.0
    %2851 = vmatpush1.msra.mxu0 0.0
    %2852 = vmatprep.subr.mxu0 0.0
    %2853 = vmatpush1.msra.mxu0 0.0
    %2854 = vmatprep.subr.mxu0 0.0
    %2855 = vmatpush1.msra.mxu0 0.0
    %2856 = vmatprep.subr.mxu0 0.0
    %2857 = vmatpush1.msra.mxu0 0.0
    %2858 = vmatprep.subr.mxu0 0.0
    %2859 = vmatpush1.msra.mxu0 0.0
    %2860 = vmatprep.subr.mxu0 0.0
    %2861 = vmatpush1.msra.mxu0 0.0
    %2862 = vmatprep.subr.mxu0 0.0
    %2863 = vmatpush1.msra.mxu0 0.0
    %2864 = vmatprep.subr.mxu0 0.0
    %2865 = vmatpush1.msra.mxu0 0.0
    %2866 = vmatprep.subr.mxu0 0.0
    %2867 = vmatpush1.msra.mxu0 0.0
    %2868 = vmatprep.subr.mxu0 0.0
    %2869 = vmatpush1.msra.mxu0 0.0
    %2870 = vmatprep.subr.mxu0 0.0
    %2871 = vmatpush1.msra.mxu0 0.0
    %2872 = vmatprep.subr.mxu0 0.0
    %2873 = vmatpush1.msra.mxu0 0.0
    %2874 = vmatprep.subr.mxu0 0.0
    %2875 = vmatpush1.msra.mxu0 0.0
    %2876 = vmatprep.subr.mxu0 0.0
    %2877 = vmatpush1.msra.mxu0 0.0
    %2878 = vmatprep.subr.mxu0 0.0
    %2879 = vmatpush1.msra.mxu0 0.0
    %2880 = vmatprep.subr.mxu0 0.0
    %2881 = vmatpush1.msra.mxu0 0.0
    %2882 = vmatprep.subr.mxu0 0.0
    %2883 = vmatpush1.msra.mxu0 0.0
    %2884 = vmatprep.mubr.f32.mxu0 0.0
    %2885 = vmatmul.mubr.f32.gmra.mrb[0].mxu0 %v2818
    %v2886 = vpop.f32.mrb[0].mxu0
    %v2887 = vadd.f32 0.0, %v2886
    %v2888 = vpop.f32.mrb[0].mxu0
    %2889 = vdwg.mxu0
    %2890 = vrot.lane.b32.xlu0 %v2039, 120
    %v2891 = vpop.permute.xlu0 %2890
    %2892 = vrot.lane.b32.xlu0 %v2039, 88
    %v2893 = vpop.permute.xlu0 %2892
    %v2894 = vsel %vm210, %v2891, 0
    %v2896 = vsel %vm210, %v2893, 0
    %2898 = vmatprep.subr.mxu0 0.0
    %2899 = vmatpush1.xpose.msra.mxu0 %v2896
    %2900 = vmatprep.subr.mxu0 0.0
    %2901 = vmatpush1.xpose.msra.mxu0 0.0
    %2902 = vmatprep.subr.mxu0 0.0
    %2903 = vmatpush1.xpose.msra.mxu0 0.0
    %2904 = vmatprep.subr.mxu0 0.0
    %2905 = vmatpush1.xpose.msra.mxu0 0.0
    %2906 = vmatprep.subr.mxu0 0.0
    %2907 = vmatpush1.xpose.msra.mxu0 0.0
    %2908 = vmatprep.subr.mxu0 0.0
    %2909 = vmatpush1.xpose.msra.mxu0 0.0
    %2910 = vmatprep.subr.mxu0 0.0
    %2911 = vmatpush1.xpose.msra.mxu0 0.0
    %2912 = vmatprep.subr.mxu0 0.0
    %2913 = vmatpush1.xpose.msra.mxu0 0.0
    %2914 = vmatprep.subr.mxu0 0.0
    %2915 = vmatpush1.xpose.msra.mxu0 0.0
    %2916 = vmatprep.subr.mxu0 0.0
    %2917 = vmatpush1.xpose.msra.mxu0 0.0
    %2918 = vmatprep.subr.mxu0 0.0
    %2919 = vmatpush1.xpose.msra.mxu0 0.0
    %2920 = vmatprep.subr.mxu0 0.0
    %2921 = vmatpush1.xpose.msra.mxu0 0.0
    %2922 = vmatprep.subr.mxu0 0.0
    %2923 = vmatpush1.xpose.msra.mxu0 0.0
    %2924 = vmatprep.subr.mxu0 0.0
    %2925 = vmatpush1.xpose.msra.mxu0 0.0
    %2926 = vmatprep.subr.mxu0 0.0
    %2927 = vmatpush1.xpose.msra.mxu0 0.0
    %2928 = vmatprep.subr.mxu0 0.0
    %2929 = vmatpush1.xpose.msra.mxu0 0.0
    %2930 = vmatprep.subr.mxu0 0.0
    %2931 = vmatpush1.xpose.msra.mxu0 0.0
    %2932 = vmatprep.subr.mxu0 0.0
    %2933 = vmatpush1.xpose.msra.mxu0 0.0
    %2934 = vmatprep.subr.mxu0 0.0
    %2935 = vmatpush1.xpose.msra.mxu0 0.0
    %2936 = vmatprep.subr.mxu0 0.0
    %2937 = vmatpush1.xpose.msra.mxu0 0.0
    %2938 = vmatprep.subr.mxu0 0.0
    %2939 = vmatpush1.xpose.msra.mxu0 0.0
    %2940 = vmatprep.subr.mxu0 0.0
    %2941 = vmatpush1.xpose.msra.mxu0 0.0
    %2942 = vmatprep.subr.mxu0 0.0
    %2943 = vmatpush1.xpose.msra.mxu0 0.0
    %2944 = vmatprep.subr.mxu0 0.0
    %2945 = vmatpush1.xpose.msra.mxu0 0.0
    %2946 = vmatprep.subr.mxu0 0.0
    %2947 = vmatpush1.xpose.msra.mxu0 0.0
    %2948 = vmatprep.subr.mxu0 0.0
    %2949 = vmatpush1.xpose.msra.mxu0 0.0
    %2950 = vmatprep.subr.mxu0 0.0
    %2951 = vmatpush1.xpose.msra.mxu0 0.0
    %2952 = vmatprep.subr.mxu0 0.0
    %2953 = vmatpush1.xpose.msra.mxu0 0.0
    %2954 = vmatprep.subr.mxu0 0.0
    %2955 = vmatpush1.xpose.msra.mxu0 0.0
    %2956 = vmatprep.subr.mxu0 0.0
    %2957 = vmatpush1.xpose.msra.mxu0 0.0
    %2958 = vmatprep.subr.mxu0 0.0
    %2959 = vmatpush1.xpose.msra.mxu0 0.0
    %2960 = vmatprep.subr.mxu0 0.0
    %2961 = vmatpush1.xpose.msra.mxu0 0.0
    %2962 = vmatprep.mubr.f32.mxu0 0.0
    %2963 = vmatmul.mubr.f32.gmra.mrb[0].mxu0 %v2894
    %v2964 = vpop.f32.mrb[0].mxu0
    %v2965 = vadd.f32 0.0, %v2964
    %v2966 = vpop.f32.mrb[0].mxu0
    %2967 = vdwg.mxu0
    %v2968 = vmul.f32 %v2965, 0.35355338
    %v2969 = vadd.f32 %v2968, %v977
    %v2970 = vsel %vm210, %v2969, -inf
    %2971 = vmax.xlane.f32.xlu0 %v2970
    %v2972 = vpop.xlane.xlu0 %2971
    %v2973 = vsub.f32 %v2969, %v2972
    %v2974 = vmul.f32 %v2973, 1.442695
    %v2975 = vpow.pop %v2974
    %v2976 = vsel %vm210, %v2975, 0.0
    %2977 = vadd.xlane.f32.xlu0 %v2976
    %v2978 = vpop.xlane.xlu0 %2977
    %v2979 = vrcp.pop %v2978
    %v2980 = vmul.f32 %v2975, %v2979
    %2981 = vrot.lane.b32.xlu0 %v2039, 56
    %v2982 = vpop.permute.xlu0 %2981
    %v2985 = vsel %vm210, %v2980, 0
    %2987 = vmatprep.subr.mxu0 0.0
    %2988 = vmatpush1.msra.mxu0 %v2982
    %2989 = vmatprep.subr.mxu0 0.0
    %2990 = vmatpush1.msra.mxu0 0.0
    %2991 = vmatprep.subr.mxu0 0.0
    %2992 = vmatpush1.msra.mxu0 0.0
    %2993 = vmatprep.subr.mxu0 0.0
    %2994 = vmatpush1.msra.mxu0 0.0
    %2995 = vmatprep.subr.mxu0 0.0
    %2996 = vmatpush1.msra.mxu0 0.0
    %2997 = vmatprep.subr.mxu0 0.0
    %2998 = vmatpush1.msra.mxu0 0.0
    %2999 = vmatprep.subr.mxu0 0.0
    %3000 = vmatpush1.msra.mxu0 0.0
    %3001 = vmatprep.subr.mxu0 0.0
    %3002 = vmatpush1.msra.mxu0 0.0
    %3003 = vmatprep.subr.mxu0 0.0
    %3004 = vmatpush1.msra.mxu0 0.0
    %3005 = vmatprep.subr.mxu0 0.0
    %3006 = vmatpush1.msra.mxu0 0.0
    %3007 = vmatprep.subr.mxu0 0.0
    %3008 = vmatpush1.msra.mxu0 0.0
    %3009 = vmatprep.subr.mxu0 0.0
    %3010 = vmatpush1.msra.mxu0 0.0
    %3011 = vmatprep.subr.mxu0 0.0
    %3012 = vmatpush1.msra.mxu0 0.0
    %3013 = vmatprep.subr.mxu0 0.0
    %3014 = vmatpush1.msra.mxu0 0.0
    %3015 = vmatprep.subr.mxu0 0.0
    %3016 = vmatpush1.msra.mxu0 0.0
    %3017 = vmatprep.subr.mxu0 0.0
    %3018 = vmatpush1.msra.mxu0 0.0
    %3019 = vmatprep.subr.mxu0 0.0
    %3020 = vmatpush1.msra.mxu0 0.0
    %3021 = vmatprep.subr.mxu0 0.0
    %3022 = vmatpush1.msra.mxu0 0.0
    %3023 = vmatprep.subr.mxu0 0.0
    %3024 = vmatpush1.msra.mxu0 0.0
    %3025 = vmatprep.subr.mxu0 0.0
    %3026 = vmatpush1.msra.mxu0 0.0
    %3027 = vmatprep.subr.mxu0 0.0
    %3028 = vmatpush1.msra.mxu0 0.0
    %3029 = vmatprep.subr.mxu0 0.0
    %3030 = vmatpush1.msra.mxu0 0.0
    %3031 = vmatprep.subr.mxu0 0.0
    %3032 = vmatpush1.msra.mxu0 0.0
    %3033 = vmatprep.subr.mxu0 0.0
    %3034 = vmatpush1.msra.mxu0 0.0
    %3035 = vmatprep.subr.mxu0 0.0
    %3036 = vmatpush1.msra.mxu0 0.0
    %3037 = vmatprep.subr.mxu0 0.0
    %3038 = vmatpush1.msra.mxu0 0.0
    %3039 = vmatprep.subr.mxu0 0.0
    %3040 = vmatpush1.msra.mxu0 0.0
    %3041 = vmatprep.subr.mxu0 0.0
    %3042 = vmatpush1.msra.mxu0 0.0
    %3043 = vmatprep.subr.mxu0 0.0
    %3044 = vmatpush1.msra.mxu0 0.0
    %3045 = vmatprep.subr.mxu0 0.0
    %3046 = vmatpush1.msra.mxu0 0.0
    %3047 = vmatprep.subr.mxu0 0.0
    %3048 = vmatpush1.msra.mxu0 0.0
    %3049 = vmatprep.subr.mxu0 0.0
    %3050 = vmatpush1.msra.mxu0 0.0
    %3051 = vmatprep.mubr.f32.mxu0 0.0
    %3052 = vmatmul.mubr.f32.gmra.mrb[0].mxu0 %v2985
    %v3053 = vpop.f32.mrb[0].mxu0
    %v3054 = vadd.f32 0.0, %v3053
    %v3055 = vpop.f32.mrb[0].mxu0
    %3056 = vdwg.mxu0
    %3057 = vrot.lane.b32.xlu0 %v2039, 112
    %v3058 = vpop.permute.xlu0 %3057
    %3059 = vrot.lane.b32.xlu0 %v2039, 80
    %v3060 = vpop.permute.xlu0 %3059
    %v3061 = vsel %vm210, %v3058, 0
    %v3063 = vsel %vm210, %v3060, 0
    %3065 = vmatprep.subr.mxu0 0.0
    %3066 = vmatpush1.xpose.msra.mxu0 %v3063
    %3067 = vmatprep.subr.mxu0 0.0
    %3068 = vmatpush1.xpose.msra.mxu0 0.0
    %3069 = vmatprep.subr.mxu0 0.0
    %3070 = vmatpush1.xpose.msra.mxu0 0.0
    %3071 = vmatprep.subr.mxu0 0.0
    %3072 = vmatpush1.xpose.msra.mxu0 0.0
    %3073 = vmatprep.subr.mxu0 0.0
    %3074 = vmatpush1.xpose.msra.mxu0 0.0
    %3075 = vmatprep.subr.mxu0 0.0
    %3076 = vmatpush1.xpose.msra.mxu0 0.0
    %3077 = vmatprep.subr.mxu0 0.0
    %3078 = vmatpush1.xpose.msra.mxu0 0.0
    %3079 = vmatprep.subr.mxu0 0.0
    %3080 = vmatpush1.xpose.msra.mxu0 0.0
    %3081 = vmatprep.subr.mxu0 0.0
    %3082 = vmatpush1.xpose.msra.mxu0 0.0
    %3083 = vmatprep.subr.mxu0 0.0
    %3084 = vmatpush1.xpose.msra.mxu0 0.0
    %3085 = vmatprep.subr.mxu0 0.0
    %3086 = vmatpush1.xpose.msra.mxu0 0.0
    %3087 = vmatprep.subr.mxu0 0.0
    %3088 = vmatpush1.xpose.msra.mxu0 0.0
    %3089 = vmatprep.subr.mxu0 0.0
    %3090 = vmatpush1.xpose.msra.mxu0 0.0
    %3091 = vmatprep.subr.mxu0 0.0
    %3092 = vmatpush1.xpose.msra.mxu0 0.0
    %3093 = vmatprep.subr.mxu0 0.0
    %3094 = vmatpush1.xpose.msra.mxu0 0.0
    %3095 = vmatprep.subr.mxu0 0.0
    %3096 = vmatpush1.xpose.msra.mxu0 0.0
    %3097 = vmatprep.subr.mxu0 0.0
    %3098 = vmatpush1.xpose.msra.mxu0 0.0
    %3099 = vmatprep.subr.mxu0 0.0
    %3100 = vmatpush1.xpose.msra.mxu0 0.0
    %3101 = vmatprep.subr.mxu0 0.0
    %3102 = vmatpush1.xpose.msra.mxu0 0.0
    %3103 = vmatprep.subr.mxu0 0.0
    %3104 = vmatpush1.xpose.msra.mxu0 0.0
    %3105 = vmatprep.subr.mxu0 0.0
    %3106 = vmatpush1.xpose.msra.mxu0 0.0
    %3107 = vmatprep.subr.mxu0 0.0
    %3108 = vmatpush1.xpose.msra.mxu0 0.0
    %3109 = vmatprep.subr.mxu0 0.0
    %3110 = vmatpush1.xpose.msra.mxu0 0.0
    %3111 = vmatprep.subr.mxu0 0.0
    %3112 = vmatpush1.xpose.msra.mxu0 0.0
    %3113 = vmatprep.subr.mxu0 0.0
    %3114 = vmatpush1.xpose.msra.mxu0 0.0
    %3115 = vmatprep.subr.mxu0 0.0
    %3116 = vmatpush1.xpose.msra.mxu0 0.0
    %3117 = vmatprep.subr.mxu0 0.0
    %3118 = vmatpush1.xpose.msra.mxu0 0.0
    %3119 = vmatprep.subr.mxu0 0.0
    %3120 = vmatpush1.xpose.msra.mxu0 0.0
    %3121 = vmatprep.subr.mxu0 0.0
    %3122 = vmatpush1.xpose.msra.mxu0 0.0
    %3123 = vmatprep.subr.mxu0 0.0
    %3124 = vmatpush1.xpose.msra.mxu0 0.0
    %3125 = vmatprep.subr.mxu0 0.0
    %3126 = vmatpush1.xpose.msra.mxu0 0.0
    %3127 = vmatprep.subr.mxu0 0.0
    %3128 = vmatpush1.xpose.msra.mxu0 0.0
    %3129 = vmatprep.mubr.f32.mxu0 0.0
    %3130 = vmatmul.mubr.f32.gmra.mrb[0].mxu0 %v3061
    %v3131 = vpop.f32.mrb[0].mxu0
    %v3132 = vadd.f32 0.0, %v3131
    %v3133 = vpop.f32.mrb[0].mxu0
    %3134 = vdwg.mxu0
    %v3135 = vmul.f32 %v3132, 0.35355338
    %v3136 = vadd.f32 %v3135, %v977
    %v3137 = vsel %vm210, %v3136, -inf
    %3138 = vmax.xlane.f32.xlu0 %v3137
    %v3139 = vpop.xlane.xlu0 %3138
    %v3140 = vsub.f32 %v3136, %v3139
    %v3141 = vmul.f32 %v3140, 1.442695
    %v3142 = vpow.pop %v3141
    %v3143 = vsel %vm210, %v3142, 0.0
    %3144 = vadd.xlane.f32.xlu0 %v3143
    %v3145 = vpop.xlane.xlu0 %3144
    %v3146 = vrcp.pop %v3145
    %v3147 = vmul.f32 %v3142, %v3146
    %3148 = vrot.lane.b32.xlu0 %v2039, 48
    %v3149 = vpop.permute.xlu0 %3148
    %v3152 = vsel %vm210, %v3147, 0
    %3154 = vmatprep.subr.mxu0 0.0
    %3155 = vmatpush1.msra.mxu0 %v3149
    %3156 = vmatprep.subr.mxu0 0.0
    %3157 = vmatpush1.msra.mxu0 0.0
    %3158 = vmatprep.subr.mxu0 0.0
    %3159 = vmatpush1.msra.mxu0 0.0
    %3160 = vmatprep.subr.mxu0 0.0
    %3161 = vmatpush1.msra.mxu0 0.0
    %3162 = vmatprep.subr.mxu0 0.0
    %3163 = vmatpush1.msra.mxu0 0.0
    %3164 = vmatprep.subr.mxu0 0.0
    %3165 = vmatpush1.msra.mxu0 0.0
    %3166 = vmatprep.subr.mxu0 0.0
    %3167 = vmatpush1.msra.mxu0 0.0
    %3168 = vmatprep.subr.mxu0 0.0
    %3169 = vmatpush1.msra.mxu0 0.0
    %3170 = vmatprep.subr.mxu0 0.0
    %3171 = vmatpush1.msra.mxu0 0.0
    %3172 = vmatprep.subr.mxu0 0.0
    %3173 = vmatpush1.msra.mxu0 0.0
    %3174 = vmatprep.subr.mxu0 0.0
    %3175 = vmatpush1.msra.mxu0 0.0
    %3176 = vmatprep.subr.mxu0 0.0
    %3177 = vmatpush1.msra.mxu0 0.0
    %3178 = vmatprep.subr.mxu0 0.0
    %3179 = vmatpush1.msra.mxu0 0.0
    %3180 = vmatprep.subr.mxu0 0.0
    %3181 = vmatpush1.msra.mxu0 0.0
    %3182 = vmatprep.subr.mxu0 0.0
    %3183 = vmatpush1.msra.mxu0 0.0
    %3184 = vmatprep.subr.mxu0 0.0
    %3185 = vmatpush1.msra.mxu0 0.0
    %3186 = vmatprep.subr.mxu0 0.0
    %3187 = vmatpush1.msra.mxu0 0.0
    %3188 = vmatprep.subr.mxu0 0.0
    %3189 = vmatpush1.msra.mxu0 0.0
    %3190 = vmatprep.subr.mxu0 0.0
    %3191 = vmatpush1.msra.mxu0 0.0
    %3192 = vmatprep.subr.mxu0 0.0
    %3193 = vmatpush1.msra.mxu0 0.0
    %3194 = vmatprep.subr.mxu0 0.0
    %3195 = vmatpush1.msra.mxu0 0.0
    %3196 = vmatprep.subr.mxu0 0.0
    %3197 = vmatpush1.msra.mxu0 0.0
    %3198 = vmatprep.subr.mxu0 0.0
    %3199 = vmatpush1.msra.mxu0 0.0
    %3200 = vmatprep.subr.mxu0 0.0
    %3201 = vmatpush1.msra.mxu0 0.0
    %3202 = vmatprep.subr.mxu0 0.0
    %3203 = vmatpush1.msra.mxu0 0.0
    %3204 = vmatprep.subr.mxu0 0.0
    %3205 = vmatpush1.msra.mxu0 0.0
    %3206 = vmatprep.subr.mxu0 0.0
    %3207 = vmatpush1.msra.mxu0 0.0
    %3208 = vmatprep.subr.mxu0 0.0
    %3209 = vmatpush1.msra.mxu0 0.0
    %3210 = vmatprep.subr.mxu0 0.0
    %3211 = vmatpush1.msra.mxu0 0.0
    %3212 = vmatprep.subr.mxu0 0.0
    %3213 = vmatpush1.msra.mxu0 0.0
    %3214 = vmatprep.subr.mxu0 0.0
    %3215 = vmatpush1.msra.mxu0 0.0
    %3216 = vmatprep.subr.mxu0 0.0
    %3217 = vmatpush1.msra.mxu0 0.0
    %3218 = vmatprep.mubr.f32.mxu0 0.0
    %3219 = vmatmul.mubr.f32.gmra.mrb[0].mxu0 %v3152
    %v3220 = vpop.f32.mrb[0].mxu0
    %v3221 = vadd.f32 0.0, %v3220
    %v3222 = vpop.f32.mrb[0].mxu0
    %3223 = vdwg.mxu0
    %3224 = vrot.lane.b32.xlu0 %v2039, 104
    %v3225 = vpop.permute.xlu0 %3224
    %3226 = vrot.lane.b32.xlu0 %v2039, 72
    %v3227 = vpop.permute.xlu0 %3226
    %v3228 = vsel %vm210, %v3225, 0
    %v3230 = vsel %vm210, %v3227, 0
    %3232 = vmatprep.subr.mxu0 0.0
    %3233 = vmatpush1.xpose.msra.mxu0 %v3230
    %3234 = vmatprep.subr.mxu0 0.0
    %3235 = vmatpush1.xpose.msra.mxu0 0.0
    %3236 = vmatprep.subr.mxu0 0.0
    %3237 = vmatpush1.xpose.msra.mxu0 0.0
    %3238 = vmatprep.subr.mxu0 0.0
    %3239 = vmatpush1.xpose.msra.mxu0 0.0
    %3240 = vmatprep.subr.mxu0 0.0
    %3241 = vmatpush1.xpose.msra.mxu0 0.0
    %3242 = vmatprep.subr.mxu0 0.0
    %3243 = vmatpush1.xpose.msra.mxu0 0.0
    %3244 = vmatprep.subr.mxu0 0.0
    %3245 = vmatpush1.xpose.msra.mxu0 0.0
    %3246 = vmatprep.subr.mxu0 0.0
    %3247 = vmatpush1.xpose.msra.mxu0 0.0
    %3248 = vmatprep.subr.mxu0 0.0
    %3249 = vmatpush1.xpose.msra.mxu0 0.0
    %3250 = vmatprep.subr.mxu0 0.0
    %3251 = vmatpush1.xpose.msra.mxu0 0.0
    %3252 = vmatprep.subr.mxu0 0.0
    %3253 = vmatpush1.xpose.msra.mxu0 0.0
    %3254 = vmatprep.subr.mxu0 0.0
    %3255 = vmatpush1.xpose.msra.mxu0 0.0
    %3256 = vmatprep.subr.mxu0 0.0
    %3257 = vmatpush1.xpose.msra.mxu0 0.0
    %3258 = vmatprep.subr.mxu0 0.0
    %3259 = vmatpush1.xpose.msra.mxu0 0.0
    %3260 = vmatprep.subr.mxu0 0.0
    %3261 = vmatpush1.xpose.msra.mxu0 0.0
    %3262 = vmatprep.subr.mxu0 0.0
    %3263 = vmatpush1.xpose.msra.mxu0 0.0
    %3264 = vmatprep.subr.mxu0 0.0
    %3265 = vmatpush1.xpose.msra.mxu0 0.0
    %3266 = vmatprep.subr.mxu0 0.0
    %3267 = vmatpush1.xpose.msra.mxu0 0.0
    %3268 = vmatprep.subr.mxu0 0.0
    %3269 = vmatpush1.xpose.msra.mxu0 0.0
    %3270 = vmatprep.subr.mxu0 0.0
    %3271 = vmatpush1.xpose.msra.mxu0 0.0
    %3272 = vmatprep.subr.mxu0 0.0
    %3273 = vmatpush1.xpose.msra.mxu0 0.0
    %3274 = vmatprep.subr.mxu0 0.0
    %3275 = vmatpush1.xpose.msra.mxu0 0.0
    %3276 = vmatprep.subr.mxu0 0.0
    %3277 = vmatpush1.xpose.msra.mxu0 0.0
    %3278 = vmatprep.subr.mxu0 0.0
    %3279 = vmatpush1.xpose.msra.mxu0 0.0
    %3280 = vmatprep.subr.mxu0 0.0
    %3281 = vmatpush1.xpose.msra.mxu0 0.0
    %3282 = vmatprep.subr.mxu0 0.0
    %3283 = vmatpush1.xpose.msra.mxu0 0.0
    %3284 = vmatprep.subr.mxu0 0.0
    %3285 = vmatpush1.xpose.msra.mxu0 0.0
    %3286 = vmatprep.subr.mxu0 0.0
    %3287 = vmatpush1.xpose.msra.mxu0 0.0
    %3288 = vmatprep.subr.mxu0 0.0
    %3289 = vmatpush1.xpose.msra.mxu0 0.0
    %3290 = vmatprep.subr.mxu0 0.0
    %3291 = vmatpush1.xpose.msra.mxu0 0.0
    %3292 = vmatprep.subr.mxu0 0.0
    %3293 = vmatpush1.xpose.msra.mxu0 0.0
    %3294 = vmatprep.subr.mxu0 0.0
    %3295 = vmatpush1.xpose.msra.mxu0 0.0
    %3296 = vmatprep.mubr.f32.mxu0 0.0
    %3297 = vmatmul.mubr.f32.gmra.mrb[0].mxu0 %v3228
    %v3298 = vpop.f32.mrb[0].mxu0
    %v3299 = vadd.f32 0.0, %v3298
    %v3300 = vpop.f32.mrb[0].mxu0
    %3301 = vdwg.mxu0
    %v3302 = vmul.f32 %v3299, 0.35355338
    %v3303 = vadd.f32 %v3302, %v977
    %v3304 = vsel %vm210, %v3303, -inf
    %3305 = vmax.xlane.f32.xlu0 %v3304
    %v3306 = vpop.xlane.xlu0 %3305
    %v3307 = vsub.f32 %v3303, %v3306
    %v3308 = vmul.f32 %v3307, 1.442695
    %v3309 = vpow.pop %v3308
    %v3310 = vsel %vm210, %v3309, 0.0
    %3311 = vadd.xlane.f32.xlu0 %v3310
    %v3312 = vpop.xlane.xlu0 %3311
    %v3313 = vrcp.pop %v3312
    %v3314 = vmul.f32 %v3309, %v3313
    %3315 = vrot.lane.b32.xlu0 %v2039, 40
    %v3316 = vpop.permute.xlu0 %3315
    %v3319 = vsel %vm210, %v3314, 0
    %3321 = vmatprep.subr.mxu0 0.0
    %3322 = vmatpush1.msra.mxu0 %v3316
    %3323 = vmatprep.subr.mxu0 0.0
    %3324 = vmatpush1.msra.mxu0 0.0
    %3325 = vmatprep.subr.mxu0 0.0
    %3326 = vmatpush1.msra.mxu0 0.0
    %3327 = vmatprep.subr.mxu0 0.0
    %3328 = vmatpush1.msra.mxu0 0.0
    %3329 = vmatprep.subr.mxu0 0.0
    %3330 = vmatpush1.msra.mxu0 0.0
    %3331 = vmatprep.subr.mxu0 0.0
    %3332 = vmatpush1.msra.mxu0 0.0
    %3333 = vmatprep.subr.mxu0 0.0
    %3334 = vmatpush1.msra.mxu0 0.0
    %3335 = vmatprep.subr.mxu0 0.0
    %3336 = vmatpush1.msra.mxu0 0.0
    %3337 = vmatprep.subr.mxu0 0.0
    %3338 = vmatpush1.msra.mxu0 0.0
    %3339 = vmatprep.subr.mxu0 0.0
    %3340 = vmatpush1.msra.mxu0 0.0
    %3341 = vmatprep.subr.mxu0 0.0
    %3342 = vmatpush1.msra.mxu0 0.0
    %3343 = vmatprep.subr.mxu0 0.0
    %3344 = vmatpush1.msra.mxu0 0.0
    %3345 = vmatprep.subr.mxu0 0.0
    %3346 = vmatpush1.msra.mxu0 0.0
    %3347 = vmatprep.subr.mxu0 0.0
    %3348 = vmatpush1.msra.mxu0 0.0
    %3349 = vmatprep.subr.mxu0 0.0
    %3350 = vmatpush1.msra.mxu0 0.0
    %3351 = vmatprep.subr.mxu0 0.0
    %3352 = vmatpush1.msra.mxu0 0.0
    %3353 = vmatprep.subr.mxu0 0.0
    %3354 = vmatpush1.msra.mxu0 0.0
    %3355 = vmatprep.subr.mxu0 0.0
    %3356 = vmatpush1.msra.mxu0 0.0
    %3357 = vmatprep.subr.mxu0 0.0
    %3358 = vmatpush1.msra.mxu0 0.0
    %3359 = vmatprep.subr.mxu0 0.0
    %3360 = vmatpush1.msra.mxu0 0.0
    %3361 = vmatprep.subr.mxu0 0.0
    %3362 = vmatpush1.msra.mxu0 0.0
    %3363 = vmatprep.subr.mxu0 0.0
    %3364 = vmatpush1.msra.mxu0 0.0
    %3365 = vmatprep.subr.mxu0 0.0
    %3366 = vmatpush1.msra.mxu0 0.0
    %3367 = vmatprep.subr.mxu0 0.0
    %3368 = vmatpush1.msra.mxu0 0.0
    %3369 = vmatprep.subr.mxu0 0.0
    %3370 = vmatpush1.msra.mxu0 0.0
    %3371 = vmatprep.subr.mxu0 0.0
    %3372 = vmatpush1.msra.mxu0 0.0
    %3373 = vmatprep.subr.mxu0 0.0
    %3374 = vmatpush1.msra.mxu0 0.0
    %3375 = vmatprep.subr.mxu0 0.0
    %3376 = vmatpush1.msra.mxu0 0.0
    %3377 = vmatprep.subr.mxu0 0.0
    %3378 = vmatpush1.msra.mxu0 0.0
    %3379 = vmatprep.subr.mxu0 0.0
    %3380 = vmatpush1.msra.mxu0 0.0
    %3381 = vmatprep.subr.mxu0 0.0
    %3382 = vmatpush1.msra.mxu0 0.0
    %3383 = vmatprep.subr.mxu0 0.0
    %3384 = vmatpush1.msra.mxu0 0.0
    %3385 = vmatprep.mubr.f32.mxu0 0.0
    %3386 = vmatmul.mubr.f32.gmra.mrb[0].mxu0 %v3319
    %v3387 = vpop.f32.mrb[0].mxu0
    %v3388 = vadd.f32 0.0, %v3387
    %v3389 = vpop.f32.mrb[0].mxu0
    %3390 = vdwg.mxu0
    %3392 = vrot.lane.b32.xlu0 %v3054, 8
    %v3393 = vpop.permute.xlu0 %3392
    %3396 = vrot.lane.b32.xlu0 %v3221, 16
    %v3397 = vpop.permute.xlu0 %3396
    %3400 = vrot.lane.b32.xlu0 %v3388, 24
    %v3401 = vpop.permute.xlu0 %3400
    %v3403 = vsel %vm210, %v2887, %v3393
    %v3404 = vsel %vm892, %v3403, %v3397
    %v3405 = vsel %vm894, %v3404, %v3401
    %s3406 = scalar_lea.vmem %s6, 32
    %v3407 = vld [vmem:[%s3406] sm:$0xff]
    %v3408 = vld [vmem:[%s3406 + $0x8] sm:$0xff]
    %v3409 = vld [vmem:[%s3406 + $0x10] sm:$0xff]
    %v3410 = vld [vmem:[%s3406 + $0x18] sm:$0xff]
    %v3411 = vld [vmem:[%s7 + $0x1] sm:$0x1]
    %v3412 = vlaneseq
    %v3413 = vshrl.u32 %v3412, 7
    %v3414 = vsub.s32 0, %v3413
    %v3415 = vrot.slane %v3411, %v3414
    %v3417 = vsel %vm70, %v2723, 0
    %v3420 = vsel %vm70, %v3405, 0
    %3422 = vmatprep.subr.mxu0 0.0
    %3423 = vmatpush1.msra.mxu0 %v3407
    %3424 = vmatprep.subr.mxu0 0.0
    %3425 = vmatpush1.msra.mxu0 %v3408
    %3426 = vmatprep.subr.mxu0 0.0
    %3427 = vmatpush1.msra.mxu0 %v3409
    %3428 = vmatprep.subr.mxu0 0.0
    %3429 = vmatpush1.msra.mxu0 %v3410
    %3430 = vmatprep.subr.mxu0 0.0
    %3431 = vmatpush1.msra.mxu0 0.0
    %3432 = vmatprep.subr.mxu0 0.0
    %3433 = vmatpush1.msra.mxu0 0.0
    %3434 = vmatprep.subr.mxu0 0.0
    %3435 = vmatpush1.msra.mxu0 0.0
    %3436 = vmatprep.subr.mxu0 0.0
    %3437 = vmatpush1.msra.mxu0 0.0
    %3438 = vmatprep.subr.mxu0 0.0
    %3439 = vmatpush1.msra.mxu0 0.0
    %3440 = vmatprep.subr.mxu0 0.0
    %3441 = vmatpush1.msra.mxu0 0.0
    %3442 = vmatprep.subr.mxu0 0.0
    %3443 = vmatpush1.msra.mxu0 0.0
    %3444 = vmatprep.subr.mxu0 0.0
    %3445 = vmatpush1.msra.mxu0 0.0
    %3446 = vmatprep.subr.mxu0 0.0
    %3447 = vmatpush1.msra.mxu0 0.0
    %3448 = vmatprep.subr.mxu0 0.0
    %3449 = vmatpush1.msra.mxu0 0.0
    %3450 = vmatprep.subr.mxu0 0.0
    %3451 = vmatpush1.msra.mxu0 0.0
    %3452 = vmatprep.subr.mxu0 0.0
    %3453 = vmatpush1.msra.mxu0 0.0
    %3454 = vmatprep.subr.mxu0 0.0
    %3455 = vmatpush1.msra.mxu0 0.0
    %3456 = vmatprep.subr.mxu0 0.0
    %3457 = vmatpush1.msra.mxu0 0.0
    %3458 = vmatprep.subr.mxu0 0.0
    %3459 = vmatpush1.msra.mxu0 0.0
    %3460 = vmatprep.subr.mxu0 0.0
    %3461 = vmatpush1.msra.mxu0 0.0
    %3462 = vmatprep.subr.mxu0 0.0
    %3463 = vmatpush1.msra.mxu0 0.0
    %3464 = vmatprep.subr.mxu0 0.0
    %3465 = vmatpush1.msra.mxu0 0.0
    %3466 = vmatprep.subr.mxu0 0.0
    %3467 = vmatpush1.msra.mxu0 0.0
    %3468 = vmatprep.subr.mxu0 0.0
    %3469 = vmatpush1.msra.mxu0 0.0
    %3470 = vmatprep.subr.mxu0 0.0
    %3471 = vmatpush1.msra.mxu0 0.0
    %3472 = vmatprep.subr.mxu0 0.0
    %3473 = vmatpush1.msra.mxu0 0.0
    %3474 = vmatprep.subr.mxu0 0.0
    %3475 = vmatpush1.msra.mxu0 0.0
    %3476 = vmatprep.subr.mxu0 0.0
    %3477 = vmatpush1.msra.mxu0 0.0
    %3478 = vmatprep.subr.mxu0 0.0
    %3479 = vmatpush1.msra.mxu0 0.0
    %3480 = vmatprep.subr.mxu0 0.0
    %3481 = vmatpush1.msra.mxu0 0.0
    %3482 = vmatprep.subr.mxu0 0.0
    %3483 = vmatpush1.msra.mxu0 0.0
    %3484 = vmatprep.subr.mxu0 0.0
    %3485 = vmatpush1.msra.mxu0 0.0
    %3486 = vmatprep.mubr.f32.mxu0 0.0
    %3487 = vmatmul.mubr.f32.gmra.mrb[0].mxu0 %v3417
    %v3488 = vpop.f32.mrb[0].mxu0
    %v3489 = vadd.f32 %v3415, %v3488
    %v3490 = vpop.f32.mrb[0].mxu0
    %3491 = vmatprep.mubr.f32.mxu0 0.0
    %3492 = vmatmul.mubr.f32.gmra.mrb[0].mxu0 %v3420
    %v3493 = vpop.f32.mrb[0].mxu0
    %v3494 = vadd.f32 %v3415, %v3493
    %v3495 = vpop.f32.mrb[0].mxu0
    %3496 = vdwg.mxu0
    %v3497 = vadd.f32 %v3489, %v1949
    %v3498 = vadd.f32 %v3494, %v1950
    %v3499 = vld [vmem:[%s8 + $0x1] sm:$0x1]
    %v3500 = vld [vmem:[%s9 + $0x1] sm:$0x1]
    %v3501 = vsel %vm70, %v3497, 0.0
    %3502 = vadd.xlane.f32.xlu0 %v3501
    %v3503 = vpop.xlane.xlu0 %3502
    %v3504 = vsel %vm70, %v3498, 0.0
    %3505 = vadd.xlane.f32.xlu0 %v3504
    %v3506 = vpop.xlane.xlu0 %3505
    %v3507 = vmul.f32 %v3503, %v77
    %v3508 = vmul.f32 %v3506, %v77
    %v3509 = vsub.f32 %v3497, %v3507
    %v3510 = vsub.f32 %v3498, %v3508
    %v3511 = vmul.f32 %v3509, %v3509
    %v3512 = vmul.f32 %v3510, %v3510
    %v3513 = vsel %vm70, %v3511, 0.0
    %3514 = vadd.xlane.f32.xlu0 %v3513
    %v3515 = vpop.xlane.xlu0 %3514
    %v3516 = vsel %vm70, %v3512, 0.0
    %3517 = vadd.xlane.f32.xlu0 %v3516
    %v3518 = vpop.xlane.xlu0 %3517
    %v3519 = vmul.f32 %v3515, %v77
    %v3520 = vmul.f32 %v3518, %v77
    %v3521 = vadd.f32 %v3519, 1e-12
    %v3522 = vadd.f32 %v3520, 1e-12
    %v3523 = vrsqrt.pop %v3521
    %v3524 = vrsqrt.pop %v3522
    %v3525 = vmul.f32 %v3509, %v3523
    %v3526 = vmul.f32 %v3510, %v3524
    %v3527 = vlaneseq
    %v3528 = vshrl.u32 %v3527, 7
    %v3529 = vsub.s32 0, %v3528
    %v3530 = vrot.slane %v3499, %v3529
    %v3531 = vmul.f32 %v3525, %v3530
    %v3532 = vmul.f32 %v3526, %v3530
    %v3533 = vlaneseq
    %v3534 = vshrl.u32 %v3533, 7
    %v3535 = vsub.s32 0, %v3534
    %v3536 = vrot.slane %v3500, %v3535
    %v3537 = vadd.f32 %v3531, %v3536
    %v3538 = vadd.f32 %v3532, %v3536
    %s3539 = scalar_lea.vmem %s10, 32
    %v3540 = vld [vmem:[%s3539] sm:$0xff]
    %v3541 = vld [vmem:[%s3539 + $0x8] sm:$0xff]
    %v3542 = vld [vmem:[%s3539 + $0x10] sm:$0xff]
    %v3543 = vld [vmem:[%s3539 + $0x18] sm:$0xff]
    %v3544 = vld [vmem:[%s11 + $0x1] sm:$0x1]
    %v3545 = vlaneseq
    %v3546 = vshrl.u32 %v3545, 7
    %v3547 = vsub.s32 0, %v3546
    %v3548 = vrot.slane %v3544, %v3547
    %v3550 = vsel %vm70, %v3537, 0
    %v3553 = vsel %vm70, %v3538, 0
    %3555 = vmatprep.subr.mxu0 0.0
    %3556 = vmatpush1.msra.mxu0 %v3540
    %3557 = vmatprep.subr.mxu0 0.0
    %3558 = vmatpush1.msra.mxu0 %v3541
    %3559 = vmatprep.subr.mxu0 0.0
    %3560 = vmatpush1.msra.mxu0 %v3542
    %3561 = vmatprep.subr.mxu0 0.0
    %3562 = vmatpush1.msra.mxu0 %v3543
    %3563 = vmatprep.subr.mxu0 0.0
    %3564 = vmatpush1.msra.mxu0 0.0
    %3565 = vmatprep.subr.mxu0 0.0
    %3566 = vmatpush1.msra.mxu0 0.0
    %3567 = vmatprep.subr.mxu0 0.0
    %3568 = vmatpush1.msra.mxu0 0.0
    %3569 = vmatprep.subr.mxu0 0.0
    %3570 = vmatpush1.msra.mxu0 0.0
    %3571 = vmatprep.subr.mxu0 0.0
    %3572 = vmatpush1.msra.mxu0 0.0
    %3573 = vmatprep.subr.mxu0 0.0
    %3574 = vmatpush1.msra.mxu0 0.0
    %3575 = vmatprep.subr.mxu0 0.0
    %3576 = vmatpush1.msra.mxu0 0.0
    %3577 = vmatprep.subr.mxu0 0.0
    %3578 = vmatpush1.msra.mxu0 0.0
    %3579 = vmatprep.subr.mxu0 0.0
    %3580 = vmatpush1.msra.mxu0 0.0
    %3581 = vmatprep.subr.mxu0 0.0
    %3582 = vmatpush1.msra.mxu0 0.0
    %3583 = vmatprep.subr.mxu0 0.0
    %3584 = vmatpush1.msra.mxu0 0.0
    %3585 = vmatprep.subr.mxu0 0.0
    %3586 = vmatpush1.msra.mxu0 0.0
    %3587 = vmatprep.subr.mxu0 0.0
    %3588 = vmatpush1.msra.mxu0 0.0
    %3589 = vmatprep.subr.mxu0 0.0
    %3590 = vmatpush1.msra.mxu0 0.0
    %3591 = vmatprep.subr.mxu0 0.0
    %3592 = vmatpush1.msra.mxu0 0.0
    %3593 = vmatprep.subr.mxu0 0.0
    %3594 = vmatpush1.msra.mxu0 0.0
    %3595 = vmatprep.subr.mxu0 0.0
    %3596 = vmatpush1.msra.mxu0 0.0
    %3597 = vmatprep.subr.mxu0 0.0
    %3598 = vmatpush1.msra.mxu0 0.0
    %3599 = vmatprep.subr.mxu0 0.0
    %3600 = vmatpush1.msra.mxu0 0.0
    %3601 = vmatprep.subr.mxu0 0.0
    %3602 = vmatpush1.msra.mxu0 0.0
    %3603 = vmatprep.subr.mxu0 0.0
    %3604 = vmatpush1.msra.mxu0 0.0
    %3605 = vmatprep.subr.mxu0 0.0
    %3606 = vmatpush1.msra.mxu0 0.0
    %3607 = vmatprep.subr.mxu0 0.0
    %3608 = vmatpush1.msra.mxu0 0.0
    %3609 = vmatprep.subr.mxu0 0.0
    %3610 = vmatpush1.msra.mxu0 0.0
    %3611 = vmatprep.subr.mxu0 0.0
    %3612 = vmatpush1.msra.mxu0 0.0
    %3613 = vmatprep.subr.mxu0 0.0
    %3614 = vmatpush1.msra.mxu0 0.0
    %3615 = vmatprep.subr.mxu0 0.0
    %3616 = vmatpush1.msra.mxu0 0.0
    %3617 = vmatprep.subr.mxu0 0.0
    %3618 = vmatpush1.msra.mxu0 0.0
    %3619 = vmatprep.mubr.f32.mxu0 0.0
    %3620 = vmatmul.mubr.f32.gmra.mrb[0].mxu0 %v3550
    %v3621 = vpop.f32.mrb[0].mxu0
    %v3622 = vadd.f32 %v3548, %v3621
    %v3623 = vpop.f32.mrb[0].mxu0
    %3624 = vmatprep.mubr.f32.mxu0 0.0
    %3625 = vmatmul.mubr.f32.gmra.mrb[0].mxu0 %v3553
    %v3626 = vpop.f32.mrb[0].mxu0
    %v3627 = vadd.f32 %v3548, %v3626
    %v3628 = vpop.f32.mrb[0].mxu0
    %3629 = vdwg.mxu0
    %v3630 = vmul.f32 %v3622, 0.5
    %v3631 = vmul.f32 %v3627, 0.5
    %v3632 = vmul.f32 %v3622, 0.70710677
    %v3633 = vmul.f32 %v3627, 0.70710677
    %v3634 = verf.f32.pop %v3632
    %v3635 = verf.f32.pop %v3633
    %v3636 = vadd.f32 %v3634, 1.0
    %v3637 = vadd.f32 %v3635, 1.0
    %v3638 = vmul.f32 %v3630, %v3636
    %v3639 = vmul.f32 %v3631, %v3637
    %s3640 = scalar_lea.vmem %s12, 64
    %v3641 = vld [vmem:[%s3640] sm:$0xff]
    %v3642 = vld [vmem:[%s3640 + $0x8] sm:$0xff]
    %v3643 = vld [vmem:[%s3640 + $0x10] sm:$0xff]
    %v3644 = vld [vmem:[%s3640 + $0x18] sm:$0xff]
    %v3645 = vld [vmem:[%s3640 + $0x20] sm:$0xff]
    %v3646 = vld [vmem:[%s3640 + $0x28] sm:$0xff]
    %v3647 = vld [vmem:[%s3640 + $0x30] sm:$0xff]
    %v3648 = vld [vmem:[%s3640 + $0x38] sm:$0xff]
    %v3649 = vld [vmem:[%s13 + $0x1] sm:$0x1]
    %v3650 = vlaneseq
    %v3651 = vshrl.u32 %v3650, 7
    %v3652 = vsub.s32 0, %v3651
    %v3653 = vrot.slane %v3649, %v3652
    %v3655 = vsel %vm1827, %v3638, 0
    %v3658 = vsel %vm1827, %v3639, 0
    %3660 = vmatprep.subr.mxu0 0.0
    %3661 = vmatpush1.msra.mxu0 %v3641
    %3662 = vmatprep.subr.mxu0 0.0
    %3663 = vmatpush1.msra.mxu0 %v3642
    %3664 = vmatprep.subr.mxu0 0.0
    %3665 = vmatpush1.msra.mxu0 %v3643
    %3666 = vmatprep.subr.mxu0 0.0
    %3667 = vmatpush1.msra.mxu0 %v3644
    %3668 = vmatprep.subr.mxu0 0.0
    %3669 = vmatpush1.msra.mxu0 %v3645
    %3670 = vmatprep.subr.mxu0 0.0
    %3671 = vmatpush1.msra.mxu0 %v3646
    %3672 = vmatprep.subr.mxu0 0.0
    %3673 = vmatpush1.msra.mxu0 %v3647
    %3674 = vmatprep.subr.mxu0 0.0
    %3675 = vmatpush1.msra.mxu0 %v3648
    %3676 = vmatprep.subr.mxu0 0.0
    %3677 = vmatpush1.msra.mxu0 0.0
    %3678 = vmatprep.subr.mxu0 0.0
    %3679 = vmatpush1.msra.mxu0 0.0
    %3680 = vmatprep.subr.mxu0 0.0
    %3681 = vmatpush1.msra.mxu0 0.0
    %3682 = vmatprep.subr.mxu0 0.0
    %3683 = vmatpush1.msra.mxu0 0.0
    %3684 = vmatprep.subr.mxu0 0.0
    %3685 = vmatpush1.msra.mxu0 0.0
    %3686 = vmatprep.subr.mxu0 0.0
    %3687 = vmatpush1.msra.mxu0 0.0
    %3688 = vmatprep.subr.mxu0 0.0
    %3689 = vmatpush1.msra.mxu0 0.0
    %3690 = vmatprep.subr.mxu0 0.0
    %3691 = vmatpush1.msra.mxu0 0.0
    %3692 = vmatprep.subr.mxu0 0.0
    %3693 = vmatpush1.msra.mxu0 0.0
    %3694 = vmatprep.subr.mxu0 0.0
    %3695 = vmatpush1.msra.mxu0 0.0
    %3696 = vmatprep.subr.mxu0 0.0
    %3697 = vmatpush1.msra.mxu0 0.0
    %3698 = vmatprep.subr.mxu0 0.0
    %3699 = vmatpush1.msra.mxu0 0.0
    %3700 = vmatprep.subr.mxu0 0.0
    %3701 = vmatpush1.msra.mxu0 0.0
    %3702 = vmatprep.subr.mxu0 0.0
    %3703 = vmatpush1.msra.mxu0 0.0
    %3704 = vmatprep.subr.mxu0 0.0
    %3705 = vmatpush1.msra.mxu0 0.0
    %3706 = vmatprep.subr.mxu0 0.0
    %3707 = vmatpush1.msra.mxu0 0.0
    %3708 = vmatprep.subr.mxu0 0.0
    %3709 = vmatpush1.msra.mxu0 0.0
    %3710 = vmatprep.subr.mxu0 0.0
    %3711 = vmatpush1.msra.mxu0 0.0
    %3712 = vmatprep.subr.mxu0 0.0
    %3713 = vmatpush1.msra.mxu0 0.0
    %3714 = vmatprep.subr.mxu0 0.0
    %3715 = vmatpush1.msra.mxu0 0.0
    %3716 = vmatprep.subr.mxu0 0.0
    %3717 = vmatpush1.msra.mxu0 0.0
    %3718 = vmatprep.subr.mxu0 0.0
    %3719 = vmatpush1.msra.mxu0 0.0
    %3720 = vmatprep.subr.mxu0 0.0
    %3721 = vmatpush1.msra.mxu0 0.0
    %3722 = vmatprep.subr.mxu0 0.0
    %3723 = vmatpush1.msra.mxu0 0.0
    %3724 = vmatprep.mubr.f32.mxu0 0.0
    %3725 = vmatmul.mubr.f32.gmra.mrb[0].mxu0 %v3655
    %v3726 = vpop.f32.mrb[0].mxu0
    %v3727 = vadd.f32 %v3653, %v3726
    %v3728 = vpop.f32.mrb[0].mxu0
    %3729 = vmatprep.mubr.f32.mxu0 0.0
    %3730 = vmatmul.mubr.f32.gmra.mrb[0].mxu0 %v3658
    %v3731 = vpop.f32.mrb[0].mxu0
    %v3732 = vadd.f32 %v3653, %v3731
    %v3733 = vpop.f32.mrb[0].mxu0
    %3734 = vdwg.mxu0
    %v3735 = vadd.f32 %v3727, %v3537
    %v3736 = vadd.f32 %v3732, %v3538
    %v3737 = vld [vmem:[%s14 + $0x1] sm:$0x1]
    %v3738 = vld [vmem:[%s15 + $0x1] sm:$0x1]
    %v3739 = vsel %vm70, %v3735, 0.0
    %3740 = vadd.xlane.f32.xlu0 %v3739
    %v3741 = vpop.xlane.xlu0 %3740
    %v3742 = vsel %vm70, %v3736, 0.0
    %3743 = vadd.xlane.f32.xlu0 %v3742
    %v3744 = vpop.xlane.xlu0 %3743
    %v3745 = vmul.f32 %v3741, %v77
    %v3746 = vmul.f32 %v3744, %v77
    %v3747 = vsub.f32 %v3735, %v3745
    %v3748 = vsub.f32 %v3736, %v3746
    %v3749 = vmul.f32 %v3747, %v3747
    %v3750 = vmul.f32 %v3748, %v3748
    %v3751 = vsel %vm70, %v3749, 0.0
    %3752 = vadd.xlane.f32.xlu0 %v3751
    %v3753 = vpop.xlane.xlu0 %3752
    %v3754 = vsel %vm70, %v3750, 0.0
    %3755 = vadd.xlane.f32.xlu0 %v3754
    %v3756 = vpop.xlane.xlu0 %3755
    %v3757 = vmul.f32 %v3753, %v77
    %v3758 = vmul.f32 %v3756, %v77
    %v3759 = vadd.f32 %v3757, 1e-12
    %v3760 = vadd.f32 %v3758, 1e-12
    %v3761 = vrsqrt.pop %v3759
    %v3762 = vrsqrt.pop %v3760
    %v3763 = vmul.f32 %v3747, %v3761
    %v3764 = vmul.f32 %v3748, %v3762
    %v3765 = vlaneseq
    %v3766 = vshrl.u32 %v3765, 7
    %v3767 = vsub.s32 0, %v3766
    %v3768 = vrot.slane %v3737, %v3767
    %v3769 = vmul.f32 %v3763, %v3768
    %v3770 = vmul.f32 %v3764, %v3768
    %v3771 = vlaneseq
    %v3772 = vshrl.u32 %v3771, 7
    %v3773 = vsub.s32 0, %v3772
    %v3774 = vrot.slane %v3738, %v3773
    %v3775 = vadd.f32 %v3769, %v3774
    %v3776 = vadd.f32 %v3770, %v3774
    %v3778 = vrot.slane %v3776, 7
    %vm3780 = vcmask 1040384
    %v3781 = vsel %vm3780, %v3775, %v3778
    %v3782 = vld [vmem:[%s16] sm:$0xff]
    %v3783 = vld [vmem:[%s16 + $0x8] sm:$0xff]
    %v3784 = vld [vmem:[%s16 + $0x10] sm:$0xff]
    %v3785 = vld [vmem:[%s16 + $0x18] sm:$0xff]
    %v3786 = vld [vmem:[%s17] sm:$0x1]
    %v3788 = vlaneseq
    %v3789 = vshrl.u32 %v3788, 7
    %v3790 = vsub.s32 0, %v3789
    %v3791 = vrot.slane %v3786, %v3790
    %v3794 = vsel %vm70, %v3781, 0
    %3796 = vmatprep.subr.mxu0 0.0
    %3797 = vmatpush1.msra.mxu0 %v3782
    %3798 = vmatprep.subr.mxu0 0.0
    %3799 = vmatpush1.msra.mxu0 %v3783
    %3800 = vmatprep.subr.mxu0 0.0
    %3801 = vmatpush1.msra.mxu0 %v3784
    %3802 = vmatprep.subr.mxu0 0.0
    %3803 = vmatpush1.msra.mxu0 %v3785
    %3804 = vmatprep.subr.mxu0 0.0
    %3805 = vmatpush1.msra.mxu0 0.0
    %3806 = vmatprep.subr.mxu0 0.0
    %3807 = vmatpush1.msra.mxu0 0.0
    %3808 = vmatprep.subr.mxu0 0.0
    %3809 = vmatpush1.msra.mxu0 0.0
    %3810 = vmatprep.subr.mxu0 0.0
    %3811 = vmatpush1.msra.mxu0 0.0
    %3812 = vmatprep.subr.mxu0 0.0
    %3813 = vmatpush1.msra.mxu0 0.0
    %3814 = vmatprep.subr.mxu0 0.0
    %3815 = vmatpush1.msra.mxu0 0.0
    %3816 = vmatprep.subr.mxu0 0.0
    %3817 = vmatpush1.msra.mxu0 0.0
    %3818 = vmatprep.subr.mxu0 0.0
    %3819 = vmatpush1.msra.mxu0 0.0
    %3820 = vmatprep.subr.mxu0 0.0
    %3821 = vmatpush1.msra.mxu0 0.0
    %3822 = vmatprep.subr.mxu0 0.0
    %3823 = vmatpush1.msra.mxu0 0.0
    %3824 = vmatprep.subr.mxu0 0.0
    %3825 = vmatpush1.msra.mxu0 0.0
    %3826 = vmatprep.subr.mxu0 0.0
    %3827 = vmatpush1.msra.mxu0 0.0
    %3828 = vmatprep.subr.mxu0 0.0
    %3829 = vmatpush1.msra.mxu0 0.0
    %3830 = vmatprep.subr.mxu0 0.0
    %3831 = vmatpush1.msra.mxu0 0.0
    %3832 = vmatprep.subr.mxu0 0.0
    %3833 = vmatpush1.msra.mxu0 0.0
    %3834 = vmatprep.subr.mxu0 0.0
    %3835 = vmatpush1.msra.mxu0 0.0
    %3836 = vmatprep.subr.mxu0 0.0
    %3837 = vmatpush1.msra.mxu0 0.0
    %3838 = vmatprep.subr.mxu0 0.0
    %3839 = vmatpush1.msra.mxu0 0.0
    %3840 = vmatprep.subr.mxu0 0.0
    %3841 = vmatpush1.msra.mxu0 0.0
    %3842 = vmatprep.subr.mxu0 0.0
    %3843 = vmatpush1.msra.mxu0 0.0
    %3844 = vmatprep.subr.mxu0 0.0
    %3845 = vmatpush1.msra.mxu0 0.0
    %3846 = vmatprep.subr.mxu0 0.0
    %3847 = vmatpush1.msra.mxu0 0.0
    %3848 = vmatprep.subr.mxu0 0.0
    %3849 = vmatpush1.msra.mxu0 0.0
    %3850 = vmatprep.subr.mxu0 0.0
    %3851 = vmatpush1.msra.mxu0 0.0
    %3852 = vmatprep.subr.mxu0 0.0
    %3853 = vmatpush1.msra.mxu0 0.0
    %3854 = vmatprep.subr.mxu0 0.0
    %3855 = vmatpush1.msra.mxu0 0.0
    %3856 = vmatprep.subr.mxu0 0.0
    %3857 = vmatpush1.msra.mxu0 0.0
    %3858 = vmatprep.subr.mxu0 0.0
    %3859 = vmatpush1.msra.mxu0 0.0
    %3860 = vmatprep.mubr.f32.mxu0 0.0
    %3861 = vmatmul.mubr.f32.gmra.mrb[0].mxu0 %v3794
    %v3862 = vpop.f32.mrb[0].mxu0
    %v3863 = vadd.f32 %v3791, %v3862
    %v3864 = vpop.f32.mrb[0].mxu0
    %3865 = vdwg.mxu0
    %v3866 = vtanh.pop %v3863
    %v3867 = vld [vmem:[%s18] sm:$0xff]
    %v3868 = vld [vmem:[%s18 + $0x8] sm:$0xff]
    %v3869 = vld [vmem:[%s18 + $0x10] sm:$0xff]
    %v3870 = vld [vmem:[%s18 + $0x18] sm:$0xff]
    %v3871 = vld [vmem:[%s19] sm:$0x1]
    %v3873 = vlaneseq
    %v3874 = vshrl.u32 %v3873, 7
    %v3875 = vsub.s32 0, %v3874
    %v3876 = vrot.slane %v3871, %v3875
    %v3879 = vsel %vm70, %v3866, 0
    %3881 = vmatprep.subr.mxu0 0.0
    %3882 = vmatpush1.msra.mxu0 %v3867
    %3883 = vmatprep.subr.mxu0 0.0
    %3884 = vmatpush1.msra.mxu0 %v3868
    %3885 = vmatprep.subr.mxu0 0.0
    %3886 = vmatpush1.msra.mxu0 %v3869
    %3887 = vmatprep.subr.mxu0 0.0
    %3888 = vmatpush1.msra.mxu0 %v3870
    %3889 = vmatprep.subr.mxu0 0.0
    %3890 = vmatpush1.msra.mxu0 0.0
    %3891 = vmatprep.subr.mxu0 0.0
    %3892 = vmatpush1.msra.mxu0 0.0
    %3893 = vmatprep.subr.mxu0 0.0
    %3894 = vmatpush1.msra.mxu0 0.0
    %3895 = vmatprep.subr.mxu0 0.0
    %3896 = vmatpush1.msra.mxu0 0.0
    %3897 = vmatprep.subr.mxu0 0.0
    %3898 = vmatpush1.msra.mxu0 0.0
    %3899 = vmatprep.subr.mxu0 0.0
    %3900 = vmatpush1.msra.mxu0 0.0
    %3901 = vmatprep.subr.mxu0 0.0
    %3902 = vmatpush1.msra.mxu0 0.0
    %3903 = vmatprep.subr.mxu0 0.0
    %3904 = vmatpush1.msra.mxu0 0.0
    %3905 = vmatprep.subr.mxu0 0.0
    %3906 = vmatpush1.msra.mxu0 0.0
    %3907 = vmatprep.subr.mxu0 0.0
    %3908 = vmatpush1.msra.mxu0 0.0
    %3909 = vmatprep.subr.mxu0 0.0
    %3910 = vmatpush1.msra.mxu0 0.0
    %3911 = vmatprep.subr.mxu0 0.0
    %3912 = vmatpush1.msra.mxu0 0.0
    %3913 = vmatprep.subr.mxu0 0.0
    %3914 = vmatpush1.msra.mxu0 0.0
    %3915 = vmatprep.subr.mxu0 0.0
    %3916 = vmatpush1.msra.mxu0 0.0
    %3917 = vmatprep.subr.mxu0 0.0
    %3918 = vmatpush1.msra.mxu0 0.0
    %3919 = vmatprep.subr.mxu0 0.0
    %3920 = vmatpush1.msra.mxu0 0.0
    %3921 = vmatprep.subr.mxu0 0.0
    %3922 = vmatpush1.msra.mxu0 0.0
    %3923 = vmatprep.subr.mxu0 0.0
    %3924 = vmatpush1.msra.mxu0 0.0
    %3925 = vmatprep.subr.mxu0 0.0
    %3926 = vmatpush1.msra.mxu0 0.0
    %3927 = vmatprep.subr.mxu0 0.0
    %3928 = vmatpush1.msra.mxu0 0.0
    %3929 = vmatprep.subr.mxu0 0.0
    %3930 = vmatpush1.msra.mxu0 0.0
    %3931 = vmatprep.subr.mxu0 0.0
    %3932 = vmatpush1.msra.mxu0 0.0
    %3933 = vmatprep.subr.mxu0 0.0
    %3934 = vmatpush1.msra.mxu0 0.0
    %3935 = vmatprep.subr.mxu0 0.0
    %3936 = vmatpush1.msra.mxu0 0.0
    %3937 = vmatprep.subr.mxu0 0.0
    %3938 = vmatpush1.msra.mxu0 0.0
    %3939 = vmatprep.subr.mxu0 0.0
    %3940 = vmatpush1.msra.mxu0 0.0
    %3941 = vmatprep.subr.mxu0 0.0
    %3942 = vmatpush1.msra.mxu0 0.0
    %3943 = vmatprep.subr.mxu0 0.0
    %3944 = vmatpush1.msra.mxu0 0.0
    %3945 = vmatprep.mubr.f32.mxu0 0.0
    %3946 = vmatmul.mubr.f32.gmra.mrb[0].mxu0 %v3879
    %v3947 = vpop.f32.mrb[0].mxu0
    %v3948 = vadd.f32 %v3876, %v3947
    %v3949 = vpop.f32.mrb[0].mxu0
    %3950 = vdwg.mxu0
    %3951 = vst [vmem:[#allocation2] sm:$0x3] %v3948
    // Predicated region
    $region82: #{bert_classifier_forward.1} parent=1 // pred_check
      _
    $region83: #{bert_classifier_forward.1} parent=1 // pred_check_branch
      %3953 = sbr.rel (0) target = $region85
    $region84: #{bert_classifier_forward.1} parent=1 // pred_region
      %s3955 = ssub.s32 32, 32
      %3956 = vsyncadd [#allocation3], %s3955
      %s3958 = sshll.u32 [#allocation2], 4
      %s3959 = int_to_ptr.vmem [resolvable:$true] %s3958
      %3961 = dma.vmem_to_hbm [thread:$0]  %s3959, 32, %s20, [#allocation3]
    $region85: #{bert_classifier_forward.1} parent=1 // pred_fallthru
      _
    // Predicated region
    $region86: #{bert_classifier_forward.1} parent=1 // pred_check
      _
    $region87: #{bert_classifier_forward.1} parent=1 // pred_check_branch
      %3963 = sbr.rel (0) target = $region89
    $region88: #{bert_classifier_forward.1} parent=1 // pred_region
      %3964 = dma.done [#allocation3], 32
    $region89: #{bert_classifier_forward.1} parent=1 // pred_fallthru
      _
    %3965 = vsyncpa [#allocation3], 1

</llo_original>
